<compile_context>
chip_gen: v7x
topology: tpu7x:2x2x1
jax: 0.10.0
libtpu: 0.0.40
codegen_flags: <defaults>
</compile_context>

<pallas_src>
import jax
import jax.numpy as jnp
from jax.experimental import pallas as pl
from jax.experimental.pallas import tpu as pltpu

# ---- Constants mirroring the PyTorch globals ----
NUM_FEATURES = 4
NUM_AREA = 16
HIDDEN_DIM = 64
OUTPUT_DIM = 256
OUT_PER_AREA = OUTPUT_DIM // NUM_AREA  # int(output_dim / NUM_AREA) = 16
SKIP_GNN = False
LN_EPS = 1e-5
LEAKY_SLOPE = 0.01  # torch.nn.functional.leaky_relu default

B_TILE = 8                      # graphs per grid step (tunable; v6e can go bigger,
ROWS = B_TILE * NUM_AREA        # but the block-diag aggregation cost grows ~B_TILE^2)


def _layer_norm(y, gamma, beta):
    mean = jnp.mean(y, axis=-1, keepdims=True)
    var = jnp.mean((y - mean) ** 2, axis=-1, keepdims=True)
    return (y - mean) * jax.lax.rsqrt(var + LN_EPS) * gamma + beta


def _leaky_relu(x):
    return jnp.where(x > 0, x, LEAKY_SLOPE * x)


def gnn_encoder_kernel(a_blk_ref, x_ref,
                       w1, wr1, b1s, g1, be1,
                       w2f, b2s, g2, be2,
                       w3f, b3s, g3, be3,
                       wfc_h, wfc_o, bfc, gout, beout,
                       o_ref):
    A = a_blk_ref[...]          # (ROWS, ROWS) block-diag normalized adjacency
    X0 = x_ref[...]             # (ROWS, NUM_FEATURES), rows = (graph, node)-major

    # ---- layer 1 (K=4; keep conv/residual projections separate) ----
    conv1 = jnp.dot(A, jnp.dot(X0, w1[...], preferred_element_type=jnp.float32),
                    preferred_element_type=jnp.float32)
    res1 = jnp.dot(X0, wr1[...], preferred_element_type=jnp.float32)
    h = _leaky_relu(_layer_norm(conv1 + res1 + b1s[...], g1[...], be1[...]))

    # ---- layers 2, 3: fused [W_conv | W_res] projection, one wide matmul ----
    def fused_block(h_in, wf, bs, g, be, out_dim):
        hw = jnp.dot(h_in, wf[...], preferred_element_type=jnp.float32)  # (ROWS, 2*out)
        conv = jnp.dot(A, hw[:, :out_dim], preferred_element_type=jnp.float32)
        y = conv + hw[:, out_dim:] + bs[...]
        return _leaky_relu(_layer_norm(y, g[...], be[...]))

    h = fused_block(h, w2f, b2s, g2, be2, 2 * HIDDEN_DIM)   # slices at 128: aligned
    h = fused_block(h, w3f, b3s, g3, be3, 4 * HIDDEN_DIM)   # slices at 256: aligned

    # ---- fc(concat([h3, x0], -1)) = h3 @ Wfc[:256] + x0 @ Wfc[256:] + bfc ----
    z = (jnp.dot(h, wfc_h[...], preferred_element_type=jnp.float32)
         + jnp.dot(X0, wfc_o[...], preferred_element_type=jnp.float32)
         + bfc[...])
    o_ref[...] = jnp.tanh(_layer_norm(z, gout[...], beout[...]))


def _rep_spec(shape):
    """Full-array block, constant index -> fetched once, not re-DMA'd per step."""
    return pl.BlockSpec(shape, lambda b: tuple(0 for _ in shape))


def gnn_encoder_forward(state, edge_index, params, batch_size):
    """state: (batch_size, NUM_AREA*NUM_FEATURES) float32
       edge_index: (2, E) int32 — shared graph across the batch (GCNConv style)
       returns: (batch_size, NUM_AREA * OUT_PER_AREA) float32 in (-1, 1)
    """
    if SKIP_GNN:
        return state

    # rows ordered (graph, node): row = b * NUM_AREA + m
    x = state.reshape(batch_size * NUM_AREA, NUM_FEATURES).astype(jnp.float32)

    # pad batch to a multiple of B_TILE (padded graphs are sliced off at the end)
    num_tiles = pl.cdiv(batch_size, B_TILE)
    padded_batch = num_tiles * B_TILE
    pad_rows = (padded_batch - batch_size) * NUM_AREA
    if pad_rows:
        x = jnp.concatenate(
            [x, jnp.zeros((pad_rows, NUM_FEATURES), jnp.float32)], axis=0)

    # --- glue: dense symmetric-normalized adjacency with self-loops ---
    # (duplicate edges are deduplicated; PyG's gcn_norm scatter-adds weights, so
    #  degrees can differ on multigraphs — fine for the simple-graph case here)
    src, dst = edge_index[0], edge_index[1]
    A = jnp.zeros((NUM_AREA, NUM_AREA), jnp.float32).at[dst, src].set(1.0)
    A = jnp.maximum(A, jnp.eye(NUM_AREA, dtype=jnp.float32))      # add self loops
    deg = jnp.sum(A, axis=1)
    dinv = jax.lax.rsqrt(deg)
    A_norm = dinv[:, None] * A * dinv[None, :]
    # block-diagonal (ROWS, ROWS): per-graph aggregation as one dense matmul
    A_blk = jnp.kron(jnp.eye(B_TILE, dtype=jnp.float32), A_norm)

    # --- pack / fuse parameters wrapper-side ---
    w1, wr1 = params["w1"], params["wr1"]
    b1s = params["b1"] + params["br1"]
    w2f = jnp.concatenate([params["w2"], params["wr2"]], axis=1)   # (64, 256)
    b2s = params["b2"] + params["br2"]
    w3f = jnp.concatenate([params["w3"], params["wr3"]], axis=1)   # (128, 512)
    b3s = params["b3"] + params["br3"]
    param_arrays = [
        w1, wr1, b1s, params["g1"], params["be1"],
        w2f, b2s, params["g2"], params["be2"],
        w3f, b3s, params["g3"], params["be3"],
        params["wfc_h"], params["wfc_o"], params["bfc"],
        params["gout"], params["beout"],
    ]

    in_specs = [
        _rep_spec((ROWS, ROWS)),                                   # block-diag adjacency
        pl.BlockSpec((ROWS, NUM_FEATURES), lambda b: (b, 0)),      # per-tile node feats
    ] + [_rep_spec(p.shape) for p in param_arrays]

    # ---- cost estimate (whole call) ----
    G = int(num_tiles)
    per_step_flops = 2 * ROWS * (
        2 * NUM_FEATURES * HIDDEN_DIM            # layer-1 projections
        + ROWS * HIDDEN_DIM                      # layer-1 aggregation
        + HIDDEN_DIM * (4 * HIDDEN_DIM)          # layer-2 fused projection
        + ROWS * (2 * HIDDEN_DIM)                # layer-2 aggregation
        + (2 * HIDDEN_DIM) * (8 * HIDDEN_DIM)    # layer-3 fused projection
        + ROWS * (4 * HIDDEN_DIM)                # layer-3 aggregation
        + (4 * HIDDEN_DIM) * OUT_PER_AREA        # fc (h3 part)
        + NUM_FEATURES * OUT_PER_AREA)           # fc (x0 part)
    param_bytes = sum(int(p.size) * p.dtype.itemsize for p in param_arrays)
    io_bytes = (A_blk.size * 4
                + G * ROWS * (NUM_FEATURES + OUT_PER_AREA) * 4)
    cost = pl.CostEstimate(
        flops=G * per_step_flops,
        transcendentals=G * ROWS * (4 + OUT_PER_AREA),
        bytes_accessed=param_bytes + io_bytes)

    out = pl.pallas_call(
        gnn_encoder_kernel,
        out_shape=jax.ShapeDtypeStruct((padded_batch * NUM_AREA, OUT_PER_AREA),
                                       jnp.float32),
        grid_spec=pltpu.PrefetchScalarGridSpec(
            num_scalar_prefetch=0,
            grid=(G,),
            in_specs=in_specs,
            out_specs=pl.BlockSpec((ROWS, OUT_PER_AREA), lambda b: (b, 0)),
        ),
        compiler_params=pltpu.CompilerParams(
            dimension_semantics=("parallel",)),
        cost_estimate=cost,
    )(A_blk, x, *param_arrays)

    # drop padded graphs; contiguous reshape to (batch, 256) is free in XLA
    out = out[:batch_size * NUM_AREA].reshape(batch_size, NUM_AREA * OUT_PER_AREA)
    return out


def init_params(key):
    """Deterministic synthetic parameter init (shapes match the PyTorch module)."""
    def linear(k, fan_in, fan_out):
        k1, k2 = jax.random.split(k)
        bound = 1.0 / float(fan_in) ** 0.5
        w = jax.random.uniform(k1, (fan_in, fan_out), jnp.float32, -bound, bound)
        b = jax.random.uniform(k2, (1, fan_out), jnp.float32, -bound, bound)
        return w, b

    keys = jax.random.split(key, 8)
    H, H2, H4 = HIDDEN_DIM, HIDDEN_DIM * 2, HIDDEN_DIM * 4
    params = {}
    params["w1"], params["b1"] = linear(keys[0], NUM_FEATURES, H)   # GCNConv1
    params["wr1"], params["br1"] = linear(keys[1], NUM_FEATURES, H) # res1
    params["w2"], params["b2"] = linear(keys[2], H, H2)             # GCNConv2
    params["wr2"], params["br2"] = linear(keys[3], H, H2)           # res2
    params["w3"], params["b3"] = linear(keys[4], H2, H4)            # GCNConv3
    params["wr3"], params["br3"] = linear(keys[5], H2, H4)          # res3
    wfc, bfc = linear(keys[6], H4 + NUM_FEATURES, OUT_PER_AREA)     # fc
    params["wfc_h"], params["wfc_o"] = wfc[:H4], wfc[H4:]
    params["bfc"] = bfc
    # LayerNorm affine params (PyTorch default init: ones / zeros)
    params["g1"] = jnp.ones((1, H), jnp.float32)
    params["be1"] = jnp.zeros((1, H), jnp.float32)
    params["g2"] = jnp.ones((1, H2), jnp.float32)
    params["be2"] = jnp.zeros((1, H2), jnp.float32)
    params["g3"] = jnp.ones((1, H4), jnp.float32)
    params["be3"] = jnp.zeros((1, H4), jnp.float32)
    params["gout"] = jnp.ones((1, OUT_PER_AREA), jnp.float32)
    params["beout"] = jnp.zeros((1, OUT_PER_AREA), jnp.float32)
    return params


if __name__ == "__main__":
    key = jax.random.PRNGKey(0)
    kx, kp = jax.random.split(key)

    batch_size = 16  # small, but exercises >1 grid step (2 tiles of B_TILE=8)
    state = jax.random.normal(kx, (batch_size, NUM_AREA * NUM_FEATURES),
                              dtype=jnp.float32)

    # bidirectional ring graph over NUM_AREA nodes (shared across the batch)
    nodes = jnp.arange(NUM_AREA, dtype=jnp.int32)
    src = jnp.concatenate([nodes, (nodes + 1) % NUM_AREA])
    dst = jnp.concatenate([(nodes + 1) % NUM_AREA, nodes])
    edge_index = jnp.stack([src, dst])

    params = init_params(kp)

    out = gnn_encoder_forward(state, edge_index, params, batch_size)
    out = jax.block_until_ready(out)
    assert out.shape == (batch_size, NUM_AREA * OUT_PER_AREA)
    assert bool(jnp.all(jnp.isfinite(out)))
    assert bool(jnp.all(jnp.abs(out) <= 1.0))
    print("KERNEL_OK")
</pallas_src>

<mosaic_0001>
module attributes {stable_mosaic.version = 11 : i64} {
  func.func @gnn_encoder_kernel(%arg0: i32, %arg1: memref<128x128xf32, #tpu.memory_space<vmem>>, %arg2: memref<128x4xf32, #tpu.memory_space<vmem>>, %arg3: memref<4x64xf32, #tpu.memory_space<vmem>>, %arg4: memref<4x64xf32, #tpu.memory_space<vmem>>, %arg5: memref<1x64xf32, #tpu.memory_space<vmem>>, %arg6: memref<1x64xf32, #tpu.memory_space<vmem>>, %arg7: memref<1x64xf32, #tpu.memory_space<vmem>>, %arg8: memref<64x256xf32, #tpu.memory_space<vmem>>, %arg9: memref<1x128xf32, #tpu.memory_space<vmem>>, %arg10: memref<1x128xf32, #tpu.memory_space<vmem>>, %arg11: memref<1x128xf32, #tpu.memory_space<vmem>>, %arg12: memref<128x512xf32, #tpu.memory_space<vmem>>, %arg13: memref<1x256xf32, #tpu.memory_space<vmem>>, %arg14: memref<1x256xf32, #tpu.memory_space<vmem>>, %arg15: memref<1x256xf32, #tpu.memory_space<vmem>>, %arg16: memref<256x16xf32, #tpu.memory_space<vmem>>, %arg17: memref<4x16xf32, #tpu.memory_space<vmem>>, %arg18: memref<1x16xf32, #tpu.memory_space<vmem>>, %arg19: memref<1x16xf32, #tpu.memory_space<vmem>>, %arg20: memref<1x16xf32, #tpu.memory_space<vmem>>, %arg21: memref<128x16xf32, #tpu.memory_space<vmem>>) attributes {dimension_semantics = [#tpu.dimension_semantics<parallel>], iteration_bounds = array<i64: 2>, scalar_prefetch = 0 : i64, scratch_operands = 0 : i64, tpu.core_type = #tpu.core_type<tc>, window_params = [{pipeline_mode = #tpu.pipeline_mode<synchronous>, transform_indices = @transform_0, window_bounds = array<i64: 128, 128>}, {transform_indices = @transform_1, window_bounds = array<i64: 128, 4>}, {pipeline_mode = #tpu.pipeline_mode<synchronous>, transform_indices = @transform_2, window_bounds = array<i64: 4, 64>}, {pipeline_mode = #tpu.pipeline_mode<synchronous>, transform_indices = @transform_3, window_bounds = array<i64: 4, 64>}, {pipeline_mode = #tpu.pipeline_mode<synchronous>, transform_indices = @transform_4, window_bounds = array<i64: 1, 64>}, {pipeline_mode = #tpu.pipeline_mode<synchronous>, transform_indices = @transform_5, window_bounds = array<i64: 1, 64>}, {pipeline_mode = #tpu.pipeline_mode<synchronous>, transform_indices = @transform_6, window_bounds = array<i64: 1, 64>}, {pipeline_mode = #tpu.pipeline_mode<synchronous>, transform_indices = @transform_7, window_bounds = array<i64: 64, 256>}, {pipeline_mode = #tpu.pipeline_mode<synchronous>, transform_indices = @transform_8, window_bounds = array<i64: 1, 128>}, {pipeline_mode = #tpu.pipeline_mode<synchronous>, transform_indices = @transform_9, window_bounds = array<i64: 1, 128>}, {pipeline_mode = #tpu.pipeline_mode<synchronous>, transform_indices = @transform_10, window_bounds = array<i64: 1, 128>}, {pipeline_mode = #tpu.pipeline_mode<synchronous>, transform_indices = @transform_11, window_bounds = array<i64: 128, 512>}, {pipeline_mode = #tpu.pipeline_mode<synchronous>, transform_indices = @transform_12, window_bounds = array<i64: 1, 256>}, {pipeline_mode = #tpu.pipeline_mode<synchronous>, transform_indices = @transform_13, window_bounds = array<i64: 1, 256>}, {pipeline_mode = #tpu.pipeline_mode<synchronous>, transform_indices = @transform_14, window_bounds = array<i64: 1, 256>}, {pipeline_mode = #tpu.pipeline_mode<synchronous>, transform_indices = @transform_15, window_bounds = array<i64: 256, 16>}, {pipeline_mode = #tpu.pipeline_mode<synchronous>, transform_indices = @transform_16, window_bounds = array<i64: 4, 16>}, {pipeline_mode = #tpu.pipeline_mode<synchronous>, transform_indices = @transform_17, window_bounds = array<i64: 1, 16>}, {pipeline_mode = #tpu.pipeline_mode<synchronous>, transform_indices = @transform_18, window_bounds = array<i64: 1, 16>}, {pipeline_mode = #tpu.pipeline_mode<synchronous>, transform_indices = @transform_19, window_bounds = array<i64: 1, 16>}, {transform_indices = @transform_20, window_bounds = array<i64: 128, 16>}]} {
    %c0 = arith.constant 0 : index
    %c0_0 = arith.constant 0 : index
    %0 = vector.load %arg1[%c0, %c0_0] : memref<128x128xf32, #tpu.memory_space<vmem>>, vector<128x128xf32>
    %c0_1 = arith.constant 0 : index
    %c0_2 = arith.constant 0 : index
    %1 = vector.load %arg2[%c0_1, %c0_2] : memref<128x4xf32, #tpu.memory_space<vmem>>, vector<128x4xf32>
    %c0_3 = arith.constant 0 : index
    %c0_4 = arith.constant 0 : index
    %2 = vector.load %arg3[%c0_3, %c0_4] : memref<4x64xf32, #tpu.memory_space<vmem>>, vector<4x64xf32>
    %cst = arith.constant dense<0.000000e+00> : vector<128x64xf32>
    %3 = tpu.matmul %1, %2, %cst {dimension_numbers = #tpu.dot_dimension_numbers<[1], [0], [0], [1], [0, 0, 1, 1], [], []>} : vector<128x4xf32>, vector<4x64xf32>, vector<128x64xf32> -> vector<128x64xf32>
    %cst_5 = arith.constant dense<0.000000e+00> : vector<128x64xf32>
    %4 = tpu.matmul %0, %3, %cst_5 {dimension_numbers = #tpu.dot_dimension_numbers<[1], [0], [0], [1], [0, 0, 1, 1], [], []>} : vector<128x128xf32>, vector<128x64xf32>, vector<128x64xf32> -> vector<128x64xf32>
    %c0_6 = arith.constant 0 : index
    %c0_7 = arith.constant 0 : index
    %5 = vector.load %arg4[%c0_6, %c0_7] : memref<4x64xf32, #tpu.memory_space<vmem>>, vector<4x64xf32>
    %cst_8 = arith.constant dense<0.000000e+00> : vector<128x64xf32>
    %6 = tpu.matmul %1, %5, %cst_8 {dimension_numbers = #tpu.dot_dimension_numbers<[1], [0], [0], [1], [0, 0, 1, 1], [], []>} : vector<128x4xf32>, vector<4x64xf32>, vector<128x64xf32> -> vector<128x64xf32>
    %7 = arith.addf %4, %6 : vector<128x64xf32>
    %c0_9 = arith.constant 0 : index
    %c0_10 = arith.constant 0 : index
    %8 = vector.load %arg5[%c0_9, %c0_10] : memref<1x64xf32, #tpu.memory_space<vmem>>, vector<1x64xf32>
    %9 = vector.broadcast %8 : vector<1x64xf32> to vector<128x64xf32>
    %10 = arith.addf %7, %9 : vector<128x64xf32>
    %c0_11 = arith.constant 0 : index
    %c0_12 = arith.constant 0 : index
    %11 = vector.load %arg6[%c0_11, %c0_12] : memref<1x64xf32, #tpu.memory_space<vmem>>, vector<1x64xf32>
    %c0_13 = arith.constant 0 : index
    %c0_14 = arith.constant 0 : index
    %12 = vector.load %arg7[%c0_13, %c0_14] : memref<1x64xf32, #tpu.memory_space<vmem>>, vector<1x64xf32>
    %cst_15 = arith.constant dense<0.000000e+00> : vector<128xf32>
    %13 = vector.multi_reduction <add>, %10, %cst_15 [1] : vector<128x64xf32> to vector<128xf32>
    %14 = vector.shape_cast %13 : vector<128xf32> to vector<128x1xf32>
    %cst_16 = arith.constant 6.400000e+01 : f32
    %15 = vector.broadcast %cst_16 : f32 to vector<128x1xf32>
    %16 = arith.divf %14, %15 : vector<128x1xf32>
    %17 = vector.broadcast %16 : vector<128x1xf32> to vector<128x64xf32>
    %18 = arith.subf %10, %17 : vector<128x64xf32>
    %19 = arith.mulf %18, %18 : vector<128x64xf32>
    %cst_17 = arith.constant dense<0.000000e+00> : vector<128xf32>
    %20 = vector.multi_reduction <add>, %19, %cst_17 [1] : vector<128x64xf32> to vector<128xf32>
    %21 = vector.shape_cast %20 : vector<128xf32> to vector<128x1xf32>
    %cst_18 = arith.constant 6.400000e+01 : f32
    %22 = vector.broadcast %cst_18 : f32 to vector<128x1xf32>
    %23 = arith.divf %21, %22 : vector<128x1xf32>
    %24 = vector.broadcast %16 : vector<128x1xf32> to vector<128x64xf32>
    %25 = arith.subf %10, %24 : vector<128x64xf32>
    %cst_19 = arith.constant 9.99999974E-6 : f32
    %26 = vector.broadcast %cst_19 : f32 to vector<128x1xf32>
    %27 = arith.addf %23, %26 : vector<128x1xf32>
    %28 = math.rsqrt %27 : vector<128x1xf32>
    %29 = vector.broadcast %28 : vector<128x1xf32> to vector<128x64xf32>
    %30 = arith.mulf %25, %29 : vector<128x64xf32>
    %31 = vector.broadcast %11 : vector<1x64xf32> to vector<128x64xf32>
    %32 = arith.mulf %30, %31 : vector<128x64xf32>
    %33 = vector.broadcast %12 : vector<1x64xf32> to vector<128x64xf32>
    %34 = arith.addf %32, %33 : vector<128x64xf32>
    %cst_20 = arith.constant 0.000000e+00 : f32
    %35 = vector.broadcast %cst_20 : f32 to vector<128x64xf32>
    %36 = arith.cmpf ogt, %34, %35 : vector<128x64xf32>
    %cst_21 = arith.constant 0.00999999977 : f32
    %37 = vector.broadcast %cst_21 : f32 to vector<128x64xf32>
    %38 = arith.mulf %37, %34 : vector<128x64xf32>
    %39 = arith.select %36, %34, %38 : vector<128x64xi1>, vector<128x64xf32>
    %c0_22 = arith.constant 0 : index
    %c0_23 = arith.constant 0 : index
    %40 = vector.load %arg8[%c0_22, %c0_23] : memref<64x256xf32, #tpu.memory_space<vmem>>, vector<64x256xf32>
    %cst_24 = arith.constant dense<0.000000e+00> : vector<128x256xf32>
    %41 = tpu.matmul %39, %40, %cst_24 {dimension_numbers = #tpu.dot_dimension_numbers<[1], [0], [0], [1], [0, 0, 1, 1], [], []>} : vector<128x64xf32>, vector<64x256xf32>, vector<128x256xf32> -> vector<128x256xf32>
    %42 = vector.extract_strided_slice %41 {offsets = [0, 0], sizes = [128, 128], strides = [1, 1]} : vector<128x256xf32> to vector<128x128xf32>
    %cst_25 = arith.constant dense<0.000000e+00> : vector<128x128xf32>
    %43 = tpu.matmul %0, %42, %cst_25 {dimension_numbers = #tpu.dot_dimension_numbers<[1], [0], [0], [1], [0, 0, 1, 1], [], []>} : vector<128x128xf32>, vector<128x128xf32>, vector<128x128xf32> -> vector<128x128xf32>
    %44 = vector.extract_strided_slice %41 {offsets = [0, 128], sizes = [128, 128], strides = [1, 1]} : vector<128x256xf32> to vector<128x128xf32>
    %45 = arith.addf %43, %44 : vector<128x128xf32>
    %c0_26 = arith.constant 0 : index
    %c0_27 = arith.constant 0 : index
    %46 = vector.load %arg9[%c0_26, %c0_27] : memref<1x128xf32, #tpu.memory_space<vmem>>, vector<1x128xf32>
    %47 = vector.broadcast %46 : vector<1x128xf32> to vector<128x128xf32>
    %48 = arith.addf %45, %47 : vector<128x128xf32>
    %c0_28 = arith.constant 0 : index
    %c0_29 = arith.constant 0 : index
    %49 = vector.load %arg10[%c0_28, %c0_29] : memref<1x128xf32, #tpu.memory_space<vmem>>, vector<1x128xf32>
    %c0_30 = arith.constant 0 : index
    %c0_31 = arith.constant 0 : index
    %50 = vector.load %arg11[%c0_30, %c0_31] : memref<1x128xf32, #tpu.memory_space<vmem>>, vector<1x128xf32>
    %cst_32 = arith.constant dense<0.000000e+00> : vector<128xf32>
    %51 = vector.multi_reduction <add>, %48, %cst_32 [1] : vector<128x128xf32> to vector<128xf32>
    %52 = vector.shape_cast %51 : vector<128xf32> to vector<128x1xf32>
    %cst_33 = arith.constant 1.280000e+02 : f32
    %53 = vector.broadcast %cst_33 : f32 to vector<128x1xf32>
    %54 = arith.divf %52, %53 : vector<128x1xf32>
    %55 = vector.broadcast %54 : vector<128x1xf32> to vector<128x128xf32>
    %56 = arith.subf %48, %55 : vector<128x128xf32>
    %57 = arith.mulf %56, %56 : vector<128x128xf32>
    %cst_34 = arith.constant dense<0.000000e+00> : vector<128xf32>
    %58 = vector.multi_reduction <add>, %57, %cst_34 [1] : vector<128x128xf32> to vector<128xf32>
    %59 = vector.shape_cast %58 : vector<128xf32> to vector<128x1xf32>
    %cst_35 = arith.constant 1.280000e+02 : f32
    %60 = vector.broadcast %cst_35 : f32 to vector<128x1xf32>
    %61 = arith.divf %59, %60 : vector<128x1xf32>
    %62 = vector.broadcast %54 : vector<128x1xf32> to vector<128x128xf32>
    %63 = arith.subf %48, %62 : vector<128x128xf32>
    %cst_36 = arith.constant 9.99999974E-6 : f32
    %64 = vector.broadcast %cst_36 : f32 to vector<128x1xf32>
    %65 = arith.addf %61, %64 : vector<128x1xf32>
    %66 = math.rsqrt %65 : vector<128x1xf32>
    %67 = vector.broadcast %66 : vector<128x1xf32> to vector<128x128xf32>
    %68 = arith.mulf %63, %67 : vector<128x128xf32>
    %69 = vector.broadcast %49 : vector<1x128xf32> to vector<128x128xf32>
    %70 = arith.mulf %68, %69 : vector<128x128xf32>
    %71 = vector.broadcast %50 : vector<1x128xf32> to vector<128x128xf32>
    %72 = arith.addf %70, %71 : vector<128x128xf32>
    %cst_37 = arith.constant 0.000000e+00 : f32
    %73 = vector.broadcast %cst_37 : f32 to vector<128x128xf32>
    %74 = arith.cmpf ogt, %72, %73 : vector<128x128xf32>
    %cst_38 = arith.constant 0.00999999977 : f32
    %75 = vector.broadcast %cst_38 : f32 to vector<128x128xf32>
    %76 = arith.mulf %75, %72 : vector<128x128xf32>
    %77 = arith.select %74, %72, %76 : vector<128x128xi1>, vector<128x128xf32>
    %c0_39 = arith.constant 0 : index
    %c0_40 = arith.constant 0 : index
    %78 = vector.load %arg12[%c0_39, %c0_40] : memref<128x512xf32, #tpu.memory_space<vmem>>, vector<128x512xf32>
    %cst_41 = arith.constant dense<0.000000e+00> : vector<128x512xf32>
    %79 = tpu.matmul %77, %78, %cst_41 {dimension_numbers = #tpu.dot_dimension_numbers<[1], [0], [0], [1], [0, 0, 1, 1], [], []>} : vector<128x128xf32>, vector<128x512xf32>, vector<128x512xf32> -> vector<128x512xf32>
    %80 = vector.extract_strided_slice %79 {offsets = [0, 0], sizes = [128, 256], strides = [1, 1]} : vector<128x512xf32> to vector<128x256xf32>
    %cst_42 = arith.constant dense<0.000000e+00> : vector<128x256xf32>
    %81 = tpu.matmul %0, %80, %cst_42 {dimension_numbers = #tpu.dot_dimension_numbers<[1], [0], [0], [1], [0, 0, 1, 1], [], []>} : vector<128x128xf32>, vector<128x256xf32>, vector<128x256xf32> -> vector<128x256xf32>
    %82 = vector.extract_strided_slice %79 {offsets = [0, 256], sizes = [128, 256], strides = [1, 1]} : vector<128x512xf32> to vector<128x256xf32>
    %83 = arith.addf %81, %82 : vector<128x256xf32>
    %c0_43 = arith.constant 0 : index
    %c0_44 = arith.constant 0 : index
    %84 = vector.load %arg13[%c0_43, %c0_44] : memref<1x256xf32, #tpu.memory_space<vmem>>, vector<1x256xf32>
    %85 = vector.broadcast %84 : vector<1x256xf32> to vector<128x256xf32>
    %86 = arith.addf %83, %85 : vector<128x256xf32>
    %c0_45 = arith.constant 0 : index
    %c0_46 = arith.constant 0 : index
    %87 = vector.load %arg14[%c0_45, %c0_46] : memref<1x256xf32, #tpu.memory_space<vmem>>, vector<1x256xf32>
    %c0_47 = arith.constant 0 : index
    %c0_48 = arith.constant 0 : index
    %88 = vector.load %arg15[%c0_47, %c0_48] : memref<1x256xf32, #tpu.memory_space<vmem>>, vector<1x256xf32>
    %cst_49 = arith.constant dense<0.000000e+00> : vector<128xf32>
    %89 = vector.multi_reduction <add>, %86, %cst_49 [1] : vector<128x256xf32> to vector<128xf32>
    %90 = vector.shape_cast %89 : vector<128xf32> to vector<128x1xf32>
    %cst_50 = arith.constant 2.560000e+02 : f32
    %91 = vector.broadcast %cst_50 : f32 to vector<128x1xf32>
    %92 = arith.divf %90, %91 : vector<128x1xf32>
    %93 = vector.broadcast %92 : vector<128x1xf32> to vector<128x256xf32>
    %94 = arith.subf %86, %93 : vector<128x256xf32>
    %95 = arith.mulf %94, %94 : vector<128x256xf32>
    %cst_51 = arith.constant dense<0.000000e+00> : vector<128xf32>
    %96 = vector.multi_reduction <add>, %95, %cst_51 [1] : vector<128x256xf32> to vector<128xf32>
    %97 = vector.shape_cast %96 : vector<128xf32> to vector<128x1xf32>
    %cst_52 = arith.constant 2.560000e+02 : f32
    %98 = vector.broadcast %cst_52 : f32 to vector<128x1xf32>
    %99 = arith.divf %97, %98 : vector<128x1xf32>
    %100 = vector.broadcast %92 : vector<128x1xf32> to vector<128x256xf32>
    %101 = arith.subf %86, %100 : vector<128x256xf32>
    %cst_53 = arith.constant 9.99999974E-6 : f32
    %102 = vector.broadcast %cst_53 : f32 to vector<128x1xf32>
    %103 = arith.addf %99, %102 : vector<128x1xf32>
    %104 = math.rsqrt %103 : vector<128x1xf32>
    %105 = vector.broadcast %104 : vector<128x1xf32> to vector<128x256xf32>
    %106 = arith.mulf %101, %105 : vector<128x256xf32>
    %107 = vector.broadcast %87 : vector<1x256xf32> to vector<128x256xf32>
    %108 = arith.mulf %106, %107 : vector<128x256xf32>
    %109 = vector.broadcast %88 : vector<1x256xf32> to vector<128x256xf32>
    %110 = arith.addf %108, %109 : vector<128x256xf32>
    %cst_54 = arith.constant 0.000000e+00 : f32
    %111 = vector.broadcast %cst_54 : f32 to vector<128x256xf32>
    %112 = arith.cmpf ogt, %110, %111 : vector<128x256xf32>
    %cst_55 = arith.constant 0.00999999977 : f32
    %113 = vector.broadcast %cst_55 : f32 to vector<128x256xf32>
    %114 = arith.mulf %113, %110 : vector<128x256xf32>
    %115 = arith.select %112, %110, %114 : vector<128x256xi1>, vector<128x256xf32>
    %c0_56 = arith.constant 0 : index
    %c0_57 = arith.constant 0 : index
    %116 = vector.load %arg16[%c0_56, %c0_57] : memref<256x16xf32, #tpu.memory_space<vmem>>, vector<256x16xf32>
    %cst_58 = arith.constant dense<0.000000e+00> : vector<128x16xf32>
    %117 = tpu.matmul %115, %116, %cst_58 {dimension_numbers = #tpu.dot_dimension_numbers<[1], [0], [0], [1], [0, 0, 1, 1], [], []>} : vector<128x256xf32>, vector<256x16xf32>, vector<128x16xf32> -> vector<128x16xf32>
    %c0_59 = arith.constant 0 : index
    %c0_60 = arith.constant 0 : index
    %118 = vector.load %arg17[%c0_59, %c0_60] : memref<4x16xf32, #tpu.memory_space<vmem>>, vector<4x16xf32>
    %cst_61 = arith.constant dense<0.000000e+00> : vector<128x16xf32>
    %119 = tpu.matmul %1, %118, %cst_61 {dimension_numbers = #tpu.dot_dimension_numbers<[1], [0], [0], [1], [0, 0, 1, 1], [], []>} : vector<128x4xf32>, vector<4x16xf32>, vector<128x16xf32> -> vector<128x16xf32>
    %120 = arith.addf %117, %119 : vector<128x16xf32>
    %c0_62 = arith.constant 0 : index
    %c0_63 = arith.constant 0 : index
    %121 = vector.load %arg18[%c0_62, %c0_63] : memref<1x16xf32, #tpu.memory_space<vmem>>, vector<1x16xf32>
    %122 = vector.broadcast %121 : vector<1x16xf32> to vector<128x16xf32>
    %123 = arith.addf %120, %122 : vector<128x16xf32>
    %c0_64 = arith.constant 0 : index
    %c0_65 = arith.constant 0 : index
    %124 = vector.load %arg19[%c0_64, %c0_65] : memref<1x16xf32, #tpu.memory_space<vmem>>, vector<1x16xf32>
    %c0_66 = arith.constant 0 : index
    %c0_67 = arith.constant 0 : index
    %125 = vector.load %arg20[%c0_66, %c0_67] : memref<1x16xf32, #tpu.memory_space<vmem>>, vector<1x16xf32>
    %cst_68 = arith.constant dense<0.000000e+00> : vector<128xf32>
    %126 = vector.multi_reduction <add>, %123, %cst_68 [1] : vector<128x16xf32> to vector<128xf32>
    %127 = vector.shape_cast %126 : vector<128xf32> to vector<128x1xf32>
    %cst_69 = arith.constant 1.600000e+01 : f32
    %128 = vector.broadcast %cst_69 : f32 to vector<128x1xf32>
    %129 = arith.divf %127, %128 : vector<128x1xf32>
    %130 = vector.broadcast %129 : vector<128x1xf32> to vector<128x16xf32>
    %131 = arith.subf %123, %130 : vector<128x16xf32>
    %132 = arith.mulf %131, %131 : vector<128x16xf32>
    %cst_70 = arith.constant dense<0.000000e+00> : vector<128xf32>
    %133 = vector.multi_reduction <add>, %132, %cst_70 [1] : vector<128x16xf32> to vector<128xf32>
    %134 = vector.shape_cast %133 : vector<128xf32> to vector<128x1xf32>
    %cst_71 = arith.constant 1.600000e+01 : f32
    %135 = vector.broadcast %cst_71 : f32 to vector<128x1xf32>
    %136 = arith.divf %134, %135 : vector<128x1xf32>
    %137 = vector.broadcast %129 : vector<128x1xf32> to vector<128x16xf32>
    %138 = arith.subf %123, %137 : vector<128x16xf32>
    %cst_72 = arith.constant 9.99999974E-6 : f32
    %139 = vector.broadcast %cst_72 : f32 to vector<128x1xf32>
    %140 = arith.addf %136, %139 : vector<128x1xf32>
    %141 = math.rsqrt %140 : vector<128x1xf32>
    %142 = vector.broadcast %141 : vector<128x1xf32> to vector<128x16xf32>
    %143 = arith.mulf %138, %142 : vector<128x16xf32>
    %144 = vector.broadcast %124 : vector<1x16xf32> to vector<128x16xf32>
    %145 = arith.mulf %143, %144 : vector<128x16xf32>
    %146 = vector.broadcast %125 : vector<1x16xf32> to vector<128x16xf32>
    %147 = arith.addf %145, %146 : vector<128x16xf32>
    %148 = math.tanh %147 : vector<128x16xf32>
    %c0_73 = arith.constant 0 : index
    %c0_74 = arith.constant 0 : index
    %149 = vector.load %arg21[%c0_73, %c0_74] : memref<128x16xf32, #tpu.memory_space<vmem>>, vector<128x16xf32>
    tpu.vector_store %arg21[%c0_73, %c0_74], %148 {strides = array<i32>} : memref<128x16xf32, #tpu.memory_space<vmem>>, vector<128x16xf32>,
    return
  }
  func.func @transform_0(%arg0: i32) -> (i32, i32) {
    %c0_i32 = arith.constant 0 : i32
    %c0_i32_0 = arith.constant 0 : i32
    %c0_i32_1 = arith.constant 0 : i32
    return %c0_i32, %c0_i32_0 : i32, i32
  }
  func.func @transform_1(%arg0: i32) -> (i32, i32) {
    %c0_i32 = arith.constant 0 : i32
    %c0_i32_0 = arith.constant 0 : i32
    return %arg0, %c0_i32 : i32, i32
  }
  func.func @transform_2(%arg0: i32) -> (i32, i32) {
    %c0_i32 = arith.constant 0 : i32
    %c0_i32_0 = arith.constant 0 : i32
    %c0_i32_1 = arith.constant 0 : i32
    return %c0_i32, %c0_i32_0 : i32, i32
  }
  func.func @transform_3(%arg0: i32) -> (i32, i32) {
    %c0_i32 = arith.constant 0 : i32
    %c0_i32_0 = arith.constant 0 : i32
    %c0_i32_1 = arith.constant 0 : i32
    return %c0_i32, %c0_i32_0 : i32, i32
  }
  func.func @transform_4(%arg0: i32) -> (i32, i32) {
    %c0_i32 = arith.constant 0 : i32
    %c0_i32_0 = arith.constant 0 : i32
    %c0_i32_1 = arith.constant 0 : i32
    return %c0_i32, %c0_i32_0 : i32, i32
  }
  func.func @transform_5(%arg0: i32) -> (i32, i32) {
    %c0_i32 = arith.constant 0 : i32
    %c0_i32_0 = arith.constant 0 : i32
    %c0_i32_1 = arith.constant 0 : i32
    return %c0_i32, %c0_i32_0 : i32, i32
  }
  func.func @transform_6(%arg0: i32) -> (i32, i32) {
    %c0_i32 = arith.constant 0 : i32
    %c0_i32_0 = arith.constant 0 : i32
    %c0_i32_1 = arith.constant 0 : i32
    return %c0_i32, %c0_i32_0 : i32, i32
  }
  func.func @transform_7(%arg0: i32) -> (i32, i32) {
    %c0_i32 = arith.constant 0 : i32
    %c0_i32_0 = arith.constant 0 : i32
    %c0_i32_1 = arith.constant 0 : i32
    return %c0_i32, %c0_i32_0 : i32, i32
  }
  func.func @transform_8(%arg0: i32) -> (i32, i32) {
    %c0_i32 = arith.constant 0 : i32
    %c0_i32_0 = arith.constant 0 : i32
    %c0_i32_1 = arith.constant 0 : i32
    return %c0_i32, %c0_i32_0 : i32, i32
  }
  func.func @transform_9(%arg0: i32) -> (i32, i32) {
    %c0_i32 = arith.constant 0 : i32
    %c0_i32_0 = arith.constant 0 : i32
    %c0_i32_1 = arith.constant 0 : i32
    return %c0_i32, %c0_i32_0 : i32, i32
  }
  func.func @transform_10(%arg0: i32) -> (i32, i32) {
    %c0_i32 = arith.constant 0 : i32
    %c0_i32_0 = arith.constant 0 : i32
    %c0_i32_1 = arith.constant 0 : i32
    return %c0_i32, %c0_i32_0 : i32, i32
  }
  func.func @transform_11(%arg0: i32) -> (i32, i32) {
    %c0_i32 = arith.constant 0 : i32
    %c0_i32_0 = arith.constant 0 : i32
    %c0_i32_1 = arith.constant 0 : i32
    return %c0_i32, %c0_i32_0 : i32, i32
  }
  func.func @transform_12(%arg0: i32) -> (i32, i32) {
    %c0_i32 = arith.constant 0 : i32
    %c0_i32_0 = arith.constant 0 : i32
    %c0_i32_1 = arith.constant 0 : i32
    return %c0_i32, %c0_i32_0 : i32, i32
  }
  func.func @transform_13(%arg0: i32) -> (i32, i32) {
    %c0_i32 = arith.constant 0 : i32
    %c0_i32_0 = arith.constant 0 : i32
    %c0_i32_1 = arith.constant 0 : i32
    return %c0_i32, %c0_i32_0 : i32, i32
  }
  func.func @transform_14(%arg0: i32) -> (i32, i32) {
    %c0_i32 = arith.constant 0 : i32
    %c0_i32_0 = arith.constant 0 : i32
    %c0_i32_1 = arith.constant 0 : i32
    return %c0_i32, %c0_i32_0 : i32, i32
  }
  func.func @transform_15(%arg0: i32) -> (i32, i32) {
    %c0_i32 = arith.constant 0 : i32
    %c0_i32_0 = arith.constant 0 : i32
    %c0_i32_1 = arith.constant 0 : i32
    return %c0_i32, %c0_i32_0 : i32, i32
  }
  func.func @transform_16(%arg0: i32) -> (i32, i32) {
    %c0_i32 = arith.constant 0 : i32
    %c0_i32_0 = arith.constant 0 : i32
    %c0_i32_1 = arith.constant 0 : i32
    return %c0_i32, %c0_i32_0 : i32, i32
  }
  func.func @transform_17(%arg0: i32) -> (i32, i32) {
    %c0_i32 = arith.constant 0 : i32
    %c0_i32_0 = arith.constant 0 : i32
    %c0_i32_1 = arith.constant 0 : i32
    return %c0_i32, %c0_i32_0 : i32, i32
  }
  func.func @transform_18(%arg0: i32) -> (i32, i32) {
    %c0_i32 = arith.constant 0 : i32
    %c0_i32_0 = arith.constant 0 : i32
    %c0_i32_1 = arith.constant 0 : i32
    return %c0_i32, %c0_i32_0 : i32, i32
  }
  func.func @transform_19(%arg0: i32) -> (i32, i32) {
    %c0_i32 = arith.constant 0 : i32
    %c0_i32_0 = arith.constant 0 : i32
    %c0_i32_1 = arith.constant 0 : i32
    return %c0_i32, %c0_i32_0 : i32, i32
  }
  func.func @transform_20(%arg0: i32) -> (i32, i32) {
    %c0_i32 = arith.constant 0 : i32
    %c0_i32_0 = arith.constant 0 : i32
    return %arg0, %c0_i32 : i32, i32
  }
}

</mosaic_0001>

<llo_original>
// kernel: tpu_custom_call.1
$region0: #{tpu_custom_call.1}
  #allocation0 [shape = 'u32[]', space=smem, size = 0x4, offset = 0x4, fixed_abs, tag = 'smem constant byte address 0x4 - core index']
  #allocation1 [shape = 'u32[144,128]{1,0:T(1,128)}', space=vmem, size = 0x12000, scoped, tag = 'internal scratch']
  %s0 = inlined_call_operand.hbm [shape: f32[128,128], index: 0, kind: input, shape index: {}]
  %s1 = inlined_call_operand.vmem [shape: f32[256,4], index: 1, kind: input, shape index: {}]
  %s2 = inlined_call_operand.vmem [shape: f32[4,64], index: 2, kind: input, shape index: {}]
  %s3 = inlined_call_operand.vmem [shape: f32[4,64], index: 3, kind: input, shape index: {}]
  %s4 = inlined_call_operand.vmem [shape: f32[1,64], index: 4, kind: input, shape index: {}]
  %s5 = inlined_call_operand.vmem [shape: f32[1,64], index: 5, kind: input, shape index: {}]
  %s6 = inlined_call_operand.vmem [shape: f32[1,64], index: 6, kind: input, shape index: {}]
  %s7 = inlined_call_operand.hbm [shape: f32[64,256], index: 7, kind: input, shape index: {}]
  %s8 = inlined_call_operand.vmem [shape: f32[1,128], index: 8, kind: input, shape index: {}]
  %s9 = inlined_call_operand.vmem [shape: f32[1,128], index: 9, kind: input, shape index: {}]
  %s10 = inlined_call_operand.vmem [shape: f32[1,128], index: 10, kind: input, shape index: {}]
  %s11 = inlined_call_operand.vmem [shape: f32[128,512], index: 11, kind: input, shape index: {}]
  %s12 = inlined_call_operand.vmem [shape: f32[1,256], index: 12, kind: input, shape index: {}]
  %s13 = inlined_call_operand.vmem [shape: f32[1,256], index: 13, kind: input, shape index: {}]
  %s14 = inlined_call_operand.vmem [shape: f32[1,256], index: 14, kind: input, shape index: {}]
  %s15 = inlined_call_operand.vmem [shape: f32[256,16], index: 15, kind: input, shape index: {}]
  %s16 = inlined_call_operand.vmem [shape: f32[4,16], index: 16, kind: input, shape index: {}]
  %s17 = inlined_call_operand.vmem [shape: f32[1,16], index: 17, kind: input, shape index: {}]
  %s18 = inlined_call_operand.vmem [shape: f32[1,16], index: 18, kind: input, shape index: {}]
  %s19 = inlined_call_operand.vmem [shape: f32[1,16], index: 19, kind: input, shape index: {}]
  %s20 = inlined_call_operand.vmem [shape: f32[256,16], index: 20, kind: output, shape index: {}]
  %s21 = sld [smem:[#allocation0]]
  $region121: #{tpu_custom_call.1} parent=0
    _
  %s23 = ssub.s32 1, %s21
  %s24 = scalar_select 0, %s23, %s21
  $region1: #{tpu_custom_call.1} parent=0
    #allocation2 [shape = 'u8[65536]{0}', space=vmem, size = 0x10000, scoped, tag = 'input window, operand 0, single buffered']
    #allocation3 [shape = 's32[2]{0}', space=sflag, size = 0x8, scoped, tag = 'scoped memory for tpu_custom_call.1']
    #allocation4 [shape = 'u8[65536]{0}', space=vmem, size = 0x10000, scoped, tag = 'input window, operand 7, single buffered']
    #allocation5 [shape = 's32[1]{0}', space=sflag, size = 0x4, scoped, tag = 'scoped memory for tpu_custom_call.1']
    %25 = vsyncpa [#allocation3], 0
    %26 = vsyncpa [#allocation5], 0
    loop: start=0, step=1, limit=4
    $region2: #{tpu_custom_call.1} parent=1 // loop_pre_header
      _
    $region3: #{tpu_custom_call.1} parent=1 // loop_header
      %s28 = sphi 0, %s32
      %p29 = scmp.ge.s32.totalorder %s28, 4
      %s36 = sphi 0, %s36
      %s38 = sphi 0, %s36
      %s39 = sphi 0, %s38
      %s53 = sphi 0, %s39
      %s59 = sphi 0, %s61
      %s62 = sphi 0, %s59
      %s63 = sphi 0, %s62
      %s79 = sphi 0, %s63
      %s83 = sphi 0, %s83
      %s85 = sphi 0, %s83
      %s86 = sphi 0, %s85
      %s100 = sphi 0, %s86
      %s104 = sphi 0, %s104
      %s106 = sphi 0, %s104
      %s107 = sphi 0, %s106
      %s121 = sphi 0, %s107
      %s125 = sphi 0, %s125
      %s127 = sphi 0, %s125
      %s128 = sphi 0, %s127
      %s142 = sphi 0, %s128
      %s146 = sphi 0, %s146
      %s148 = sphi 0, %s146
      %s149 = sphi 0, %s148
      %s163 = sphi 0, %s149
      %s167 = sphi 0, %s167
      %s169 = sphi 0, %s167
      %s170 = sphi 0, %s169
      %s184 = sphi 0, %s170
      %s188 = sphi 0, %s188
      %s190 = sphi 0, %s188
      %s191 = sphi 0, %s190
      %s205 = sphi 0, %s191
      %s209 = sphi 0, %s209
      %s211 = sphi 0, %s209
      %s212 = sphi 0, %s211
      %s226 = sphi 0, %s212
      %s230 = sphi 0, %s230
      %s232 = sphi 0, %s230
      %s233 = sphi 0, %s232
      %s247 = sphi 0, %s233
      %s251 = sphi 0, %s251
      %s253 = sphi 0, %s251
      %s254 = sphi 0, %s253
      %s268 = sphi 0, %s254
      %s272 = sphi 0, %s272
      %s274 = sphi 0, %s272
      %s275 = sphi 0, %s274
      %s289 = sphi 0, %s275
      %s293 = sphi 0, %s293
      %s295 = sphi 0, %s293
      %s296 = sphi 0, %s295
      %s310 = sphi 0, %s296
      %s314 = sphi 0, %s314
      %s316 = sphi 0, %s314
      %s317 = sphi 0, %s316
      %s331 = sphi 0, %s317
      %s335 = sphi 0, %s335
      %s337 = sphi 0, %s335
      %s338 = sphi 0, %s337
      %s352 = sphi 0, %s338
      %s356 = sphi 0, %s356
      %s358 = sphi 0, %s356
      %s359 = sphi 0, %s358
      %s373 = sphi 0, %s359
      %s377 = sphi 0, %s377
      %s379 = sphi 0, %s377
      %s380 = sphi 0, %s379
      %s394 = sphi 0, %s380
      %s398 = sphi 0, %s398
      %s400 = sphi 0, %s398
      %s401 = sphi 0, %s400
      %s415 = sphi 0, %s401
      %s419 = sphi 0, %s419
      %s421 = sphi 0, %s419
      %s422 = sphi 0, %s421
      %s436 = sphi 0, %s422
      %s440 = sphi 0, %s440
      %s442 = sphi 0, %s440
      %s443 = sphi 0, %s442
      %s457 = sphi 0, %s443
      %s463 = sphi 0, %s465
      %s466 = sphi 0, %s463
      %s467 = sphi 0, %s466
      %s483 = sphi 0, %s467
    $region4: #{tpu_custom_call.1} parent=1 // loop_header_branch
      %31 = sbr.rel (%p29) target = $region8
    $region5: #{tpu_custom_call.1} parent=1 // loop_body
      %s33 = ssub.s32 %s28, 1
      %s34 = ssub.s32 %s28, 2
      %s35 = sadd.s32 %s28, 1
      %s37 = sadd.s32 %s36, 1
      %p40 = scmp.eq.s32.totalorder %s28, 1
      %p41 = scmp.ne.s32.totalorder %s36, %s38
      %p42 = scmp.eq.s32.totalorder %s28, 0
      %p43 = por %p41, %p42
      %p44 = scmp.ne.s32.totalorder %s36, %s38
      %p45 = scmp.eq.s32.totalorder %s33, 1
      %p46 = por %p44, %p45
      %p47 = scmp.ne.s32.totalorder %s38, %s39
      %p48 = scmp.eq.s32.totalorder %s33, 0
      %p49 = por %p47, %p48
      %p50 = scmp.ne.s32.totalorder %s38, %s39
      %p51 = scmp.eq.s32.totalorder %s34, 1
      %p52 = por %p50, %p51
      %p54 = scmp.ne.s32.totalorder %s39, %s53
      %p55 = scmp.eq.s32.totalorder %s34, 0
      %p56 = por %p54, %p55
      %s57 = ssub.s32 %s28, %s35
      %p58 = scmp.eq.s32.totalorder %s57, 0
      %s60 = sadd.s32 %s59, 1
      %s61 = scalar_select %p58, %s59, %s60
      %p64 = pneg %p58
      %p65 = scmp.eq.s32.totalorder %s28, 1
      %p66 = por %p64, %p65
      %p67 = scmp.ne.s32.totalorder %s59, %s62
      %p68 = scmp.eq.s32.totalorder %s28, 0
      %p69 = por %p67, %p68
      %p70 = scmp.ne.s32.totalorder %s59, %s62
      %p71 = scmp.eq.s32.totalorder %s33, 1
      %p72 = por %p70, %p71
      %p73 = scmp.ne.s32.totalorder %s62, %s63
      %p74 = scmp.eq.s32.totalorder %s33, 0
      %p75 = por %p73, %p74
      %p76 = scmp.ne.s32.totalorder %s62, %s63
      %p77 = scmp.eq.s32.totalorder %s34, 1
      %p78 = por %p76, %p77
      %p80 = scmp.ne.s32.totalorder %s63, %s79
      %p81 = scmp.eq.s32.totalorder %s34, 0
      %p82 = por %p80, %p81
      %s84 = sadd.s32 %s83, 1
      %p87 = scmp.eq.s32.totalorder %s28, 1
      %p88 = scmp.ne.s32.totalorder %s83, %s85
      %p89 = scmp.eq.s32.totalorder %s28, 0
      %p90 = por %p88, %p89
      %p91 = scmp.ne.s32.totalorder %s83, %s85
      %p92 = scmp.eq.s32.totalorder %s33, 1
      %p93 = por %p91, %p92
      %p94 = scmp.ne.s32.totalorder %s85, %s86
      %p95 = scmp.eq.s32.totalorder %s33, 0
      %p96 = por %p94, %p95
      %p97 = scmp.ne.s32.totalorder %s85, %s86
      %p98 = scmp.eq.s32.totalorder %s34, 1
      %p99 = por %p97, %p98
      %p101 = scmp.ne.s32.totalorder %s86, %s100
      %p102 = scmp.eq.s32.totalorder %s34, 0
      %p103 = por %p101, %p102
      %s105 = sadd.s32 %s104, 1
      %p108 = scmp.eq.s32.totalorder %s28, 1
      %p109 = scmp.ne.s32.totalorder %s104, %s106
      %p110 = scmp.eq.s32.totalorder %s28, 0
      %p111 = por %p109, %p110
      %p112 = scmp.ne.s32.totalorder %s104, %s106
      %p113 = scmp.eq.s32.totalorder %s33, 1
      %p114 = por %p112, %p113
      %p115 = scmp.ne.s32.totalorder %s106, %s107
      %p116 = scmp.eq.s32.totalorder %s33, 0
      %p117 = por %p115, %p116
      %p118 = scmp.ne.s32.totalorder %s106, %s107
      %p119 = scmp.eq.s32.totalorder %s34, 1
      %p120 = por %p118, %p119
      %p122 = scmp.ne.s32.totalorder %s107, %s121
      %p123 = scmp.eq.s32.totalorder %s34, 0
      %p124 = por %p122, %p123
      %s126 = sadd.s32 %s125, 1
      %p129 = scmp.eq.s32.totalorder %s28, 1
      %p130 = scmp.ne.s32.totalorder %s125, %s127
      %p131 = scmp.eq.s32.totalorder %s28, 0
      %p132 = por %p130, %p131
      %p133 = scmp.ne.s32.totalorder %s125, %s127
      %p134 = scmp.eq.s32.totalorder %s33, 1
      %p135 = por %p133, %p134
      %p136 = scmp.ne.s32.totalorder %s127, %s128
      %p137 = scmp.eq.s32.totalorder %s33, 0
      %p138 = por %p136, %p137
      %p139 = scmp.ne.s32.totalorder %s127, %s128
      %p140 = scmp.eq.s32.totalorder %s34, 1
      %p141 = por %p139, %p140
      %p143 = scmp.ne.s32.totalorder %s128, %s142
      %p144 = scmp.eq.s32.totalorder %s34, 0
      %p145 = por %p143, %p144
      %s147 = sadd.s32 %s146, 1
      %p150 = scmp.eq.s32.totalorder %s28, 1
      %p151 = scmp.ne.s32.totalorder %s146, %s148
      %p152 = scmp.eq.s32.totalorder %s28, 0
      %p153 = por %p151, %p152
      %p154 = scmp.ne.s32.totalorder %s146, %s148
      %p155 = scmp.eq.s32.totalorder %s33, 1
      %p156 = por %p154, %p155
      %p157 = scmp.ne.s32.totalorder %s148, %s149
      %p158 = scmp.eq.s32.totalorder %s33, 0
      %p159 = por %p157, %p158
      %p160 = scmp.ne.s32.totalorder %s148, %s149
      %p161 = scmp.eq.s32.totalorder %s34, 1
      %p162 = por %p160, %p161
      %p164 = scmp.ne.s32.totalorder %s149, %s163
      %p165 = scmp.eq.s32.totalorder %s34, 0
      %p166 = por %p164, %p165
      %s168 = sadd.s32 %s167, 1
      %p171 = scmp.eq.s32.totalorder %s28, 1
      %p172 = scmp.ne.s32.totalorder %s167, %s169
      %p173 = scmp.eq.s32.totalorder %s28, 0
      %p174 = por %p172, %p173
      %p175 = scmp.ne.s32.totalorder %s167, %s169
      %p176 = scmp.eq.s32.totalorder %s33, 1
      %p177 = por %p175, %p176
      %p178 = scmp.ne.s32.totalorder %s169, %s170
      %p179 = scmp.eq.s32.totalorder %s33, 0
      %p180 = por %p178, %p179
      %p181 = scmp.ne.s32.totalorder %s169, %s170
      %p182 = scmp.eq.s32.totalorder %s34, 1
      %p183 = por %p181, %p182
      %p185 = scmp.ne.s32.totalorder %s170, %s184
      %p186 = scmp.eq.s32.totalorder %s34, 0
      %p187 = por %p185, %p186
      %s189 = sadd.s32 %s188, 1
      %p192 = scmp.eq.s32.totalorder %s28, 1
      %p193 = scmp.ne.s32.totalorder %s188, %s190
      %p194 = scmp.eq.s32.totalorder %s28, 0
      %p195 = por %p193, %p194
      %p196 = scmp.ne.s32.totalorder %s188, %s190
      %p197 = scmp.eq.s32.totalorder %s33, 1
      %p198 = por %p196, %p197
      %p199 = scmp.ne.s32.totalorder %s190, %s191
      %p200 = scmp.eq.s32.totalorder %s33, 0
      %p201 = por %p199, %p200
      %p202 = scmp.ne.s32.totalorder %s190, %s191
      %p203 = scmp.eq.s32.totalorder %s34, 1
      %p204 = por %p202, %p203
      %p206 = scmp.ne.s32.totalorder %s191, %s205
      %p207 = scmp.eq.s32.totalorder %s34, 0
      %p208 = por %p206, %p207
      %s210 = sadd.s32 %s209, 1
      %p213 = scmp.eq.s32.totalorder %s28, 1
      %p214 = scmp.ne.s32.totalorder %s209, %s211
      %p215 = scmp.eq.s32.totalorder %s28, 0
      %p216 = por %p214, %p215
      %p217 = scmp.ne.s32.totalorder %s209, %s211
      %p218 = scmp.eq.s32.totalorder %s33, 1
      %p219 = por %p217, %p218
      %p220 = scmp.ne.s32.totalorder %s211, %s212
      %p221 = scmp.eq.s32.totalorder %s33, 0
      %p222 = por %p220, %p221
      %p223 = scmp.ne.s32.totalorder %s211, %s212
      %p224 = scmp.eq.s32.totalorder %s34, 1
      %p225 = por %p223, %p224
      %p227 = scmp.ne.s32.totalorder %s212, %s226
      %p228 = scmp.eq.s32.totalorder %s34, 0
      %p229 = por %p227, %p228
      %s231 = sadd.s32 %s230, 1
      %p234 = scmp.eq.s32.totalorder %s28, 1
      %p235 = scmp.ne.s32.totalorder %s230, %s232
      %p236 = scmp.eq.s32.totalorder %s28, 0
      %p237 = por %p235, %p236
      %p238 = scmp.ne.s32.totalorder %s230, %s232
      %p239 = scmp.eq.s32.totalorder %s33, 1
      %p240 = por %p238, %p239
      %p241 = scmp.ne.s32.totalorder %s232, %s233
      %p242 = scmp.eq.s32.totalorder %s33, 0
      %p243 = por %p241, %p242
      %p244 = scmp.ne.s32.totalorder %s232, %s233
      %p245 = scmp.eq.s32.totalorder %s34, 1
      %p246 = por %p244, %p245
      %p248 = scmp.ne.s32.totalorder %s233, %s247
      %p249 = scmp.eq.s32.totalorder %s34, 0
      %p250 = por %p248, %p249
      %s252 = sadd.s32 %s251, 1
      %p255 = scmp.eq.s32.totalorder %s28, 1
      %p256 = scmp.ne.s32.totalorder %s251, %s253
      %p257 = scmp.eq.s32.totalorder %s28, 0
      %p258 = por %p256, %p257
      %p259 = scmp.ne.s32.totalorder %s251, %s253
      %p260 = scmp.eq.s32.totalorder %s33, 1
      %p261 = por %p259, %p260
      %p262 = scmp.ne.s32.totalorder %s253, %s254
      %p263 = scmp.eq.s32.totalorder %s33, 0
      %p264 = por %p262, %p263
      %p265 = scmp.ne.s32.totalorder %s253, %s254
      %p266 = scmp.eq.s32.totalorder %s34, 1
      %p267 = por %p265, %p266
      %p269 = scmp.ne.s32.totalorder %s254, %s268
      %p270 = scmp.eq.s32.totalorder %s34, 0
      %p271 = por %p269, %p270
      %s273 = sadd.s32 %s272, 1
      %p276 = scmp.eq.s32.totalorder %s28, 1
      %p277 = scmp.ne.s32.totalorder %s272, %s274
      %p278 = scmp.eq.s32.totalorder %s28, 0
      %p279 = por %p277, %p278
      %p280 = scmp.ne.s32.totalorder %s272, %s274
      %p281 = scmp.eq.s32.totalorder %s33, 1
      %p282 = por %p280, %p281
      %p283 = scmp.ne.s32.totalorder %s274, %s275
      %p284 = scmp.eq.s32.totalorder %s33, 0
      %p285 = por %p283, %p284
      %p286 = scmp.ne.s32.totalorder %s274, %s275
      %p287 = scmp.eq.s32.totalorder %s34, 1
      %p288 = por %p286, %p287
      %p290 = scmp.ne.s32.totalorder %s275, %s289
      %p291 = scmp.eq.s32.totalorder %s34, 0
      %p292 = por %p290, %p291
      %s294 = sadd.s32 %s293, 1
      %p297 = scmp.eq.s32.totalorder %s28, 1
      %p298 = scmp.ne.s32.totalorder %s293, %s295
      %p299 = scmp.eq.s32.totalorder %s28, 0
      %p300 = por %p298, %p299
      %p301 = scmp.ne.s32.totalorder %s293, %s295
      %p302 = scmp.eq.s32.totalorder %s33, 1
      %p303 = por %p301, %p302
      %p304 = scmp.ne.s32.totalorder %s295, %s296
      %p305 = scmp.eq.s32.totalorder %s33, 0
      %p306 = por %p304, %p305
      %p307 = scmp.ne.s32.totalorder %s295, %s296
      %p308 = scmp.eq.s32.totalorder %s34, 1
      %p309 = por %p307, %p308
      %p311 = scmp.ne.s32.totalorder %s296, %s310
      %p312 = scmp.eq.s32.totalorder %s34, 0
      %p313 = por %p311, %p312
      %s315 = sadd.s32 %s314, 1
      %p318 = scmp.eq.s32.totalorder %s28, 1
      %p319 = scmp.ne.s32.totalorder %s314, %s316
      %p320 = scmp.eq.s32.totalorder %s28, 0
      %p321 = por %p319, %p320
      %p322 = scmp.ne.s32.totalorder %s314, %s316
      %p323 = scmp.eq.s32.totalorder %s33, 1
      %p324 = por %p322, %p323
      %p325 = scmp.ne.s32.totalorder %s316, %s317
      %p326 = scmp.eq.s32.totalorder %s33, 0
      %p327 = por %p325, %p326
      %p328 = scmp.ne.s32.totalorder %s316, %s317
      %p329 = scmp.eq.s32.totalorder %s34, 1
      %p330 = por %p328, %p329
      %p332 = scmp.ne.s32.totalorder %s317, %s331
      %p333 = scmp.eq.s32.totalorder %s34, 0
      %p334 = por %p332, %p333
      %s336 = sadd.s32 %s335, 1
      %p339 = scmp.eq.s32.totalorder %s28, 1
      %p340 = scmp.ne.s32.totalorder %s335, %s337
      %p341 = scmp.eq.s32.totalorder %s28, 0
      %p342 = por %p340, %p341
      %p343 = scmp.ne.s32.totalorder %s335, %s337
      %p344 = scmp.eq.s32.totalorder %s33, 1
      %p345 = por %p343, %p344
      %p346 = scmp.ne.s32.totalorder %s337, %s338
      %p347 = scmp.eq.s32.totalorder %s33, 0
      %p348 = por %p346, %p347
      %p349 = scmp.ne.s32.totalorder %s337, %s338
      %p350 = scmp.eq.s32.totalorder %s34, 1
      %p351 = por %p349, %p350
      %p353 = scmp.ne.s32.totalorder %s338, %s352
      %p354 = scmp.eq.s32.totalorder %s34, 0
      %p355 = por %p353, %p354
      %s357 = sadd.s32 %s356, 1
      %p360 = scmp.eq.s32.totalorder %s28, 1
      %p361 = scmp.ne.s32.totalorder %s356, %s358
      %p362 = scmp.eq.s32.totalorder %s28, 0
      %p363 = por %p361, %p362
      %p364 = scmp.ne.s32.totalorder %s356, %s358
      %p365 = scmp.eq.s32.totalorder %s33, 1
      %p366 = por %p364, %p365
      %p367 = scmp.ne.s32.totalorder %s358, %s359
      %p368 = scmp.eq.s32.totalorder %s33, 0
      %p369 = por %p367, %p368
      %p370 = scmp.ne.s32.totalorder %s358, %s359
      %p371 = scmp.eq.s32.totalorder %s34, 1
      %p372 = por %p370, %p371
      %p374 = scmp.ne.s32.totalorder %s359, %s373
      %p375 = scmp.eq.s32.totalorder %s34, 0
      %p376 = por %p374, %p375
      %s378 = sadd.s32 %s377, 1
      %p381 = scmp.eq.s32.totalorder %s28, 1
      %p382 = scmp.ne.s32.totalorder %s377, %s379
      %p383 = scmp.eq.s32.totalorder %s28, 0
      %p384 = por %p382, %p383
      %p385 = scmp.ne.s32.totalorder %s377, %s379
      %p386 = scmp.eq.s32.totalorder %s33, 1
      %p387 = por %p385, %p386
      %p388 = scmp.ne.s32.totalorder %s379, %s380
      %p389 = scmp.eq.s32.totalorder %s33, 0
      %p390 = por %p388, %p389
      %p391 = scmp.ne.s32.totalorder %s379, %s380
      %p392 = scmp.eq.s32.totalorder %s34, 1
      %p393 = por %p391, %p392
      %p395 = scmp.ne.s32.totalorder %s380, %s394
      %p396 = scmp.eq.s32.totalorder %s34, 0
      %p397 = por %p395, %p396
      %s399 = sadd.s32 %s398, 1
      %p402 = scmp.eq.s32.totalorder %s28, 1
      %p403 = scmp.ne.s32.totalorder %s398, %s400
      %p404 = scmp.eq.s32.totalorder %s28, 0
      %p405 = por %p403, %p404
      %p406 = scmp.ne.s32.totalorder %s398, %s400
      %p407 = scmp.eq.s32.totalorder %s33, 1
      %p408 = por %p406, %p407
      %p409 = scmp.ne.s32.totalorder %s400, %s401
      %p410 = scmp.eq.s32.totalorder %s33, 0
      %p411 = por %p409, %p410
      %p412 = scmp.ne.s32.totalorder %s400, %s401
      %p413 = scmp.eq.s32.totalorder %s34, 1
      %p414 = por %p412, %p413
      %p416 = scmp.ne.s32.totalorder %s401, %s415
      %p417 = scmp.eq.s32.totalorder %s34, 0
      %p418 = por %p416, %p417
      %s420 = sadd.s32 %s419, 1
      %p423 = scmp.eq.s32.totalorder %s28, 1
      %p424 = scmp.ne.s32.totalorder %s419, %s421
      %p425 = scmp.eq.s32.totalorder %s28, 0
      %p426 = por %p424, %p425
      %p427 = scmp.ne.s32.totalorder %s419, %s421
      %p428 = scmp.eq.s32.totalorder %s33, 1
      %p429 = por %p427, %p428
      %p430 = scmp.ne.s32.totalorder %s421, %s422
      %p431 = scmp.eq.s32.totalorder %s33, 0
      %p432 = por %p430, %p431
      %p433 = scmp.ne.s32.totalorder %s421, %s422
      %p434 = scmp.eq.s32.totalorder %s34, 1
      %p435 = por %p433, %p434
      %p437 = scmp.ne.s32.totalorder %s422, %s436
      %p438 = scmp.eq.s32.totalorder %s34, 0
      %p439 = por %p437, %p438
      %s441 = sadd.s32 %s440, 1
      %p444 = scmp.eq.s32.totalorder %s28, 1
      %p445 = scmp.ne.s32.totalorder %s440, %s442
      %p446 = scmp.eq.s32.totalorder %s28, 0
      %p447 = por %p445, %p446
      %p448 = scmp.ne.s32.totalorder %s440, %s442
      %p449 = scmp.eq.s32.totalorder %s33, 1
      %p450 = por %p448, %p449
      %p451 = scmp.ne.s32.totalorder %s442, %s443
      %p452 = scmp.eq.s32.totalorder %s33, 0
      %p453 = por %p451, %p452
      %p454 = scmp.ne.s32.totalorder %s442, %s443
      %p455 = scmp.eq.s32.totalorder %s34, 1
      %p456 = por %p454, %p455
      %p458 = scmp.ne.s32.totalorder %s443, %s457
      %p459 = scmp.eq.s32.totalorder %s34, 0
      %p460 = por %p458, %p459
      %s461 = ssub.s32 %s28, %s35
      %p462 = scmp.eq.s32.totalorder %s461, 0
      %s464 = sadd.s32 %s463, 1
      %s465 = scalar_select %p462, %s463, %s464
      %p468 = pneg %p462
      %p469 = scmp.eq.s32.totalorder %s28, 1
      %p470 = por %p468, %p469
      %p471 = scmp.ne.s32.totalorder %s463, %s466
      %p472 = scmp.eq.s32.totalorder %s28, 0
      %p473 = por %p471, %p472
      %p474 = scmp.ne.s32.totalorder %s463, %s466
      %p475 = scmp.eq.s32.totalorder %s33, 1
      %p476 = por %p474, %p475
      %p477 = scmp.ne.s32.totalorder %s466, %s467
      %p478 = scmp.eq.s32.totalorder %s33, 0
      %p479 = por %p477, %p478
      %p480 = scmp.ne.s32.totalorder %s466, %s467
      %p481 = scmp.eq.s32.totalorder %s34, 1
      %p482 = por %p480, %p481
      %p484 = scmp.ne.s32.totalorder %s467, %s483
      %p485 = scmp.eq.s32.totalorder %s34, 0
      %p486 = por %p484, %p485
      %p487 = scmp.le.s32.totalorder 1, %s28
      %p488 = scmp.lt.s32.totalorder %s28, 3
      %p489 = pnand %p487, %p488
      %p490 = pneg %p489
      // Predicated region
      $region9: #{tpu_custom_call.1} parent=5 // pred_check
        _
      $region10: #{tpu_custom_call.1} parent=5 // pred_check_branch
        %492 = sbr.rel (%p489) target = $region12
      $region11: #{tpu_custom_call.1} parent=5 // pred_region
        %s493 = ssub.s32 %s28, 1
        // Predicated region
        $region13: #{tpu_custom_call.1} parent=11 // pred_check
          %p494 = pneg %p49
        $region14: #{tpu_custom_call.1} parent=11 // pred_check_branch
          %496 = sbr.rel (%p494) target = $region16
        $region15: #{tpu_custom_call.1} parent=11 // pred_region
          %s498 = ssub.s32 2048, 2048
          %499 = vsyncadd [#allocation3], %s498
          %s500 = sshll.u32 [#allocation2], 4
          %s501 = int_to_ptr.vmem [resolvable:$true] %s500
          %506 = dma.hbm_to_vmem [thread:$0]  %s0, 2048, %s501, [#allocation3], 128, 128, 8
        $region16: #{tpu_custom_call.1} parent=11 // pred_fallthru
          _
        // Predicated region
        $region17: #{tpu_custom_call.1} parent=11 // pred_check
          %p507 = pneg %p96
        $region18: #{tpu_custom_call.1} parent=11 // pred_check_branch
          %509 = sbr.rel (%p507) target = $region20
        $region19: #{tpu_custom_call.1} parent=11 // pred_region
          _
        $region20: #{tpu_custom_call.1} parent=11 // pred_fallthru
          _
        // Predicated region
        $region21: #{tpu_custom_call.1} parent=11 // pred_check
          %p510 = pneg %p117
        $region22: #{tpu_custom_call.1} parent=11 // pred_check_branch
          %512 = sbr.rel (%p510) target = $region24
        $region23: #{tpu_custom_call.1} parent=11 // pred_region
          _
        $region24: #{tpu_custom_call.1} parent=11 // pred_fallthru
          _
        // Predicated region
        $region25: #{tpu_custom_call.1} parent=11 // pred_check
          %p513 = pneg %p138
        $region26: #{tpu_custom_call.1} parent=11 // pred_check_branch
          %515 = sbr.rel (%p513) target = $region28
        $region27: #{tpu_custom_call.1} parent=11 // pred_region
          _
        $region28: #{tpu_custom_call.1} parent=11 // pred_fallthru
          _
        // Predicated region
        $region29: #{tpu_custom_call.1} parent=11 // pred_check
          %p516 = pneg %p159
        $region30: #{tpu_custom_call.1} parent=11 // pred_check_branch
          %518 = sbr.rel (%p516) target = $region32
        $region31: #{tpu_custom_call.1} parent=11 // pred_region
          _
        $region32: #{tpu_custom_call.1} parent=11 // pred_fallthru
          _
        // Predicated region
        $region33: #{tpu_custom_call.1} parent=11 // pred_check
          %p519 = pneg %p180
        $region34: #{tpu_custom_call.1} parent=11 // pred_check_branch
          %521 = sbr.rel (%p519) target = $region36
        $region35: #{tpu_custom_call.1} parent=11 // pred_region
          _
        $region36: #{tpu_custom_call.1} parent=11 // pred_fallthru
          _
        // Predicated region
        $region37: #{tpu_custom_call.1} parent=11 // pred_check
          %p522 = pneg %p201
        $region38: #{tpu_custom_call.1} parent=11 // pred_check_branch
          %524 = sbr.rel (%p522) target = $region40
        $region39: #{tpu_custom_call.1} parent=11 // pred_region
          %s526 = ssub.s32 2048, 2048
          %527 = vsyncadd [#allocation5], %s526
          %s528 = sshll.u32 [#allocation4], 4
          %s529 = int_to_ptr.vmem [resolvable:$true] %s528
          %534 = dma.hbm_to_vmem [thread:$0]  %s7, 2048, %s529, [#allocation5], 256, 256, 16
        $region40: #{tpu_custom_call.1} parent=11 // pred_fallthru
          _
        // Predicated region
        $region41: #{tpu_custom_call.1} parent=11 // pred_check
          %p535 = pneg %p222
        $region42: #{tpu_custom_call.1} parent=11 // pred_check_branch
          %537 = sbr.rel (%p535) target = $region44
        $region43: #{tpu_custom_call.1} parent=11 // pred_region
          _
        $region44: #{tpu_custom_call.1} parent=11 // pred_fallthru
          _
        // Predicated region
        $region45: #{tpu_custom_call.1} parent=11 // pred_check
          %p538 = pneg %p243
        $region46: #{tpu_custom_call.1} parent=11 // pred_check_branch
          %540 = sbr.rel (%p538) target = $region48
        $region47: #{tpu_custom_call.1} parent=11 // pred_region
          _
        $region48: #{tpu_custom_call.1} parent=11 // pred_fallthru
          _
        // Predicated region
        $region49: #{tpu_custom_call.1} parent=11 // pred_check
          %p541 = pneg %p264
        $region50: #{tpu_custom_call.1} parent=11 // pred_check_branch
          %543 = sbr.rel (%p541) target = $region52
        $region51: #{tpu_custom_call.1} parent=11 // pred_region
          _
        $region52: #{tpu_custom_call.1} parent=11 // pred_fallthru
          _
        // Predicated region
        $region53: #{tpu_custom_call.1} parent=11 // pred_check
          %p544 = pneg %p285
        $region54: #{tpu_custom_call.1} parent=11 // pred_check_branch
          %546 = sbr.rel (%p544) target = $region56
        $region55: #{tpu_custom_call.1} parent=11 // pred_region
          _
        $region56: #{tpu_custom_call.1} parent=11 // pred_fallthru
          _
        // Predicated region
        $region57: #{tpu_custom_call.1} parent=11 // pred_check
          %p547 = pneg %p306
        $region58: #{tpu_custom_call.1} parent=11 // pred_check_branch
          %549 = sbr.rel (%p547) target = $region60
        $region59: #{tpu_custom_call.1} parent=11 // pred_region
          _
        $region60: #{tpu_custom_call.1} parent=11 // pred_fallthru
          _
        // Predicated region
        $region61: #{tpu_custom_call.1} parent=11 // pred_check
          %p550 = pneg %p327
        $region62: #{tpu_custom_call.1} parent=11 // pred_check_branch
          %552 = sbr.rel (%p550) target = $region64
        $region63: #{tpu_custom_call.1} parent=11 // pred_region
          _
        $region64: #{tpu_custom_call.1} parent=11 // pred_fallthru
          _
        // Predicated region
        $region65: #{tpu_custom_call.1} parent=11 // pred_check
          %p553 = pneg %p348
        $region66: #{tpu_custom_call.1} parent=11 // pred_check_branch
          %555 = sbr.rel (%p553) target = $region68
        $region67: #{tpu_custom_call.1} parent=11 // pred_region
          _
        $region68: #{tpu_custom_call.1} parent=11 // pred_fallthru
          _
        // Predicated region
        $region69: #{tpu_custom_call.1} parent=11 // pred_check
          %p556 = pneg %p369
        $region70: #{tpu_custom_call.1} parent=11 // pred_check_branch
          %558 = sbr.rel (%p556) target = $region72
        $region71: #{tpu_custom_call.1} parent=11 // pred_region
          _
        $region72: #{tpu_custom_call.1} parent=11 // pred_fallthru
          _
        // Predicated region
        $region73: #{tpu_custom_call.1} parent=11 // pred_check
          %p559 = pneg %p390
        $region74: #{tpu_custom_call.1} parent=11 // pred_check_branch
          %561 = sbr.rel (%p559) target = $region76
        $region75: #{tpu_custom_call.1} parent=11 // pred_region
          _
        $region76: #{tpu_custom_call.1} parent=11 // pred_fallthru
          _
        // Predicated region
        $region77: #{tpu_custom_call.1} parent=11 // pred_check
          %p562 = pneg %p411
        $region78: #{tpu_custom_call.1} parent=11 // pred_check_branch
          %564 = sbr.rel (%p562) target = $region80
        $region79: #{tpu_custom_call.1} parent=11 // pred_region
          _
        $region80: #{tpu_custom_call.1} parent=11 // pred_fallthru
          _
        // Predicated region
        $region81: #{tpu_custom_call.1} parent=11 // pred_check
          %p565 = pneg %p432
        $region82: #{tpu_custom_call.1} parent=11 // pred_check_branch
          %567 = sbr.rel (%p565) target = $region84
        $region83: #{tpu_custom_call.1} parent=11 // pred_region
          _
        $region84: #{tpu_custom_call.1} parent=11 // pred_fallthru
          _
        // Predicated region
        $region85: #{tpu_custom_call.1} parent=11 // pred_check
          %p568 = pneg %p453
        $region86: #{tpu_custom_call.1} parent=11 // pred_check_branch
          %570 = sbr.rel (%p568) target = $region88
        $region87: #{tpu_custom_call.1} parent=11 // pred_region
          _
        $region88: #{tpu_custom_call.1} parent=11 // pred_fallthru
          _
      $region12: #{tpu_custom_call.1} parent=5 // pred_fallthru
        _
      %p571 = scmp.lt.s32.totalorder %s28, 2
      // Predicated region
      $region89: #{tpu_custom_call.1} parent=5 // pred_check
        %p572 = pneg %p571
      $region90: #{tpu_custom_call.1} parent=5 // pred_check_branch
        %574 = sbr.rel (%p572) target = $region92
      $region91: #{tpu_custom_call.1} parent=5 // pred_region
        // Predicated region
        $region93: #{tpu_custom_call.1} parent=91 // pred_check
          %p575 = pneg %p69
        $region94: #{tpu_custom_call.1} parent=91 // pred_check_branch
          %577 = sbr.rel (%p575) target = $region96
        $region95: #{tpu_custom_call.1} parent=91 // pred_region
          %s578 = smul.u32 16, %s28
          %p579 = scmp.lt.s32.totalorder %s578, 31
          %s580 = scalar_select %p579, %s578, 31
          %s581 = smul.addr %s580, 8
          %s582 = scalar_lea.vmem %s1, %s581
          %s583 = smul.u32 16, %s28
        $region96: #{tpu_custom_call.1} parent=91 // pred_fallthru
          _
      $region92: #{tpu_custom_call.1} parent=5 // pred_fallthru
        _
      %p584 = scmp.le.s32.totalorder 1, %s28
      %p585 = scmp.lt.s32.totalorder %s28, 3
      %p586 = pnand %p584, %p585
      %p587 = pneg %p586
      // Predicated region
      $region97: #{tpu_custom_call.1} parent=5 // pred_check
        _
      $region98: #{tpu_custom_call.1} parent=5 // pred_check_branch
        %589 = sbr.rel (%p586) target = $region100
      $region99: #{tpu_custom_call.1} parent=5 // pred_region
        %s590 = ssub.s32 %s28, 1
        // Predicated region
        $region101: #{tpu_custom_call.1} parent=99 // pred_check
          %p591 = pneg %p49
        $region102: #{tpu_custom_call.1} parent=99 // pred_check_branch
          %593 = sbr.rel (%p591) target = $region104
        $region103: #{tpu_custom_call.1} parent=99 // pred_region
          %594 = dma.done [#allocation3], 2048
        $region104: #{tpu_custom_call.1} parent=99 // pred_fallthru
          _
        // Predicated region
        $region105: #{tpu_custom_call.1} parent=99 // pred_check
          %p595 = pneg %p201
        $region106: #{tpu_custom_call.1} parent=99 // pred_check_branch
          %597 = sbr.rel (%p595) target = $region108
        $region107: #{tpu_custom_call.1} parent=99 // pred_region
          %598 = dma.done [#allocation5], 2048
        $region108: #{tpu_custom_call.1} parent=99 // pred_fallthru
          _
        %p599 = pneg %p49
        %p600 = pneg %p46
        %s601 = smul.u32 16, %s33
        %p602 = scmp.lt.s32.totalorder %s601, 31
        %s603 = scalar_select %p602, %s601, 31
        %s604 = smul.addr %s603, 8
        %s605 = scalar_lea.vmem %s1, %s604
        %p606 = pneg %p75
        %p607 = pneg %p72
        %p608 = pneg %p96
        %p609 = pneg %p93
        %p610 = pneg %p117
        %p611 = pneg %p114
        %p612 = pneg %p138
        %p613 = pneg %p135
        %p614 = pneg %p159
        %p615 = pneg %p156
        %p616 = pneg %p180
        %p617 = pneg %p177
        %p618 = pneg %p201
        %p619 = pneg %p198
        %p620 = pneg %p222
        %p621 = pneg %p219
        %p622 = pneg %p243
        %p623 = pneg %p240
        %p624 = pneg %p264
        %p625 = pneg %p261
        %p626 = pneg %p285
        %p627 = pneg %p282
        %p628 = pneg %p306
        %p629 = pneg %p303
        %p630 = pneg %p327
        %p631 = pneg %p324
        %p632 = pneg %p348
        %p633 = pneg %p345
        %p634 = pneg %p369
        %p635 = pneg %p366
        %p636 = pneg %p390
        %p637 = pneg %p387
        %p638 = pneg %p411
        %p639 = pneg %p408
        %p640 = pneg %p432
        %p641 = pneg %p429
        %p642 = pneg %p453
        %p643 = pneg %p450
        %p644 = pneg %p479
        %p645 = pneg %p476
        %s646 = smul.u32 16, %s33
        %p647 = scmp.lt.s32.totalorder %s646, 31
        %s648 = scalar_select %p647, %s646, 31
        %s649 = smul.addr %s648, 8
        %s650 = scalar_lea.vmem %s20, %s649
        %s651 = smul.u32 16, %s33
        %p652 = scmp.lt.s32.totalorder %s651, 31
        %s653 = scalar_select %p652, %s651, 31
        %s654 = smul.addr %s653, 8
        %s655 = scalar_lea.vmem %s1, %s654
        %s656 = smul.u32 16, %s33
        %s657 = smul.u32 16, %s33
        %p658 = scmp.lt.s32.totalorder %s657, 31
        %s659 = scalar_select %p658, %s657, 31
        %s660 = smul.addr %s659, 8
        %s661 = scalar_lea.vmem %s20, %s660
        %s662 = smul.u32 16, %s33
        %v663 = vld [vmem:[#allocation2] sm:$0xff]
        %v664 = vld [vmem:[#allocation2 + $0x8] sm:$0xff]
        %v665 = vld [vmem:[#allocation2 + $0x10] sm:$0xff]
        %v666 = vld [vmem:[#allocation2 + $0x18] sm:$0xff]
        %v667 = vld [vmem:[#allocation2 + $0x20] sm:$0xff]
        %v668 = vld [vmem:[#allocation2 + $0x28] sm:$0xff]
        %v669 = vld [vmem:[#allocation2 + $0x30] sm:$0xff]
        %v670 = vld [vmem:[#allocation2 + $0x38] sm:$0xff]
        %v671 = vld [vmem:[#allocation2 + $0x40] sm:$0xff]
        %v672 = vld [vmem:[#allocation2 + $0x48] sm:$0xff]
        %v673 = vld [vmem:[#allocation2 + $0x50] sm:$0xff]
        %v674 = vld [vmem:[#allocation2 + $0x58] sm:$0xff]
        %v675 = vld [vmem:[#allocation2 + $0x60] sm:$0xff]
        %v676 = vld [vmem:[#allocation2 + $0x68] sm:$0xff]
        %v677 = vld [vmem:[#allocation2 + $0x70] sm:$0xff]
        %v678 = vld [vmem:[#allocation2 + $0x78] sm:$0xff]
        %v679 = vld [vmem:[%s655] sm:$0xff]
        %v680 = vld [vmem:[%s655 + $0x8] sm:$0xff]
        %v681 = vld [vmem:[%s655 + $0x10] sm:$0xff]
        %v682 = vld [vmem:[%s655 + $0x18] sm:$0xff]
        %v683 = vld [vmem:[%s655 + $0x20] sm:$0xff]
        %v684 = vld [vmem:[%s655 + $0x28] sm:$0xff]
        %v685 = vld [vmem:[%s655 + $0x30] sm:$0xff]
        %v686 = vld [vmem:[%s655 + $0x38] sm:$0xff]
        %v687 = vld [vmem:[%s655 + $0x40] sm:$0xff]
        %v688 = vld [vmem:[%s655 + $0x48] sm:$0xff]
        %v689 = vld [vmem:[%s655 + $0x50] sm:$0xff]
        %v690 = vld [vmem:[%s655 + $0x58] sm:$0xff]
        %v691 = vld [vmem:[%s655 + $0x60] sm:$0xff]
        %v692 = vld [vmem:[%s655 + $0x68] sm:$0xff]
        %v693 = vld [vmem:[%s655 + $0x70] sm:$0xff]
        %v694 = vld [vmem:[%s655 + $0x78] sm:$0xff]
        %v695 = vld [vmem:[%s2] sm:$0xf]
        %vm696 = vcmask 31744
        %v698 = vsel %vm696, %v679, 0
        %v701 = vsel %vm696, %v680, 0
        %v704 = vsel %vm696, %v681, 0
        %v707 = vsel %vm696, %v682, 0
        %v710 = vsel %vm696, %v683, 0
        %v713 = vsel %vm696, %v684, 0
        %v716 = vsel %vm696, %v685, 0
        %v719 = vsel %vm696, %v686, 0
        %v722 = vsel %vm696, %v687, 0
        %v725 = vsel %vm696, %v688, 0
        %v728 = vsel %vm696, %v689, 0
        %v731 = vsel %vm696, %v690, 0
        %v734 = vsel %vm696, %v691, 0
        %v737 = vsel %vm696, %v692, 0
        %v740 = vsel %vm696, %v693, 0
        %v743 = vsel %vm696, %v694, 0
        %vm745 = vcmask 1043456
        %v747 = vsel %vm745, %v695, 0
        %749 = vmatprep.subr.mxu0 0.0
        %750 = vmatpush1.msra.mxu0 %v747
        %751 = vmatprep.subr.mxu0 0.0
        %752 = vmatpush1.msra.mxu0 0.0
        %753 = vmatprep.subr.mxu0 0.0
        %754 = vmatpush1.msra.mxu0 0.0
        %755 = vmatprep.subr.mxu0 0.0
        %756 = vmatpush1.msra.mxu0 0.0
        %757 = vmatprep.subr.mxu0 0.0
        %758 = vmatpush1.msra.mxu0 0.0
        %759 = vmatprep.subr.mxu0 0.0
        %760 = vmatpush1.msra.mxu0 0.0
        %761 = vmatprep.subr.mxu0 0.0
        %762 = vmatpush1.msra.mxu0 0.0
        %763 = vmatprep.subr.mxu0 0.0
        %764 = vmatpush1.msra.mxu0 0.0
        %765 = vmatprep.subr.mxu0 0.0
        %766 = vmatpush1.msra.mxu0 0.0
        %767 = vmatprep.subr.mxu0 0.0
        %768 = vmatpush1.msra.mxu0 0.0
        %769 = vmatprep.subr.mxu0 0.0
        %770 = vmatpush1.msra.mxu0 0.0
        %771 = vmatprep.subr.mxu0 0.0
        %772 = vmatpush1.msra.mxu0 0.0
        %773 = vmatprep.subr.mxu0 0.0
        %774 = vmatpush1.msra.mxu0 0.0
        %775 = vmatprep.subr.mxu0 0.0
        %776 = vmatpush1.msra.mxu0 0.0
        %777 = vmatprep.subr.mxu0 0.0
        %778 = vmatpush1.msra.mxu0 0.0
        %779 = vmatprep.subr.mxu0 0.0
        %780 = vmatpush1.msra.mxu0 0.0
        %781 = vmatprep.subr.mxu0 0.0
        %782 = vmatpush1.msra.mxu0 0.0
        %783 = vmatprep.subr.mxu0 0.0
        %784 = vmatpush1.msra.mxu0 0.0
        %785 = vmatprep.subr.mxu0 0.0
        %786 = vmatpush1.msra.mxu0 0.0
        %787 = vmatprep.subr.mxu0 0.0
        %788 = vmatpush1.msra.mxu0 0.0
        %789 = vmatprep.subr.mxu0 0.0
        %790 = vmatpush1.msra.mxu0 0.0
        %791 = vmatprep.subr.mxu0 0.0
        %792 = vmatpush1.msra.mxu0 0.0
        %793 = vmatprep.subr.mxu0 0.0
        %794 = vmatpush1.msra.mxu0 0.0
        %795 = vmatprep.subr.mxu0 0.0
        %796 = vmatpush1.msra.mxu0 0.0
        %797 = vmatprep.subr.mxu0 0.0
        %798 = vmatpush1.msra.mxu0 0.0
        %799 = vmatprep.subr.mxu0 0.0
        %800 = vmatpush1.msra.mxu0 0.0
        %801 = vmatprep.subr.mxu0 0.0
        %802 = vmatpush1.msra.mxu0 0.0
        %803 = vmatprep.subr.mxu0 0.0
        %804 = vmatpush1.msra.mxu0 0.0
        %805 = vmatprep.subr.mxu0 0.0
        %806 = vmatpush1.msra.mxu0 0.0
        %807 = vmatprep.subr.mxu0 0.0
        %808 = vmatpush1.msra.mxu0 0.0
        %809 = vmatprep.subr.mxu0 0.0
        %810 = vmatpush1.msra.mxu0 0.0
        %811 = vmatprep.subr.mxu0 0.0
        %812 = vmatpush1.msra.mxu0 0.0
        %813 = vmatprep.mubr.f32.mxu0 0.0
        %814 = vmatmul.mubr.f32.gmra.mrb[0].mxu0 %v698
        %v815 = vpop.f32.mrb[0].mxu0
        %v816 = vadd.f32 0.0, %v815
        %v817 = vpop.f32.mrb[0].mxu0
        %818 = vmatprep.mubr.f32.mxu0 0.0
        %819 = vmatmul.mubr.f32.gmra.mrb[0].mxu0 %v701
        %v820 = vpop.f32.mrb[0].mxu0
        %v821 = vadd.f32 0.0, %v820
        %v822 = vpop.f32.mrb[0].mxu0
        %823 = vmatprep.mubr.f32.mxu0 0.0
        %824 = vmatmul.mubr.f32.gmra.mrb[0].mxu0 %v704
        %v825 = vpop.f32.mrb[0].mxu0
        %v826 = vadd.f32 0.0, %v825
        %v827 = vpop.f32.mrb[0].mxu0
        %828 = vmatprep.mubr.f32.mxu0 0.0
        %829 = vmatmul.mubr.f32.gmra.mrb[0].mxu0 %v707
        %v830 = vpop.f32.mrb[0].mxu0
        %v831 = vadd.f32 0.0, %v830
        %v832 = vpop.f32.mrb[0].mxu0
        %833 = vmatprep.mubr.f32.mxu0 0.0
        %834 = vmatmul.mubr.f32.gmra.mrb[0].mxu0 %v710
        %v835 = vpop.f32.mrb[0].mxu0
        %v836 = vadd.f32 0.0, %v835
        %v837 = vpop.f32.mrb[0].mxu0
        %838 = vmatprep.mubr.f32.mxu0 0.0
        %839 = vmatmul.mubr.f32.gmra.mrb[0].mxu0 %v713
        %v840 = vpop.f32.mrb[0].mxu0
        %v841 = vadd.f32 0.0, %v840
        %v842 = vpop.f32.mrb[0].mxu0
        %843 = vmatprep.mubr.f32.mxu0 0.0
        %844 = vmatmul.mubr.f32.gmra.mrb[0].mxu0 %v716
        %v845 = vpop.f32.mrb[0].mxu0
        %v846 = vadd.f32 0.0, %v845
        %v847 = vpop.f32.mrb[0].mxu0
        %848 = vmatprep.mubr.f32.mxu0 0.0
        %849 = vmatmul.mubr.f32.gmra.mrb[0].mxu0 %v719
        %v850 = vpop.f32.mrb[0].mxu0
        %v851 = vadd.f32 0.0, %v850
        %v852 = vpop.f32.mrb[0].mxu0
        %853 = vmatprep.mubr.f32.mxu0 0.0
        %854 = vmatmul.mubr.f32.gmra.mrb[0].mxu0 %v722
        %v855 = vpop.f32.mrb[0].mxu0
        %v856 = vadd.f32 0.0, %v855
        %v857 = vpop.f32.mrb[0].mxu0
        %858 = vmatprep.mubr.f32.mxu0 0.0
        %859 = vmatmul.mubr.f32.gmra.mrb[0].mxu0 %v725
        %v860 = vpop.f32.mrb[0].mxu0
        %v861 = vadd.f32 0.0, %v860
        %v862 = vpop.f32.mrb[0].mxu0
        %863 = vmatprep.mubr.f32.mxu0 0.0
        %864 = vmatmul.mubr.f32.gmra.mrb[0].mxu0 %v728
        %v865 = vpop.f32.mrb[0].mxu0
        %v866 = vadd.f32 0.0, %v865
        %v867 = vpop.f32.mrb[0].mxu0
        %868 = vmatprep.mubr.f32.mxu0 0.0
        %869 = vmatmul.mubr.f32.gmra.mrb[0].mxu0 %v731
        %v870 = vpop.f32.mrb[0].mxu0
        %v871 = vadd.f32 0.0, %v870
        %v872 = vpop.f32.mrb[0].mxu0
        %873 = vmatprep.mubr.f32.mxu0 0.0
        %874 = vmatmul.mubr.f32.gmra.mrb[0].mxu0 %v734
        %v875 = vpop.f32.mrb[0].mxu0
        %v876 = vadd.f32 0.0, %v875
        %v877 = vpop.f32.mrb[0].mxu0
        %878 = vmatprep.mubr.f32.mxu0 0.0
        %879 = vmatmul.mubr.f32.gmra.mrb[0].mxu0 %v737
        %v880 = vpop.f32.mrb[0].mxu0
        %v881 = vadd.f32 0.0, %v880
        %v882 = vpop.f32.mrb[0].mxu0
        %883 = vmatprep.mubr.f32.mxu0 0.0
        %884 = vmatmul.mubr.f32.gmra.mrb[0].mxu0 %v740
        %v885 = vpop.f32.mrb[0].mxu0
        %v886 = vadd.f32 0.0, %v885
        %v887 = vpop.f32.mrb[0].mxu0
        %888 = vmatprep.mubr.f32.mxu0 0.0
        %889 = vmatmul.mubr.f32.gmra.mrb[0].mxu0 %v743
        %v890 = vpop.f32.mrb[0].mxu0
        %v891 = vadd.f32 0.0, %v890
        %v892 = vpop.f32.mrb[0].mxu0
        %893 = vdwg.mxu0
        %v894 = vld [vmem:[%s3] sm:$0xf]
        %v896 = vsel %vm745, %v894, 0
        %898 = vmatprep.subr.mxu0 0.0
        %899 = vmatpush1.msra.mxu0 %v896
        %900 = vmatprep.subr.mxu0 0.0
        %901 = vmatpush1.msra.mxu0 0.0
        %902 = vmatprep.subr.mxu0 0.0
        %903 = vmatpush1.msra.mxu0 0.0
        %904 = vmatprep.subr.mxu0 0.0
        %905 = vmatpush1.msra.mxu0 0.0
        %906 = vmatprep.subr.mxu0 0.0
        %907 = vmatpush1.msra.mxu0 0.0
        %908 = vmatprep.subr.mxu0 0.0
        %909 = vmatpush1.msra.mxu0 0.0
        %910 = vmatprep.subr.mxu0 0.0
        %911 = vmatpush1.msra.mxu0 0.0
        %912 = vmatprep.subr.mxu0 0.0
        %913 = vmatpush1.msra.mxu0 0.0
        %914 = vmatprep.subr.mxu0 0.0
        %915 = vmatpush1.msra.mxu0 0.0
        %916 = vmatprep.subr.mxu0 0.0
        %917 = vmatpush1.msra.mxu0 0.0
        %918 = vmatprep.subr.mxu0 0.0
        %919 = vmatpush1.msra.mxu0 0.0
        %920 = vmatprep.subr.mxu0 0.0
        %921 = vmatpush1.msra.mxu0 0.0
        %922 = vmatprep.subr.mxu0 0.0
        %923 = vmatpush1.msra.mxu0 0.0
        %924 = vmatprep.subr.mxu0 0.0
        %925 = vmatpush1.msra.mxu0 0.0
        %926 = vmatprep.subr.mxu0 0.0
        %927 = vmatpush1.msra.mxu0 0.0
        %928 = vmatprep.subr.mxu0 0.0
        %929 = vmatpush1.msra.mxu0 0.0
        %930 = vmatprep.subr.mxu0 0.0
        %931 = vmatpush1.msra.mxu0 0.0
        %932 = vmatprep.subr.mxu0 0.0
        %933 = vmatpush1.msra.mxu0 0.0
        %934 = vmatprep.subr.mxu0 0.0
        %935 = vmatpush1.msra.mxu0 0.0
        %936 = vmatprep.subr.mxu0 0.0
        %937 = vmatpush1.msra.mxu0 0.0
        %938 = vmatprep.subr.mxu0 0.0
        %939 = vmatpush1.msra.mxu0 0.0
        %940 = vmatprep.subr.mxu0 0.0
        %941 = vmatpush1.msra.mxu0 0.0
        %942 = vmatprep.subr.mxu0 0.0
        %943 = vmatpush1.msra.mxu0 0.0
        %944 = vmatprep.subr.mxu0 0.0
        %945 = vmatpush1.msra.mxu0 0.0
        %946 = vmatprep.subr.mxu0 0.0
        %947 = vmatpush1.msra.mxu0 0.0
        %948 = vmatprep.subr.mxu0 0.0
        %949 = vmatpush1.msra.mxu0 0.0
        %950 = vmatprep.subr.mxu0 0.0
        %951 = vmatpush1.msra.mxu0 0.0
        %952 = vmatprep.subr.mxu0 0.0
        %953 = vmatpush1.msra.mxu0 0.0
        %954 = vmatprep.subr.mxu0 0.0
        %955 = vmatpush1.msra.mxu0 0.0
        %956 = vmatprep.subr.mxu0 0.0
        %957 = vmatpush1.msra.mxu0 0.0
        %958 = vmatprep.subr.mxu0 0.0
        %959 = vmatpush1.msra.mxu0 0.0
        %960 = vmatprep.subr.mxu0 0.0
        %961 = vmatpush1.msra.mxu0 0.0
        %962 = vmatprep.mubr.f32.mxu0 0.0
        %963 = vmatmul.mubr.f32.gmra.mrb[0].mxu0 %v698
        %v964 = vpop.f32.mrb[0].mxu0
        %v965 = vadd.f32 0.0, %v964
        %v966 = vpop.f32.mrb[0].mxu0
        %967 = vmatprep.mubr.f32.mxu0 0.0
        %968 = vmatmul.mubr.f32.gmra.mrb[0].mxu0 %v701
        %v969 = vpop.f32.mrb[0].mxu0
        %v970 = vadd.f32 0.0, %v969
        %v971 = vpop.f32.mrb[0].mxu0
        %972 = vmatprep.mubr.f32.mxu0 0.0
        %973 = vmatmul.mubr.f32.gmra.mrb[0].mxu0 %v704
        %v974 = vpop.f32.mrb[0].mxu0
        %v975 = vadd.f32 0.0, %v974
        %v976 = vpop.f32.mrb[0].mxu0
        %977 = vmatprep.mubr.f32.mxu0 0.0
        %978 = vmatmul.mubr.f32.gmra.mrb[0].mxu0 %v707
        %v979 = vpop.f32.mrb[0].mxu0
        %v980 = vadd.f32 0.0, %v979
        %v981 = vpop.f32.mrb[0].mxu0
        %982 = vmatprep.mubr.f32.mxu0 0.0
        %983 = vmatmul.mubr.f32.gmra.mrb[0].mxu0 %v710
        %v984 = vpop.f32.mrb[0].mxu0
        %v985 = vadd.f32 0.0, %v984
        %v986 = vpop.f32.mrb[0].mxu0
        %987 = vmatprep.mubr.f32.mxu0 0.0
        %988 = vmatmul.mubr.f32.gmra.mrb[0].mxu0 %v713
        %v989 = vpop.f32.mrb[0].mxu0
        %v990 = vadd.f32 0.0, %v989
        %v991 = vpop.f32.mrb[0].mxu0
        %992 = vmatprep.mubr.f32.mxu0 0.0
        %993 = vmatmul.mubr.f32.gmra.mrb[0].mxu0 %v716
        %v994 = vpop.f32.mrb[0].mxu0
        %v995 = vadd.f32 0.0, %v994
        %v996 = vpop.f32.mrb[0].mxu0
        %997 = vmatprep.mubr.f32.mxu0 0.0
        %998 = vmatmul.mubr.f32.gmra.mrb[0].mxu0 %v719
        %v999 = vpop.f32.mrb[0].mxu0
        %v1000 = vadd.f32 0.0, %v999
        %v1001 = vpop.f32.mrb[0].mxu0
        %1002 = vmatprep.mubr.f32.mxu0 0.0
        %1003 = vmatmul.mubr.f32.gmra.mrb[0].mxu0 %v722
        %v1004 = vpop.f32.mrb[0].mxu0
        %v1005 = vadd.f32 0.0, %v1004
        %v1006 = vpop.f32.mrb[0].mxu0
        %1007 = vmatprep.mubr.f32.mxu0 0.0
        %1008 = vmatmul.mubr.f32.gmra.mrb[0].mxu0 %v725
        %v1009 = vpop.f32.mrb[0].mxu0
        %v1010 = vadd.f32 0.0, %v1009
        %v1011 = vpop.f32.mrb[0].mxu0
        %1012 = vmatprep.mubr.f32.mxu0 0.0
        %1013 = vmatmul.mubr.f32.gmra.mrb[0].mxu0 %v728
        %v1014 = vpop.f32.mrb[0].mxu0
        %v1015 = vadd.f32 0.0, %v1014
        %v1016 = vpop.f32.mrb[0].mxu0
        %1017 = vmatprep.mubr.f32.mxu0 0.0
        %1018 = vmatmul.mubr.f32.gmra.mrb[0].mxu0 %v731
        %v1019 = vpop.f32.mrb[0].mxu0
        %v1020 = vadd.f32 0.0, %v1019
        %v1021 = vpop.f32.mrb[0].mxu0
        %1022 = vmatprep.mubr.f32.mxu0 0.0
        %1023 = vmatmul.mubr.f32.gmra.mrb[0].mxu0 %v734
        %v1024 = vpop.f32.mrb[0].mxu0
        %v1025 = vadd.f32 0.0, %v1024
        %v1026 = vpop.f32.mrb[0].mxu0
        %1027 = vmatprep.mubr.f32.mxu0 0.0
        %1028 = vmatmul.mubr.f32.gmra.mrb[0].mxu0 %v737
        %v1029 = vpop.f32.mrb[0].mxu0
        %v1030 = vadd.f32 0.0, %v1029
        %v1031 = vpop.f32.mrb[0].mxu0
        %1032 = vmatprep.mubr.f32.mxu0 0.0
        %1033 = vmatmul.mubr.f32.gmra.mrb[0].mxu0 %v740
        %v1034 = vpop.f32.mrb[0].mxu0
        %v1035 = vadd.f32 0.0, %v1034
        %v1036 = vpop.f32.mrb[0].mxu0
        %1037 = vmatprep.mubr.f32.mxu0 0.0
        %1038 = vmatmul.mubr.f32.gmra.mrb[0].mxu0 %v743
        %v1039 = vpop.f32.mrb[0].mxu0
        %v1040 = vadd.f32 0.0, %v1039
        %v1041 = vpop.f32.mrb[0].mxu0
        %1042 = vdwg.mxu0
        %1043 = vmatprep.subr.mxu0 0.0
        %1044 = vmatpush1.msra.mxu0 %v816
        %1045 = vmatprep.subr.mxu0 0.0
        %1046 = vmatpush1.msra.mxu0 %v821
        %1047 = vmatprep.subr.mxu0 0.0
        %1048 = vmatpush1.msra.mxu0 %v826
        %1049 = vmatprep.subr.mxu0 0.0
        %1050 = vmatpush1.msra.mxu0 %v831
        %1051 = vmatprep.subr.mxu0 0.0
        %1052 = vmatpush1.msra.mxu0 %v836
        %1053 = vmatprep.subr.mxu0 0.0
        %1054 = vmatpush1.msra.mxu0 %v841
        %1055 = vmatprep.subr.mxu0 0.0
        %1056 = vmatpush1.msra.mxu0 %v846
        %1057 = vmatprep.subr.mxu0 0.0
        %1058 = vmatpush1.msra.mxu0 %v851
        %1059 = vmatprep.subr.mxu0 0.0
        %1060 = vmatpush1.msra.mxu0 %v856
        %1061 = vmatprep.subr.mxu0 0.0
        %1062 = vmatpush1.msra.mxu0 %v861
        %1063 = vmatprep.subr.mxu0 0.0
        %1064 = vmatpush1.msra.mxu0 %v866
        %1065 = vmatprep.subr.mxu0 0.0
        %1066 = vmatpush1.msra.mxu0 %v871
        %1067 = vmatprep.subr.mxu0 0.0
        %1068 = vmatpush1.msra.mxu0 %v876
        %1069 = vmatprep.subr.mxu0 0.0
        %1070 = vmatpush1.msra.mxu0 %v881
        %1071 = vmatprep.subr.mxu0 0.0
        %1072 = vmatpush1.msra.mxu0 %v886
        %1073 = vmatprep.subr.mxu0 0.0
        %1074 = vmatpush1.msra.mxu0 %v891
        %1075 = vmatprep.subr.mxu0 0.0
        %1076 = vmatpush1.msra.mxu0 0.0
        %1077 = vmatprep.subr.mxu0 0.0
        %1078 = vmatpush1.msra.mxu0 0.0
        %1079 = vmatprep.subr.mxu0 0.0
        %1080 = vmatpush1.msra.mxu0 0.0
        %1081 = vmatprep.subr.mxu0 0.0
        %1082 = vmatpush1.msra.mxu0 0.0
        %1083 = vmatprep.subr.mxu0 0.0
        %1084 = vmatpush1.msra.mxu0 0.0
        %1085 = vmatprep.subr.mxu0 0.0
        %1086 = vmatpush1.msra.mxu0 0.0
        %1087 = vmatprep.subr.mxu0 0.0
        %1088 = vmatpush1.msra.mxu0 0.0
        %1089 = vmatprep.subr.mxu0 0.0
        %1090 = vmatpush1.msra.mxu0 0.0
        %1091 = vmatprep.subr.mxu0 0.0
        %1092 = vmatpush1.msra.mxu0 0.0
        %1093 = vmatprep.subr.mxu0 0.0
        %1094 = vmatpush1.msra.mxu0 0.0
        %1095 = vmatprep.subr.mxu0 0.0
        %1096 = vmatpush1.msra.mxu0 0.0
        %1097 = vmatprep.subr.mxu0 0.0
        %1098 = vmatpush1.msra.mxu0 0.0
        %1099 = vmatprep.subr.mxu0 0.0
        %1100 = vmatpush1.msra.mxu0 0.0
        %1101 = vmatprep.subr.mxu0 0.0
        %1102 = vmatpush1.msra.mxu0 0.0
        %1103 = vmatprep.subr.mxu0 0.0
        %1104 = vmatpush1.msra.mxu0 0.0
        %1105 = vmatprep.subr.mxu0 0.0
        %1106 = vmatpush1.msra.mxu0 0.0
        %1107 = vmatprep.mubr.f32.mxu0 0.0
        %1108 = vmatmul.mubr.f32.gmra.mrb[0].mxu0 %v663
        %v1109 = vpop.f32.mrb[0].mxu0
        %v1110 = vadd.f32 %v965, %v1109
        %v1111 = vpop.f32.mrb[0].mxu0
        %1112 = vmatprep.mubr.f32.mxu0 0.0
        %1113 = vmatmul.mubr.f32.gmra.mrb[0].mxu0 %v664
        %v1114 = vpop.f32.mrb[0].mxu0
        %v1115 = vadd.f32 %v970, %v1114
        %v1116 = vpop.f32.mrb[0].mxu0
        %1117 = vmatprep.mubr.f32.mxu0 0.0
        %1118 = vmatmul.mubr.f32.gmra.mrb[0].mxu0 %v665
        %v1119 = vpop.f32.mrb[0].mxu0
        %v1120 = vadd.f32 %v975, %v1119
        %v1121 = vpop.f32.mrb[0].mxu0
        %1122 = vmatprep.mubr.f32.mxu0 0.0
        %1123 = vmatmul.mubr.f32.gmra.mrb[0].mxu0 %v666
        %v1124 = vpop.f32.mrb[0].mxu0
        %v1125 = vadd.f32 %v980, %v1124
        %v1126 = vpop.f32.mrb[0].mxu0
        %1127 = vmatprep.mubr.f32.mxu0 0.0
        %1128 = vmatmul.mubr.f32.gmra.mrb[0].mxu0 %v667
        %v1129 = vpop.f32.mrb[0].mxu0
        %v1130 = vadd.f32 %v985, %v1129
        %v1131 = vpop.f32.mrb[0].mxu0
        %1132 = vmatprep.mubr.f32.mxu0 0.0
        %1133 = vmatmul.mubr.f32.gmra.mrb[0].mxu0 %v668
        %v1134 = vpop.f32.mrb[0].mxu0
        %v1135 = vadd.f32 %v990, %v1134
        %v1136 = vpop.f32.mrb[0].mxu0
        %1137 = vmatprep.mubr.f32.mxu0 0.0
        %1138 = vmatmul.mubr.f32.gmra.mrb[0].mxu0 %v669
        %v1139 = vpop.f32.mrb[0].mxu0
        %v1140 = vadd.f32 %v995, %v1139
        %v1141 = vpop.f32.mrb[0].mxu0
        %1142 = vmatprep.mubr.f32.mxu0 0.0
        %1143 = vmatmul.mubr.f32.gmra.mrb[0].mxu0 %v670
        %v1144 = vpop.f32.mrb[0].mxu0
        %v1145 = vadd.f32 %v1000, %v1144
        %v1146 = vpop.f32.mrb[0].mxu0
        %1147 = vmatprep.mubr.f32.mxu0 0.0
        %1148 = vmatmul.mubr.f32.gmra.mrb[0].mxu0 %v671
        %v1149 = vpop.f32.mrb[0].mxu0
        %v1150 = vadd.f32 %v1005, %v1149
        %v1151 = vpop.f32.mrb[0].mxu0
        %1152 = vmatprep.mubr.f32.mxu0 0.0
        %1153 = vmatmul.mubr.f32.gmra.mrb[0].mxu0 %v672
        %v1154 = vpop.f32.mrb[0].mxu0
        %v1155 = vadd.f32 %v1010, %v1154
        %v1156 = vpop.f32.mrb[0].mxu0
        %1157 = vmatprep.mubr.f32.mxu0 0.0
        %1158 = vmatmul.mubr.f32.gmra.mrb[0].mxu0 %v673
        %v1159 = vpop.f32.mrb[0].mxu0
        %v1160 = vadd.f32 %v1015, %v1159
        %v1161 = vpop.f32.mrb[0].mxu0
        %1162 = vmatprep.mubr.f32.mxu0 0.0
        %1163 = vmatmul.mubr.f32.gmra.mrb[0].mxu0 %v674
        %v1164 = vpop.f32.mrb[0].mxu0
        %v1165 = vadd.f32 %v1020, %v1164
        %v1166 = vpop.f32.mrb[0].mxu0
        %1167 = vmatprep.mubr.f32.mxu0 0.0
        %1168 = vmatmul.mubr.f32.gmra.mrb[0].mxu0 %v675
        %v1169 = vpop.f32.mrb[0].mxu0
        %v1170 = vadd.f32 %v1025, %v1169
        %v1171 = vpop.f32.mrb[0].mxu0
        %1172 = vmatprep.mubr.f32.mxu0 0.0
        %1173 = vmatmul.mubr.f32.gmra.mrb[0].mxu0 %v676
        %v1174 = vpop.f32.mrb[0].mxu0
        %v1175 = vadd.f32 %v1030, %v1174
        %v1176 = vpop.f32.mrb[0].mxu0
        %1177 = vmatprep.mubr.f32.mxu0 0.0
        %1178 = vmatmul.mubr.f32.gmra.mrb[0].mxu0 %v677
        %v1179 = vpop.f32.mrb[0].mxu0
        %v1180 = vadd.f32 %v1035, %v1179
        %v1181 = vpop.f32.mrb[0].mxu0
        %1182 = vmatprep.mubr.f32.mxu0 0.0
        %1183 = vmatmul.mubr.f32.gmra.mrb[0].mxu0 %v678
        %v1184 = vpop.f32.mrb[0].mxu0
        %v1185 = vadd.f32 %v1040, %v1184
        %v1186 = vpop.f32.mrb[0].mxu0
        %1187 = vdwg.mxu0
        %v1188 = vld [vmem:[%s4] sm:$0x1]
        %v1190 = vlaneseq
        %v1191 = vshrl.u32 %v1190, 7
        %v1192 = vsub.s32 0, %v1191
        %v1193 = vrot.slane %v1188, %v1192
        %v1195 = vadd.f32 %v1110, %v1193
        %v1196 = vadd.f32 %v1115, %v1193
        %v1197 = vadd.f32 %v1120, %v1193
        %v1198 = vadd.f32 %v1125, %v1193
        %v1199 = vadd.f32 %v1130, %v1193
        %v1200 = vadd.f32 %v1135, %v1193
        %v1201 = vadd.f32 %v1140, %v1193
        %v1202 = vadd.f32 %v1145, %v1193
        %v1203 = vadd.f32 %v1150, %v1193
        %v1204 = vadd.f32 %v1155, %v1193
        %v1205 = vadd.f32 %v1160, %v1193
        %v1206 = vadd.f32 %v1165, %v1193
        %v1207 = vadd.f32 %v1170, %v1193
        %v1208 = vadd.f32 %v1175, %v1193
        %v1209 = vadd.f32 %v1180, %v1193
        %v1210 = vadd.f32 %v1185, %v1193
        %v1211 = vld [vmem:[%s5] sm:$0x1]
        %v1212 = vld [vmem:[%s6] sm:$0x1]
        %vm1213 = vcmask 523264
        %v1214 = vsel %vm1213, %v1195, 0.0
        %1215 = vadd.xlane.f32.xlu0 %v1214
        %v1216 = vpop.xlane.xlu0 %1215
        %v1217 = vsel %vm1213, %v1196, 0.0
        %1218 = vadd.xlane.f32.xlu0 %v1217
        %v1219 = vpop.xlane.xlu0 %1218
        %v1220 = vsel %vm1213, %v1197, 0.0
        %1221 = vadd.xlane.f32.xlu0 %v1220
        %v1222 = vpop.xlane.xlu0 %1221
        %v1223 = vsel %vm1213, %v1198, 0.0
        %1224 = vadd.xlane.f32.xlu0 %v1223
        %v1225 = vpop.xlane.xlu0 %1224
        %v1226 = vsel %vm1213, %v1199, 0.0
        %1227 = vadd.xlane.f32.xlu0 %v1226
        %v1228 = vpop.xlane.xlu0 %1227
        %v1229 = vsel %vm1213, %v1200, 0.0
        %1230 = vadd.xlane.f32.xlu0 %v1229
        %v1231 = vpop.xlane.xlu0 %1230
        %v1232 = vsel %vm1213, %v1201, 0.0
        %1233 = vadd.xlane.f32.xlu0 %v1232
        %v1234 = vpop.xlane.xlu0 %1233
        %v1235 = vsel %vm1213, %v1202, 0.0
        %1236 = vadd.xlane.f32.xlu0 %v1235
        %v1237 = vpop.xlane.xlu0 %1236
        %v1238 = vsel %vm1213, %v1203, 0.0
        %1239 = vadd.xlane.f32.xlu0 %v1238
        %v1240 = vpop.xlane.xlu0 %1239
        %v1241 = vsel %vm1213, %v1204, 0.0
        %1242 = vadd.xlane.f32.xlu0 %v1241
        %v1243 = vpop.xlane.xlu0 %1242
        %v1244 = vsel %vm1213, %v1205, 0.0
        %1245 = vadd.xlane.f32.xlu0 %v1244
        %v1246 = vpop.xlane.xlu0 %1245
        %v1247 = vsel %vm1213, %v1206, 0.0
        %1248 = vadd.xlane.f32.xlu0 %v1247
        %v1249 = vpop.xlane.xlu0 %1248
        %v1250 = vsel %vm1213, %v1207, 0.0
        %1251 = vadd.xlane.f32.xlu0 %v1250
        %v1252 = vpop.xlane.xlu0 %1251
        %v1253 = vsel %vm1213, %v1208, 0.0
        %1254 = vadd.xlane.f32.xlu0 %v1253
        %v1255 = vpop.xlane.xlu0 %1254
        %v1256 = vsel %vm1213, %v1209, 0.0
        %1257 = vadd.xlane.f32.xlu0 %v1256
        %v1258 = vpop.xlane.xlu0 %1257
        %v1259 = vsel %vm1213, %v1210, 0.0
        %1260 = vadd.xlane.f32.xlu0 %v1259
        %v1261 = vpop.xlane.xlu0 %1260
        %v1262 = vrcp.pop 64.0
        %v1263 = vmul.f32 %v1216, %v1262
        %v1264 = vmul.f32 %v1219, %v1262
        %v1265 = vmul.f32 %v1222, %v1262
        %v1266 = vmul.f32 %v1225, %v1262
        %v1267 = vmul.f32 %v1228, %v1262
        %v1268 = vmul.f32 %v1231, %v1262
        %v1269 = vmul.f32 %v1234, %v1262
        %v1270 = vmul.f32 %v1237, %v1262
        %v1271 = vmul.f32 %v1240, %v1262
        %v1272 = vmul.f32 %v1243, %v1262
        %v1273 = vmul.f32 %v1246, %v1262
        %v1274 = vmul.f32 %v1249, %v1262
        %v1275 = vmul.f32 %v1252, %v1262
        %v1276 = vmul.f32 %v1255, %v1262
        %v1277 = vmul.f32 %v1258, %v1262
        %v1278 = vmul.f32 %v1261, %v1262
        %v1279 = vsub.f32 %v1195, %v1263
        %v1280 = vsub.f32 %v1196, %v1264
        %v1281 = vsub.f32 %v1197, %v1265
        %v1282 = vsub.f32 %v1198, %v1266
        %v1283 = vsub.f32 %v1199, %v1267
        %v1284 = vsub.f32 %v1200, %v1268
        %v1285 = vsub.f32 %v1201, %v1269
        %v1286 = vsub.f32 %v1202, %v1270
        %v1287 = vsub.f32 %v1203, %v1271
        %v1288 = vsub.f32 %v1204, %v1272
        %v1289 = vsub.f32 %v1205, %v1273
        %v1290 = vsub.f32 %v1206, %v1274
        %v1291 = vsub.f32 %v1207, %v1275
        %v1292 = vsub.f32 %v1208, %v1276
        %v1293 = vsub.f32 %v1209, %v1277
        %v1294 = vsub.f32 %v1210, %v1278
        %v1295 = vmul.f32 %v1279, %v1279
        %v1296 = vmul.f32 %v1280, %v1280
        %v1297 = vmul.f32 %v1281, %v1281
        %v1298 = vmul.f32 %v1282, %v1282
        %v1299 = vmul.f32 %v1283, %v1283
        %v1300 = vmul.f32 %v1284, %v1284
        %v1301 = vmul.f32 %v1285, %v1285
        %v1302 = vmul.f32 %v1286, %v1286
        %v1303 = vmul.f32 %v1287, %v1287
        %v1304 = vmul.f32 %v1288, %v1288
        %v1305 = vmul.f32 %v1289, %v1289
        %v1306 = vmul.f32 %v1290, %v1290
        %v1307 = vmul.f32 %v1291, %v1291
        %v1308 = vmul.f32 %v1292, %v1292
        %v1309 = vmul.f32 %v1293, %v1293
        %v1310 = vmul.f32 %v1294, %v1294
        %v1311 = vsel %vm1213, %v1295, 0.0
        %1312 = vadd.xlane.f32.xlu0 %v1311
        %v1313 = vpop.xlane.xlu0 %1312
        %v1314 = vsel %vm1213, %v1296, 0.0
        %1315 = vadd.xlane.f32.xlu0 %v1314
        %v1316 = vpop.xlane.xlu0 %1315
        %v1317 = vsel %vm1213, %v1297, 0.0
        %1318 = vadd.xlane.f32.xlu0 %v1317
        %v1319 = vpop.xlane.xlu0 %1318
        %v1320 = vsel %vm1213, %v1298, 0.0
        %1321 = vadd.xlane.f32.xlu0 %v1320
        %v1322 = vpop.xlane.xlu0 %1321
        %v1323 = vsel %vm1213, %v1299, 0.0
        %1324 = vadd.xlane.f32.xlu0 %v1323
        %v1325 = vpop.xlane.xlu0 %1324
        %v1326 = vsel %vm1213, %v1300, 0.0
        %1327 = vadd.xlane.f32.xlu0 %v1326
        %v1328 = vpop.xlane.xlu0 %1327
        %v1329 = vsel %vm1213, %v1301, 0.0
        %1330 = vadd.xlane.f32.xlu0 %v1329
        %v1331 = vpop.xlane.xlu0 %1330
        %v1332 = vsel %vm1213, %v1302, 0.0
        %1333 = vadd.xlane.f32.xlu0 %v1332
        %v1334 = vpop.xlane.xlu0 %1333
        %v1335 = vsel %vm1213, %v1303, 0.0
        %1336 = vadd.xlane.f32.xlu0 %v1335
        %v1337 = vpop.xlane.xlu0 %1336
        %v1338 = vsel %vm1213, %v1304, 0.0
        %1339 = vadd.xlane.f32.xlu0 %v1338
        %v1340 = vpop.xlane.xlu0 %1339
        %v1341 = vsel %vm1213, %v1305, 0.0
        %1342 = vadd.xlane.f32.xlu0 %v1341
        %v1343 = vpop.xlane.xlu0 %1342
        %v1344 = vsel %vm1213, %v1306, 0.0
        %1345 = vadd.xlane.f32.xlu0 %v1344
        %v1346 = vpop.xlane.xlu0 %1345
        %v1347 = vsel %vm1213, %v1307, 0.0
        %1348 = vadd.xlane.f32.xlu0 %v1347
        %v1349 = vpop.xlane.xlu0 %1348
        %v1350 = vsel %vm1213, %v1308, 0.0
        %1351 = vadd.xlane.f32.xlu0 %v1350
        %v1352 = vpop.xlane.xlu0 %1351
        %v1353 = vsel %vm1213, %v1309, 0.0
        %1354 = vadd.xlane.f32.xlu0 %v1353
        %v1355 = vpop.xlane.xlu0 %1354
        %v1356 = vsel %vm1213, %v1310, 0.0
        %1357 = vadd.xlane.f32.xlu0 %v1356
        %v1358 = vpop.xlane.xlu0 %1357
        %v1359 = vmul.f32 %v1313, %v1262
        %v1360 = vmul.f32 %v1316, %v1262
        %v1361 = vmul.f32 %v1319, %v1262
        %v1362 = vmul.f32 %v1322, %v1262
        %v1363 = vmul.f32 %v1325, %v1262
        %v1364 = vmul.f32 %v1328, %v1262
        %v1365 = vmul.f32 %v1331, %v1262
        %v1366 = vmul.f32 %v1334, %v1262
        %v1367 = vmul.f32 %v1337, %v1262
        %v1368 = vmul.f32 %v1340, %v1262
        %v1369 = vmul.f32 %v1343, %v1262
        %v1370 = vmul.f32 %v1346, %v1262
        %v1371 = vmul.f32 %v1349, %v1262
        %v1372 = vmul.f32 %v1352, %v1262
        %v1373 = vmul.f32 %v1355, %v1262
        %v1374 = vmul.f32 %v1358, %v1262
        %v1375 = vadd.f32 %v1359, 1e-05
        %v1376 = vadd.f32 %v1360, 1e-05
        %v1377 = vadd.f32 %v1361, 1e-05
        %v1378 = vadd.f32 %v1362, 1e-05
        %v1379 = vadd.f32 %v1363, 1e-05
        %v1380 = vadd.f32 %v1364, 1e-05
        %v1381 = vadd.f32 %v1365, 1e-05
        %v1382 = vadd.f32 %v1366, 1e-05
        %v1383 = vadd.f32 %v1367, 1e-05
        %v1384 = vadd.f32 %v1368, 1e-05
        %v1385 = vadd.f32 %v1369, 1e-05
        %v1386 = vadd.f32 %v1370, 1e-05
        %v1387 = vadd.f32 %v1371, 1e-05
        %v1388 = vadd.f32 %v1372, 1e-05
        %v1389 = vadd.f32 %v1373, 1e-05
        %v1390 = vadd.f32 %v1374, 1e-05
        %v1391 = vrsqrt.pop %v1375
        %v1392 = vrsqrt.pop %v1376
        %v1393 = vrsqrt.pop %v1377
        %v1394 = vrsqrt.pop %v1378
        %v1395 = vrsqrt.pop %v1379
        %v1396 = vrsqrt.pop %v1380
        %v1397 = vrsqrt.pop %v1381
        %v1398 = vrsqrt.pop %v1382
        %v1399 = vrsqrt.pop %v1383
        %v1400 = vrsqrt.pop %v1384
        %v1401 = vrsqrt.pop %v1385
        %v1402 = vrsqrt.pop %v1386
        %v1403 = vrsqrt.pop %v1387
        %v1404 = vrsqrt.pop %v1388
        %v1405 = vrsqrt.pop %v1389
        %v1406 = vrsqrt.pop %v1390
        %v1407 = vmul.f32 %v1279, %v1391
        %v1408 = vmul.f32 %v1280, %v1392
        %v1409 = vmul.f32 %v1281, %v1393
        %v1410 = vmul.f32 %v1282, %v1394
        %v1411 = vmul.f32 %v1283, %v1395
        %v1412 = vmul.f32 %v1284, %v1396
        %v1413 = vmul.f32 %v1285, %v1397
        %v1414 = vmul.f32 %v1286, %v1398
        %v1415 = vmul.f32 %v1287, %v1399
        %v1416 = vmul.f32 %v1288, %v1400
        %v1417 = vmul.f32 %v1289, %v1401
        %v1418 = vmul.f32 %v1290, %v1402
        %v1419 = vmul.f32 %v1291, %v1403
        %v1420 = vmul.f32 %v1292, %v1404
        %v1421 = vmul.f32 %v1293, %v1405
        %v1422 = vmul.f32 %v1294, %v1406
        %v1424 = vlaneseq
        %v1425 = vshrl.u32 %v1424, 7
        %v1426 = vsub.s32 0, %v1425
        %v1427 = vrot.slane %v1211, %v1426
        %v1429 = vmul.f32 %v1407, %v1427
        %v1430 = vmul.f32 %v1408, %v1427
        %v1431 = vmul.f32 %v1409, %v1427
        %v1432 = vmul.f32 %v1410, %v1427
        %v1433 = vmul.f32 %v1411, %v1427
        %v1434 = vmul.f32 %v1412, %v1427
        %v1435 = vmul.f32 %v1413, %v1427
        %v1436 = vmul.f32 %v1414, %v1427
        %v1437 = vmul.f32 %v1415, %v1427
        %v1438 = vmul.f32 %v1416, %v1427
        %v1439 = vmul.f32 %v1417, %v1427
        %v1440 = vmul.f32 %v1418, %v1427
        %v1441 = vmul.f32 %v1419, %v1427
        %v1442 = vmul.f32 %v1420, %v1427
        %v1443 = vmul.f32 %v1421, %v1427
        %v1444 = vmul.f32 %v1422, %v1427
        %v1446 = vlaneseq
        %v1447 = vshrl.u32 %v1446, 7
        %v1448 = vsub.s32 0, %v1447
        %v1449 = vrot.slane %v1212, %v1448
        %v1451 = vadd.f32 %v1429, %v1449
        %v1452 = vadd.f32 %v1430, %v1449
        %v1453 = vadd.f32 %v1431, %v1449
        %v1454 = vadd.f32 %v1432, %v1449
        %v1455 = vadd.f32 %v1433, %v1449
        %v1456 = vadd.f32 %v1434, %v1449
        %v1457 = vadd.f32 %v1435, %v1449
        %v1458 = vadd.f32 %v1436, %v1449
        %v1459 = vadd.f32 %v1437, %v1449
        %v1460 = vadd.f32 %v1438, %v1449
        %v1461 = vadd.f32 %v1439, %v1449
        %v1462 = vadd.f32 %v1440, %v1449
        %v1463 = vadd.f32 %v1441, %v1449
        %v1464 = vadd.f32 %v1442, %v1449
        %v1465 = vadd.f32 %v1443, %v1449
        %v1466 = vadd.f32 %v1444, %v1449
        %vm1467 = vcmp.gt.f32.partialorder %v1451, 0.0
        %vm1468 = vcmp.gt.f32.partialorder %v1452, 0.0
        %vm1469 = vcmp.gt.f32.partialorder %v1453, 0.0
        %vm1470 = vcmp.gt.f32.partialorder %v1454, 0.0
        %vm1471 = vcmp.gt.f32.partialorder %v1455, 0.0
        %vm1472 = vcmp.gt.f32.partialorder %v1456, 0.0
        %vm1473 = vcmp.gt.f32.partialorder %v1457, 0.0
        %vm1474 = vcmp.gt.f32.partialorder %v1458, 0.0
        %vm1475 = vcmp.gt.f32.partialorder %v1459, 0.0
        %vm1476 = vcmp.gt.f32.partialorder %v1460, 0.0
        %vm1477 = vcmp.gt.f32.partialorder %v1461, 0.0
        %vm1478 = vcmp.gt.f32.partialorder %v1462, 0.0
        %vm1479 = vcmp.gt.f32.partialorder %v1463, 0.0
        %vm1480 = vcmp.gt.f32.partialorder %v1464, 0.0
        %vm1481 = vcmp.gt.f32.partialorder %v1465, 0.0
        %vm1482 = vcmp.gt.f32.partialorder %v1466, 0.0
        %v1483 = vmul.f32 %v1451, 0.01
        %v1484 = vmul.f32 %v1452, 0.01
        %v1485 = vmul.f32 %v1453, 0.01
        %v1486 = vmul.f32 %v1454, 0.01
        %v1487 = vmul.f32 %v1455, 0.01
        %v1488 = vmul.f32 %v1456, 0.01
        %v1489 = vmul.f32 %v1457, 0.01
        %v1490 = vmul.f32 %v1458, 0.01
        %v1491 = vmul.f32 %v1459, 0.01
        %v1492 = vmul.f32 %v1460, 0.01
        %v1493 = vmul.f32 %v1461, 0.01
        %v1494 = vmul.f32 %v1462, 0.01
        %v1495 = vmul.f32 %v1463, 0.01
        %v1496 = vmul.f32 %v1464, 0.01
        %v1497 = vmul.f32 %v1465, 0.01
        %v1498 = vmul.f32 %v1466, 0.01
        %v1499 = vsel %vm1467, %v1451, %v1483
        %v1500 = vsel %vm1468, %v1452, %v1484
        %v1501 = vsel %vm1469, %v1453, %v1485
        %v1502 = vsel %vm1470, %v1454, %v1486
        %v1503 = vsel %vm1471, %v1455, %v1487
        %v1504 = vsel %vm1472, %v1456, %v1488
        %v1505 = vsel %vm1473, %v1457, %v1489
        %v1506 = vsel %vm1474, %v1458, %v1490
        %v1507 = vsel %vm1475, %v1459, %v1491
        %v1508 = vsel %vm1476, %v1460, %v1492
        %v1509 = vsel %vm1477, %v1461, %v1493
        %v1510 = vsel %vm1478, %v1462, %v1494
        %v1511 = vsel %vm1479, %v1463, %v1495
        %v1512 = vsel %vm1480, %v1464, %v1496
        %v1513 = vsel %vm1481, %v1465, %v1497
        %v1514 = vsel %vm1482, %v1466, %v1498
        %v1515 = vld [vmem:[#allocation4] sm:$0xff]
        %v1516 = vld [vmem:[#allocation4 + $0x8] sm:$0xff]
        %v1517 = vld [vmem:[#allocation4 + $0x10] sm:$0xff]
        %v1518 = vld [vmem:[#allocation4 + $0x18] sm:$0xff]
        %v1519 = vld [vmem:[#allocation4 + $0x20] sm:$0xff]
        %v1520 = vld [vmem:[#allocation4 + $0x28] sm:$0xff]
        %v1521 = vld [vmem:[#allocation4 + $0x30] sm:$0xff]
        %v1522 = vld [vmem:[#allocation4 + $0x38] sm:$0xff]
        %v1523 = vld [vmem:[#allocation4 + $0x40] sm:$0xff]
        %v1524 = vld [vmem:[#allocation4 + $0x48] sm:$0xff]
        %v1525 = vld [vmem:[#allocation4 + $0x50] sm:$0xff]
        %v1526 = vld [vmem:[#allocation4 + $0x58] sm:$0xff]
        %v1527 = vld [vmem:[#allocation4 + $0x60] sm:$0xff]
        %v1528 = vld [vmem:[#allocation4 + $0x68] sm:$0xff]
        %v1529 = vld [vmem:[#allocation4 + $0x70] sm:$0xff]
        %v1530 = vld [vmem:[#allocation4 + $0x78] sm:$0xff]
        %v1532 = vsel %vm1213, %v1499, 0
        %v1535 = vsel %vm1213, %v1500, 0
        %v1538 = vsel %vm1213, %v1501, 0
        %v1541 = vsel %vm1213, %v1502, 0
        %v1544 = vsel %vm1213, %v1503, 0
        %v1547 = vsel %vm1213, %v1504, 0
        %v1550 = vsel %vm1213, %v1505, 0
        %v1553 = vsel %vm1213, %v1506, 0
        %v1556 = vsel %vm1213, %v1507, 0
        %v1559 = vsel %vm1213, %v1508, 0
        %v1562 = vsel %vm1213, %v1509, 0
        %v1565 = vsel %vm1213, %v1510, 0
        %v1568 = vsel %vm1213, %v1511, 0
        %v1571 = vsel %vm1213, %v1512, 0
        %v1574 = vsel %vm1213, %v1513, 0
        %v1577 = vsel %vm1213, %v1514, 0
        %1579 = vmatprep.subr.mxu0 %v1516
        %1580 = vmatpush1.msra.mxu0 %v1515
        %1581 = vmatprep.subr.mxu0 %v1518
        %1582 = vmatpush1.msra.mxu0 %v1517
        %1583 = vmatprep.subr.mxu0 %v1520
        %1584 = vmatpush1.msra.mxu0 %v1519
        %1585 = vmatprep.subr.mxu0 %v1522
        %1586 = vmatpush1.msra.mxu0 %v1521
        %1587 = vmatprep.subr.mxu0 %v1524
        %1588 = vmatpush1.msra.mxu0 %v1523
        %1589 = vmatprep.subr.mxu0 %v1526
        %1590 = vmatpush1.msra.mxu0 %v1525
        %1591 = vmatprep.subr.mxu0 %v1528
        %1592 = vmatpush1.msra.mxu0 %v1527
        %1593 = vmatprep.subr.mxu0 %v1530
        %1594 = vmatpush1.msra.mxu0 %v1529
        %1595 = vmatprep.subr.mxu0 0.0
        %1596 = vmatpush1.msra.mxu0 0.0
        %1597 = vmatprep.subr.mxu0 0.0
        %1598 = vmatpush1.msra.mxu0 0.0
        %1599 = vmatprep.subr.mxu0 0.0
        %1600 = vmatpush1.msra.mxu0 0.0
        %1601 = vmatprep.subr.mxu0 0.0
        %1602 = vmatpush1.msra.mxu0 0.0
        %1603 = vmatprep.subr.mxu0 0.0
        %1604 = vmatpush1.msra.mxu0 0.0
        %1605 = vmatprep.subr.mxu0 0.0
        %1606 = vmatpush1.msra.mxu0 0.0
        %1607 = vmatprep.subr.mxu0 0.0
        %1608 = vmatpush1.msra.mxu0 0.0
        %1609 = vmatprep.subr.mxu0 0.0
        %1610 = vmatpush1.msra.mxu0 0.0
        %1611 = vmatprep.subr.mxu0 0.0
        %1612 = vmatpush1.msra.mxu0 0.0
        %1613 = vmatprep.subr.mxu0 0.0
        %1614 = vmatpush1.msra.mxu0 0.0
        %1615 = vmatprep.subr.mxu0 0.0
        %1616 = vmatpush1.msra.mxu0 0.0
        %1617 = vmatprep.subr.mxu0 0.0
        %1618 = vmatpush1.msra.mxu0 0.0
        %1619 = vmatprep.subr.mxu0 0.0
        %1620 = vmatpush1.msra.mxu0 0.0
        %1621 = vmatprep.subr.mxu0 0.0
        %1622 = vmatpush1.msra.mxu0 0.0
        %1623 = vmatprep.subr.mxu0 0.0
        %1624 = vmatpush1.msra.mxu0 0.0
        %1625 = vmatprep.subr.mxu0 0.0
        %1626 = vmatpush1.msra.mxu0 0.0
        %1627 = vmatprep.subr.mxu0 0.0
        %1628 = vmatpush1.msra.mxu0 0.0
        %1629 = vmatprep.subr.mxu0 0.0
        %1630 = vmatpush1.msra.mxu0 0.0
        %1631 = vmatprep.subr.mxu0 0.0
        %1632 = vmatpush1.msra.mxu0 0.0
        %1633 = vmatprep.subr.mxu0 0.0
        %1634 = vmatpush1.msra.mxu0 0.0
        %1635 = vmatprep.subr.mxu0 0.0
        %1636 = vmatpush1.msra.mxu0 0.0
        %1637 = vmatprep.subr.mxu0 0.0
        %1638 = vmatpush1.msra.mxu0 0.0
        %1639 = vmatprep.subr.mxu0 0.0
        %1640 = vmatpush1.msra.mxu0 0.0
        %1641 = vmatprep.subr.mxu0 0.0
        %1642 = vmatpush1.msra.mxu0 0.0
        %1643 = vmatprep.mubr.f32.mxu0 0.0
        %1644 = vmatmul.mubr.f32.gmra.mrb[0].mxu0 %v1532
        %v1645 = vpop.f32.mrb[0].mxu0
        %v1646 = vadd.f32 0.0, %v1645
        %v1647 = vpop.f32.mrb[0].mxu0
        %v1648 = vadd.f32 0.0, %v1647
        %1649 = vmatprep.mubr.f32.mxu0 0.0
        %1650 = vmatmul.mubr.f32.gmra.mrb[0].mxu0 %v1535
        %v1651 = vpop.f32.mrb[0].mxu0
        %v1652 = vadd.f32 0.0, %v1651
        %v1653 = vpop.f32.mrb[0].mxu0
        %v1654 = vadd.f32 0.0, %v1653
        %1655 = vmatprep.mubr.f32.mxu0 0.0
        %1656 = vmatmul.mubr.f32.gmra.mrb[0].mxu0 %v1538
        %v1657 = vpop.f32.mrb[0].mxu0
        %v1658 = vadd.f32 0.0, %v1657
        %v1659 = vpop.f32.mrb[0].mxu0
        %v1660 = vadd.f32 0.0, %v1659
        %1661 = vmatprep.mubr.f32.mxu0 0.0
        %1662 = vmatmul.mubr.f32.gmra.mrb[0].mxu0 %v1541
        %v1663 = vpop.f32.mrb[0].mxu0
        %v1664 = vadd.f32 0.0, %v1663
        %v1665 = vpop.f32.mrb[0].mxu0
        %v1666 = vadd.f32 0.0, %v1665
        %1667 = vmatprep.mubr.f32.mxu0 0.0
        %1668 = vmatmul.mubr.f32.gmra.mrb[0].mxu0 %v1544
        %v1669 = vpop.f32.mrb[0].mxu0
        %v1670 = vadd.f32 0.0, %v1669
        %v1671 = vpop.f32.mrb[0].mxu0
        %v1672 = vadd.f32 0.0, %v1671
        %1673 = vmatprep.mubr.f32.mxu0 0.0
        %1674 = vmatmul.mubr.f32.gmra.mrb[0].mxu0 %v1547
        %v1675 = vpop.f32.mrb[0].mxu0
        %v1676 = vadd.f32 0.0, %v1675
        %v1677 = vpop.f32.mrb[0].mxu0
        %v1678 = vadd.f32 0.0, %v1677
        %1679 = vmatprep.mubr.f32.mxu0 0.0
        %1680 = vmatmul.mubr.f32.gmra.mrb[0].mxu0 %v1550
        %v1681 = vpop.f32.mrb[0].mxu0
        %v1682 = vadd.f32 0.0, %v1681
        %v1683 = vpop.f32.mrb[0].mxu0
        %v1684 = vadd.f32 0.0, %v1683
        %1685 = vmatprep.mubr.f32.mxu0 0.0
        %1686 = vmatmul.mubr.f32.gmra.mrb[0].mxu0 %v1553
        %v1687 = vpop.f32.mrb[0].mxu0
        %v1688 = vadd.f32 0.0, %v1687
        %v1689 = vpop.f32.mrb[0].mxu0
        %v1690 = vadd.f32 0.0, %v1689
        %1691 = vmatprep.mubr.f32.mxu0 0.0
        %1692 = vmatmul.mubr.f32.gmra.mrb[0].mxu0 %v1556
        %v1693 = vpop.f32.mrb[0].mxu0
        %v1694 = vadd.f32 0.0, %v1693
        %v1695 = vpop.f32.mrb[0].mxu0
        %v1696 = vadd.f32 0.0, %v1695
        %1697 = vmatprep.mubr.f32.mxu0 0.0
        %1698 = vmatmul.mubr.f32.gmra.mrb[0].mxu0 %v1559
        %v1699 = vpop.f32.mrb[0].mxu0
        %v1700 = vadd.f32 0.0, %v1699
        %v1701 = vpop.f32.mrb[0].mxu0
        %v1702 = vadd.f32 0.0, %v1701
        %1703 = vmatprep.mubr.f32.mxu0 0.0
        %1704 = vmatmul.mubr.f32.gmra.mrb[0].mxu0 %v1562
        %v1705 = vpop.f32.mrb[0].mxu0
        %v1706 = vadd.f32 0.0, %v1705
        %v1707 = vpop.f32.mrb[0].mxu0
        %v1708 = vadd.f32 0.0, %v1707
        %1709 = vmatprep.mubr.f32.mxu0 0.0
        %1710 = vmatmul.mubr.f32.gmra.mrb[0].mxu0 %v1565
        %v1711 = vpop.f32.mrb[0].mxu0
        %v1712 = vadd.f32 0.0, %v1711
        %v1713 = vpop.f32.mrb[0].mxu0
        %v1714 = vadd.f32 0.0, %v1713
        %1715 = vmatprep.mubr.f32.mxu0 0.0
        %1716 = vmatmul.mubr.f32.gmra.mrb[0].mxu0 %v1568
        %v1717 = vpop.f32.mrb[0].mxu0
        %v1718 = vadd.f32 0.0, %v1717
        %v1719 = vpop.f32.mrb[0].mxu0
        %v1720 = vadd.f32 0.0, %v1719
        %1721 = vmatprep.mubr.f32.mxu0 0.0
        %1722 = vmatmul.mubr.f32.gmra.mrb[0].mxu0 %v1571
        %v1723 = vpop.f32.mrb[0].mxu0
        %v1724 = vadd.f32 0.0, %v1723
        %v1725 = vpop.f32.mrb[0].mxu0
        %v1726 = vadd.f32 0.0, %v1725
        %1727 = vmatprep.mubr.f32.mxu0 0.0
        %1728 = vmatmul.mubr.f32.gmra.mrb[0].mxu0 %v1574
        %v1729 = vpop.f32.mrb[0].mxu0
        %v1730 = vadd.f32 0.0, %v1729
        %v1731 = vpop.f32.mrb[0].mxu0
        %v1732 = vadd.f32 0.0, %v1731
        %1733 = vmatprep.mubr.f32.mxu0 0.0
        %1734 = vmatmul.mubr.f32.gmra.mrb[0].mxu0 %v1577
        %v1735 = vpop.f32.mrb[0].mxu0
        %v1736 = vadd.f32 0.0, %v1735
        %v1737 = vpop.f32.mrb[0].mxu0
        %v1738 = vadd.f32 0.0, %v1737
        %1739 = vdwg.mxu0
        %1740 = vmatprep.subr.mxu0 0.0
        %1741 = vmatpush1.msra.mxu0 %v1646
        %1742 = vmatprep.subr.mxu0 0.0
        %1743 = vmatpush1.msra.mxu0 %v1652
        %1744 = vmatprep.subr.mxu0 0.0
        %1745 = vmatpush1.msra.mxu0 %v1658
        %1746 = vmatprep.subr.mxu0 0.0
        %1747 = vmatpush1.msra.mxu0 %v1664
        %1748 = vmatprep.subr.mxu0 0.0
        %1749 = vmatpush1.msra.mxu0 %v1670
        %1750 = vmatprep.subr.mxu0 0.0
        %1751 = vmatpush1.msra.mxu0 %v1676
        %1752 = vmatprep.subr.mxu0 0.0
        %1753 = vmatpush1.msra.mxu0 %v1682
        %1754 = vmatprep.subr.mxu0 0.0
        %1755 = vmatpush1.msra.mxu0 %v1688
        %1756 = vmatprep.subr.mxu0 0.0
        %1757 = vmatpush1.msra.mxu0 %v1694
        %1758 = vmatprep.subr.mxu0 0.0
        %1759 = vmatpush1.msra.mxu0 %v1700
        %1760 = vmatprep.subr.mxu0 0.0
        %1761 = vmatpush1.msra.mxu0 %v1706
        %1762 = vmatprep.subr.mxu0 0.0
        %1763 = vmatpush1.msra.mxu0 %v1712
        %1764 = vmatprep.subr.mxu0 0.0
        %1765 = vmatpush1.msra.mxu0 %v1718
        %1766 = vmatprep.subr.mxu0 0.0
        %1767 = vmatpush1.msra.mxu0 %v1724
        %1768 = vmatprep.subr.mxu0 0.0
        %1769 = vmatpush1.msra.mxu0 %v1730
        %1770 = vmatprep.subr.mxu0 0.0
        %1771 = vmatpush1.msra.mxu0 %v1736
        %1772 = vmatprep.subr.mxu0 0.0
        %1773 = vmatpush1.msra.mxu0 0.0
        %1774 = vmatprep.subr.mxu0 0.0
        %1775 = vmatpush1.msra.mxu0 0.0
        %1776 = vmatprep.subr.mxu0 0.0
        %1777 = vmatpush1.msra.mxu0 0.0
        %1778 = vmatprep.subr.mxu0 0.0
        %1779 = vmatpush1.msra.mxu0 0.0
        %1780 = vmatprep.subr.mxu0 0.0
        %1781 = vmatpush1.msra.mxu0 0.0
        %1782 = vmatprep.subr.mxu0 0.0
        %1783 = vmatpush1.msra.mxu0 0.0
        %1784 = vmatprep.subr.mxu0 0.0
        %1785 = vmatpush1.msra.mxu0 0.0
        %1786 = vmatprep.subr.mxu0 0.0
        %1787 = vmatpush1.msra.mxu0 0.0
        %1788 = vmatprep.subr.mxu0 0.0
        %1789 = vmatpush1.msra.mxu0 0.0
        %1790 = vmatprep.subr.mxu0 0.0
        %1791 = vmatpush1.msra.mxu0 0.0
        %1792 = vmatprep.subr.mxu0 0.0
        %1793 = vmatpush1.msra.mxu0 0.0
        %1794 = vmatprep.subr.mxu0 0.0
        %1795 = vmatpush1.msra.mxu0 0.0
        %1796 = vmatprep.subr.mxu0 0.0
        %1797 = vmatpush1.msra.mxu0 0.0
        %1798 = vmatprep.subr.mxu0 0.0
        %1799 = vmatpush1.msra.mxu0 0.0
        %1800 = vmatprep.subr.mxu0 0.0
        %1801 = vmatpush1.msra.mxu0 0.0
        %1802 = vmatprep.subr.mxu0 0.0
        %1803 = vmatpush1.msra.mxu0 0.0
        %1804 = vmatprep.mubr.f32.mxu0 0.0
        %1805 = vmatmul.mubr.f32.gmra.mrb[0].mxu0 %v663
        %v1806 = vpop.f32.mrb[0].mxu0
        %v1807 = vadd.f32 %v1648, %v1806
        %v1808 = vpop.f32.mrb[0].mxu0
        %1809 = vmatprep.mubr.f32.mxu0 0.0
        %1810 = vmatmul.mubr.f32.gmra.mrb[0].mxu0 %v664
        %v1811 = vpop.f32.mrb[0].mxu0
        %v1812 = vadd.f32 %v1654, %v1811
        %v1813 = vpop.f32.mrb[0].mxu0
        %1814 = vmatprep.mubr.f32.mxu0 0.0
        %1815 = vmatmul.mubr.f32.gmra.mrb[0].mxu0 %v665
        %v1816 = vpop.f32.mrb[0].mxu0
        %v1817 = vadd.f32 %v1660, %v1816
        %v1818 = vpop.f32.mrb[0].mxu0
        %1819 = vmatprep.mubr.f32.mxu0 0.0
        %1820 = vmatmul.mubr.f32.gmra.mrb[0].mxu0 %v666
        %v1821 = vpop.f32.mrb[0].mxu0
        %v1822 = vadd.f32 %v1666, %v1821
        %v1823 = vpop.f32.mrb[0].mxu0
        %1824 = vmatprep.mubr.f32.mxu0 0.0
        %1825 = vmatmul.mubr.f32.gmra.mrb[0].mxu0 %v667
        %v1826 = vpop.f32.mrb[0].mxu0
        %v1827 = vadd.f32 %v1672, %v1826
        %v1828 = vpop.f32.mrb[0].mxu0
        %1829 = vmatprep.mubr.f32.mxu0 0.0
        %1830 = vmatmul.mubr.f32.gmra.mrb[0].mxu0 %v668
        %v1831 = vpop.f32.mrb[0].mxu0
        %v1832 = vadd.f32 %v1678, %v1831
        %v1833 = vpop.f32.mrb[0].mxu0
        %1834 = vmatprep.mubr.f32.mxu0 0.0
        %1835 = vmatmul.mubr.f32.gmra.mrb[0].mxu0 %v669
        %v1836 = vpop.f32.mrb[0].mxu0
        %v1837 = vadd.f32 %v1684, %v1836
        %v1838 = vpop.f32.mrb[0].mxu0
        %1839 = vmatprep.mubr.f32.mxu0 0.0
        %1840 = vmatmul.mubr.f32.gmra.mrb[0].mxu0 %v670
        %v1841 = vpop.f32.mrb[0].mxu0
        %v1842 = vadd.f32 %v1690, %v1841
        %v1843 = vpop.f32.mrb[0].mxu0
        %1844 = vmatprep.mubr.f32.mxu0 0.0
        %1845 = vmatmul.mubr.f32.gmra.mrb[0].mxu0 %v671
        %v1846 = vpop.f32.mrb[0].mxu0
        %v1847 = vadd.f32 %v1696, %v1846
        %v1848 = vpop.f32.mrb[0].mxu0
        %1849 = vmatprep.mubr.f32.mxu0 0.0
        %1850 = vmatmul.mubr.f32.gmra.mrb[0].mxu0 %v672
        %v1851 = vpop.f32.mrb[0].mxu0
        %v1852 = vadd.f32 %v1702, %v1851
        %v1853 = vpop.f32.mrb[0].mxu0
        %1854 = vmatprep.mubr.f32.mxu0 0.0
        %1855 = vmatmul.mubr.f32.gmra.mrb[0].mxu0 %v673
        %v1856 = vpop.f32.mrb[0].mxu0
        %v1857 = vadd.f32 %v1708, %v1856
        %v1858 = vpop.f32.mrb[0].mxu0
        %1859 = vmatprep.mubr.f32.mxu0 0.0
        %1860 = vmatmul.mubr.f32.gmra.mrb[0].mxu0 %v674
        %v1861 = vpop.f32.mrb[0].mxu0
        %v1862 = vadd.f32 %v1714, %v1861
        %v1863 = vpop.f32.mrb[0].mxu0
        %1864 = vmatprep.mubr.f32.mxu0 0.0
        %1865 = vmatmul.mubr.f32.gmra.mrb[0].mxu0 %v675
        %v1866 = vpop.f32.mrb[0].mxu0
        %v1867 = vadd.f32 %v1720, %v1866
        %v1868 = vpop.f32.mrb[0].mxu0
        %1869 = vmatprep.mubr.f32.mxu0 0.0
        %1870 = vmatmul.mubr.f32.gmra.mrb[0].mxu0 %v676
        %v1871 = vpop.f32.mrb[0].mxu0
        %v1872 = vadd.f32 %v1726, %v1871
        %v1873 = vpop.f32.mrb[0].mxu0
        %1874 = vmatprep.mubr.f32.mxu0 0.0
        %1875 = vmatmul.mubr.f32.gmra.mrb[0].mxu0 %v677
        %v1876 = vpop.f32.mrb[0].mxu0
        %v1877 = vadd.f32 %v1732, %v1876
        %v1878 = vpop.f32.mrb[0].mxu0
        %1879 = vmatprep.mubr.f32.mxu0 0.0
        %1880 = vmatmul.mubr.f32.gmra.mrb[0].mxu0 %v678
        %v1881 = vpop.f32.mrb[0].mxu0
        %v1882 = vadd.f32 %v1738, %v1881
        %v1883 = vpop.f32.mrb[0].mxu0
        %1884 = vdwg.mxu0
        %v1885 = vld [vmem:[%s8] sm:$0x1]
        %v1887 = vlaneseq
        %v1888 = vshrl.u32 %v1887, 7
        %v1889 = vsub.s32 0, %v1888
        %v1890 = vrot.slane %v1885, %v1889
        %v1892 = vadd.f32 %v1807, %v1890
        %v1893 = vadd.f32 %v1812, %v1890
        %v1894 = vadd.f32 %v1817, %v1890
        %v1895 = vadd.f32 %v1822, %v1890
        %v1896 = vadd.f32 %v1827, %v1890
        %v1897 = vadd.f32 %v1832, %v1890
        %v1898 = vadd.f32 %v1837, %v1890
        %v1899 = vadd.f32 %v1842, %v1890
        %v1900 = vadd.f32 %v1847, %v1890
        %v1901 = vadd.f32 %v1852, %v1890
        %v1902 = vadd.f32 %v1857, %v1890
        %v1903 = vadd.f32 %v1862, %v1890
        %v1904 = vadd.f32 %v1867, %v1890
        %v1905 = vadd.f32 %v1872, %v1890
        %v1906 = vadd.f32 %v1877, %v1890
        %v1907 = vadd.f32 %v1882, %v1890
        %v1908 = vld [vmem:[%s9] sm:$0x1]
        %v1909 = vld [vmem:[%s10] sm:$0x1]
        %1910 = vadd.xlane.f32.xlu0 %v1892
        %v1911 = vpop.xlane.xlu0 %1910
        %1912 = vadd.xlane.f32.xlu0 %v1893
        %v1913 = vpop.xlane.xlu0 %1912
        %1914 = vadd.xlane.f32.xlu0 %v1894
        %v1915 = vpop.xlane.xlu0 %1914
        %1916 = vadd.xlane.f32.xlu0 %v1895
        %v1917 = vpop.xlane.xlu0 %1916
        %1918 = vadd.xlane.f32.xlu0 %v1896
        %v1919 = vpop.xlane.xlu0 %1918
        %1920 = vadd.xlane.f32.xlu0 %v1897
        %v1921 = vpop.xlane.xlu0 %1920
        %1922 = vadd.xlane.f32.xlu0 %v1898
        %v1923 = vpop.xlane.xlu0 %1922
        %1924 = vadd.xlane.f32.xlu0 %v1899
        %v1925 = vpop.xlane.xlu0 %1924
        %1926 = vadd.xlane.f32.xlu0 %v1900
        %v1927 = vpop.xlane.xlu0 %1926
        %1928 = vadd.xlane.f32.xlu0 %v1901
        %v1929 = vpop.xlane.xlu0 %1928
        %1930 = vadd.xlane.f32.xlu0 %v1902
        %v1931 = vpop.xlane.xlu0 %1930
        %1932 = vadd.xlane.f32.xlu0 %v1903
        %v1933 = vpop.xlane.xlu0 %1932
        %1934 = vadd.xlane.f32.xlu0 %v1904
        %v1935 = vpop.xlane.xlu0 %1934
        %1936 = vadd.xlane.f32.xlu0 %v1905
        %v1937 = vpop.xlane.xlu0 %1936
        %1938 = vadd.xlane.f32.xlu0 %v1906
        %v1939 = vpop.xlane.xlu0 %1938
        %1940 = vadd.xlane.f32.xlu0 %v1907
        %v1941 = vpop.xlane.xlu0 %1940
        %v1942 = vrcp.pop 128.0
        %v1943 = vmul.f32 %v1911, %v1942
        %v1944 = vmul.f32 %v1913, %v1942
        %v1945 = vmul.f32 %v1915, %v1942
        %v1946 = vmul.f32 %v1917, %v1942
        %v1947 = vmul.f32 %v1919, %v1942
        %v1948 = vmul.f32 %v1921, %v1942
        %v1949 = vmul.f32 %v1923, %v1942
        %v1950 = vmul.f32 %v1925, %v1942
        %v1951 = vmul.f32 %v1927, %v1942
        %v1952 = vmul.f32 %v1929, %v1942
        %v1953 = vmul.f32 %v1931, %v1942
        %v1954 = vmul.f32 %v1933, %v1942
        %v1955 = vmul.f32 %v1935, %v1942
        %v1956 = vmul.f32 %v1937, %v1942
        %v1957 = vmul.f32 %v1939, %v1942
        %v1958 = vmul.f32 %v1941, %v1942
        %v1959 = vsub.f32 %v1892, %v1943
        %v1960 = vsub.f32 %v1893, %v1944
        %v1961 = vsub.f32 %v1894, %v1945
        %v1962 = vsub.f32 %v1895, %v1946
        %v1963 = vsub.f32 %v1896, %v1947
        %v1964 = vsub.f32 %v1897, %v1948
        %v1965 = vsub.f32 %v1898, %v1949
        %v1966 = vsub.f32 %v1899, %v1950
        %v1967 = vsub.f32 %v1900, %v1951
        %v1968 = vsub.f32 %v1901, %v1952
        %v1969 = vsub.f32 %v1902, %v1953
        %v1970 = vsub.f32 %v1903, %v1954
        %v1971 = vsub.f32 %v1904, %v1955
        %v1972 = vsub.f32 %v1905, %v1956
        %v1973 = vsub.f32 %v1906, %v1957
        %v1974 = vsub.f32 %v1907, %v1958
        %v1975 = vmul.f32 %v1959, %v1959
        %v1976 = vmul.f32 %v1960, %v1960
        %v1977 = vmul.f32 %v1961, %v1961
        %v1978 = vmul.f32 %v1962, %v1962
        %v1979 = vmul.f32 %v1963, %v1963
        %v1980 = vmul.f32 %v1964, %v1964
        %v1981 = vmul.f32 %v1965, %v1965
        %v1982 = vmul.f32 %v1966, %v1966
        %v1983 = vmul.f32 %v1967, %v1967
        %v1984 = vmul.f32 %v1968, %v1968
        %v1985 = vmul.f32 %v1969, %v1969
        %v1986 = vmul.f32 %v1970, %v1970
        %v1987 = vmul.f32 %v1971, %v1971
        %v1988 = vmul.f32 %v1972, %v1972
        %v1989 = vmul.f32 %v1973, %v1973
        %v1990 = vmul.f32 %v1974, %v1974
        %1991 = vadd.xlane.f32.xlu0 %v1975
        %v1992 = vpop.xlane.xlu0 %1991
        %1993 = vadd.xlane.f32.xlu0 %v1976
        %v1994 = vpop.xlane.xlu0 %1993
        %1995 = vadd.xlane.f32.xlu0 %v1977
        %v1996 = vpop.xlane.xlu0 %1995
        %1997 = vadd.xlane.f32.xlu0 %v1978
        %v1998 = vpop.xlane.xlu0 %1997
        %1999 = vadd.xlane.f32.xlu0 %v1979
        %v2000 = vpop.xlane.xlu0 %1999
        %2001 = vadd.xlane.f32.xlu0 %v1980
        %v2002 = vpop.xlane.xlu0 %2001
        %2003 = vadd.xlane.f32.xlu0 %v1981
        %v2004 = vpop.xlane.xlu0 %2003
        %2005 = vadd.xlane.f32.xlu0 %v1982
        %v2006 = vpop.xlane.xlu0 %2005
        %2007 = vadd.xlane.f32.xlu0 %v1983
        %v2008 = vpop.xlane.xlu0 %2007
        %2009 = vadd.xlane.f32.xlu0 %v1984
        %v2010 = vpop.xlane.xlu0 %2009
        %2011 = vadd.xlane.f32.xlu0 %v1985
        %v2012 = vpop.xlane.xlu0 %2011
        %2013 = vadd.xlane.f32.xlu0 %v1986
        %v2014 = vpop.xlane.xlu0 %2013
        %2015 = vadd.xlane.f32.xlu0 %v1987
        %v2016 = vpop.xlane.xlu0 %2015
        %2017 = vadd.xlane.f32.xlu0 %v1988
        %v2018 = vpop.xlane.xlu0 %2017
        %2019 = vadd.xlane.f32.xlu0 %v1989
        %v2020 = vpop.xlane.xlu0 %2019
        %2021 = vadd.xlane.f32.xlu0 %v1990
        %v2022 = vpop.xlane.xlu0 %2021
        %v2023 = vmul.f32 %v1992, %v1942
        %v2024 = vmul.f32 %v1994, %v1942
        %v2025 = vmul.f32 %v1996, %v1942
        %v2026 = vmul.f32 %v1998, %v1942
        %v2027 = vmul.f32 %v2000, %v1942
        %v2028 = vmul.f32 %v2002, %v1942
        %v2029 = vmul.f32 %v2004, %v1942
        %v2030 = vmul.f32 %v2006, %v1942
        %v2031 = vmul.f32 %v2008, %v1942
        %v2032 = vmul.f32 %v2010, %v1942
        %v2033 = vmul.f32 %v2012, %v1942
        %v2034 = vmul.f32 %v2014, %v1942
        %v2035 = vmul.f32 %v2016, %v1942
        %v2036 = vmul.f32 %v2018, %v1942
        %v2037 = vmul.f32 %v2020, %v1942
        %v2038 = vmul.f32 %v2022, %v1942
        %v2039 = vadd.f32 %v2023, 1e-05
        %v2040 = vadd.f32 %v2024, 1e-05
        %v2041 = vadd.f32 %v2025, 1e-05
        %v2042 = vadd.f32 %v2026, 1e-05
        %v2043 = vadd.f32 %v2027, 1e-05
        %v2044 = vadd.f32 %v2028, 1e-05
        %v2045 = vadd.f32 %v2029, 1e-05
        %v2046 = vadd.f32 %v2030, 1e-05
        %v2047 = vadd.f32 %v2031, 1e-05
        %v2048 = vadd.f32 %v2032, 1e-05
        %v2049 = vadd.f32 %v2033, 1e-05
        %v2050 = vadd.f32 %v2034, 1e-05
        %v2051 = vadd.f32 %v2035, 1e-05
        %v2052 = vadd.f32 %v2036, 1e-05
        %v2053 = vadd.f32 %v2037, 1e-05
        %v2054 = vadd.f32 %v2038, 1e-05
        %v2055 = vrsqrt.pop %v2039
        %v2056 = vrsqrt.pop %v2040
        %v2057 = vrsqrt.pop %v2041
        %v2058 = vrsqrt.pop %v2042
        %v2059 = vrsqrt.pop %v2043
        %v2060 = vrsqrt.pop %v2044
        %v2061 = vrsqrt.pop %v2045
        %v2062 = vrsqrt.pop %v2046
        %v2063 = vrsqrt.pop %v2047
        %v2064 = vrsqrt.pop %v2048
        %v2065 = vrsqrt.pop %v2049
        %v2066 = vrsqrt.pop %v2050
        %v2067 = vrsqrt.pop %v2051
        %v2068 = vrsqrt.pop %v2052
        %v2069 = vrsqrt.pop %v2053
        %v2070 = vrsqrt.pop %v2054
        %v2071 = vmul.f32 %v1959, %v2055
        %v2072 = vmul.f32 %v1960, %v2056
        %v2073 = vmul.f32 %v1961, %v2057
        %v2074 = vmul.f32 %v1962, %v2058
        %v2075 = vmul.f32 %v1963, %v2059
        %v2076 = vmul.f32 %v1964, %v2060
        %v2077 = vmul.f32 %v1965, %v2061
        %v2078 = vmul.f32 %v1966, %v2062
        %v2079 = vmul.f32 %v1967, %v2063
        %v2080 = vmul.f32 %v1968, %v2064
        %v2081 = vmul.f32 %v1969, %v2065
        %v2082 = vmul.f32 %v1970, %v2066
        %v2083 = vmul.f32 %v1971, %v2067
        %v2084 = vmul.f32 %v1972, %v2068
        %v2085 = vmul.f32 %v1973, %v2069
        %v2086 = vmul.f32 %v1974, %v2070
        %v2088 = vlaneseq
        %v2089 = vshrl.u32 %v2088, 7
        %v2090 = vsub.s32 0, %v2089
        %v2091 = vrot.slane %v1908, %v2090
        %v2093 = vmul.f32 %v2071, %v2091
        %v2094 = vmul.f32 %v2072, %v2091
        %v2095 = vmul.f32 %v2073, %v2091
        %v2096 = vmul.f32 %v2074, %v2091
        %v2097 = vmul.f32 %v2075, %v2091
        %v2098 = vmul.f32 %v2076, %v2091
        %v2099 = vmul.f32 %v2077, %v2091
        %v2100 = vmul.f32 %v2078, %v2091
        %v2101 = vmul.f32 %v2079, %v2091
        %v2102 = vmul.f32 %v2080, %v2091
        %v2103 = vmul.f32 %v2081, %v2091
        %v2104 = vmul.f32 %v2082, %v2091
        %v2105 = vmul.f32 %v2083, %v2091
        %v2106 = vmul.f32 %v2084, %v2091
        %v2107 = vmul.f32 %v2085, %v2091
        %v2108 = vmul.f32 %v2086, %v2091
        %v2110 = vlaneseq
        %v2111 = vshrl.u32 %v2110, 7
        %v2112 = vsub.s32 0, %v2111
        %v2113 = vrot.slane %v1909, %v2112
        %v2115 = vadd.f32 %v2093, %v2113
        %v2116 = vadd.f32 %v2094, %v2113
        %v2117 = vadd.f32 %v2095, %v2113
        %v2118 = vadd.f32 %v2096, %v2113
        %v2119 = vadd.f32 %v2097, %v2113
        %v2120 = vadd.f32 %v2098, %v2113
        %v2121 = vadd.f32 %v2099, %v2113
        %v2122 = vadd.f32 %v2100, %v2113
        %v2123 = vadd.f32 %v2101, %v2113
        %v2124 = vadd.f32 %v2102, %v2113
        %v2125 = vadd.f32 %v2103, %v2113
        %v2126 = vadd.f32 %v2104, %v2113
        %v2127 = vadd.f32 %v2105, %v2113
        %v2128 = vadd.f32 %v2106, %v2113
        %v2129 = vadd.f32 %v2107, %v2113
        %v2130 = vadd.f32 %v2108, %v2113
        %vm2131 = vcmp.gt.f32.partialorder %v2115, 0.0
        %vm2132 = vcmp.gt.f32.partialorder %v2116, 0.0
        %vm2133 = vcmp.gt.f32.partialorder %v2117, 0.0
        %vm2134 = vcmp.gt.f32.partialorder %v2118, 0.0
        %vm2135 = vcmp.gt.f32.partialorder %v2119, 0.0
        %vm2136 = vcmp.gt.f32.partialorder %v2120, 0.0
        %vm2137 = vcmp.gt.f32.partialorder %v2121, 0.0
        %vm2138 = vcmp.gt.f32.partialorder %v2122, 0.0
        %vm2139 = vcmp.gt.f32.partialorder %v2123, 0.0
        %vm2140 = vcmp.gt.f32.partialorder %v2124, 0.0
        %vm2141 = vcmp.gt.f32.partialorder %v2125, 0.0
        %vm2142 = vcmp.gt.f32.partialorder %v2126, 0.0
        %vm2143 = vcmp.gt.f32.partialorder %v2127, 0.0
        %vm2144 = vcmp.gt.f32.partialorder %v2128, 0.0
        %vm2145 = vcmp.gt.f32.partialorder %v2129, 0.0
        %vm2146 = vcmp.gt.f32.partialorder %v2130, 0.0
        %v2147 = vmul.f32 %v2115, 0.01
        %v2148 = vmul.f32 %v2116, 0.01
        %v2149 = vmul.f32 %v2117, 0.01
        %v2150 = vmul.f32 %v2118, 0.01
        %v2151 = vmul.f32 %v2119, 0.01
        %v2152 = vmul.f32 %v2120, 0.01
        %v2153 = vmul.f32 %v2121, 0.01
        %v2154 = vmul.f32 %v2122, 0.01
        %v2155 = vmul.f32 %v2123, 0.01
        %v2156 = vmul.f32 %v2124, 0.01
        %v2157 = vmul.f32 %v2125, 0.01
        %v2158 = vmul.f32 %v2126, 0.01
        %v2159 = vmul.f32 %v2127, 0.01
        %v2160 = vmul.f32 %v2128, 0.01
        %v2161 = vmul.f32 %v2129, 0.01
        %v2162 = vmul.f32 %v2130, 0.01
        %v2163 = vsel %vm2131, %v2115, %v2147
        %v2164 = vsel %vm2132, %v2116, %v2148
        %v2165 = vsel %vm2133, %v2117, %v2149
        %v2166 = vsel %vm2134, %v2118, %v2150
        %v2167 = vsel %vm2135, %v2119, %v2151
        %v2168 = vsel %vm2136, %v2120, %v2152
        %v2169 = vsel %vm2137, %v2121, %v2153
        %v2170 = vsel %vm2138, %v2122, %v2154
        %v2171 = vsel %vm2139, %v2123, %v2155
        %v2172 = vsel %vm2140, %v2124, %v2156
        %v2173 = vsel %vm2141, %v2125, %v2157
        %v2174 = vsel %vm2142, %v2126, %v2158
        %v2175 = vsel %vm2143, %v2127, %v2159
        %v2176 = vsel %vm2144, %v2128, %v2160
        %v2177 = vsel %vm2145, %v2129, %v2161
        %v2178 = vsel %vm2146, %v2130, %v2162
        %v2179 = vld [vmem:[%s11] sm:$0xff]
        %v2180 = vld [vmem:[%s11 + $0x8] sm:$0xff]
        %v2181 = vld [vmem:[%s11 + $0x10] sm:$0xff]
        %v2182 = vld [vmem:[%s11 + $0x18] sm:$0xff]
        %v2183 = vld [vmem:[%s11 + $0x20] sm:$0xff]
        %v2184 = vld [vmem:[%s11 + $0x28] sm:$0xff]
        %v2185 = vld [vmem:[%s11 + $0x30] sm:$0xff]
        %v2186 = vld [vmem:[%s11 + $0x38] sm:$0xff]
        %v2187 = vld [vmem:[%s11 + $0x40] sm:$0xff]
        %v2188 = vld [vmem:[%s11 + $0x48] sm:$0xff]
        %v2189 = vld [vmem:[%s11 + $0x50] sm:$0xff]
        %v2190 = vld [vmem:[%s11 + $0x58] sm:$0xff]
        %v2191 = vld [vmem:[%s11 + $0x60] sm:$0xff]
        %v2192 = vld [vmem:[%s11 + $0x68] sm:$0xff]
        %v2193 = vld [vmem:[%s11 + $0x70] sm:$0xff]
        %v2194 = vld [vmem:[%s11 + $0x78] sm:$0xff]
        %v2195 = vld [vmem:[%s11 + $0x80] sm:$0xff]
        %v2196 = vld [vmem:[%s11 + $0x88] sm:$0xff]
        %v2197 = vld [vmem:[%s11 + $0x90] sm:$0xff]
        %v2198 = vld [vmem:[%s11 + $0x98] sm:$0xff]
        %v2199 = vld [vmem:[%s11 + $0xa0] sm:$0xff]
        %v2200 = vld [vmem:[%s11 + $0xa8] sm:$0xff]
        %v2201 = vld [vmem:[%s11 + $0xb0] sm:$0xff]
        %v2202 = vld [vmem:[%s11 + $0xb8] sm:$0xff]
        %v2203 = vld [vmem:[%s11 + $0xc0] sm:$0xff]
        %v2204 = vld [vmem:[%s11 + $0xc8] sm:$0xff]
        %v2205 = vld [vmem:[%s11 + $0xd0] sm:$0xff]
        %v2206 = vld [vmem:[%s11 + $0xd8] sm:$0xff]
        %v2207 = vld [vmem:[%s11 + $0xe0] sm:$0xff]
        %v2208 = vld [vmem:[%s11 + $0xe8] sm:$0xff]
        %v2209 = vld [vmem:[%s11 + $0xf0] sm:$0xff]
        %v2210 = vld [vmem:[%s11 + $0xf8] sm:$0xff]
        %v2211 = vld [vmem:[%s11 + $0x100] sm:$0xff]
        %v2212 = vld [vmem:[%s11 + $0x108] sm:$0xff]
        %v2213 = vld [vmem:[%s11 + $0x110] sm:$0xff]
        %v2214 = vld [vmem:[%s11 + $0x118] sm:$0xff]
        %v2215 = vld [vmem:[%s11 + $0x120] sm:$0xff]
        %v2216 = vld [vmem:[%s11 + $0x128] sm:$0xff]
        %v2217 = vld [vmem:[%s11 + $0x130] sm:$0xff]
        %v2218 = vld [vmem:[%s11 + $0x138] sm:$0xff]
        %v2219 = vld [vmem:[%s11 + $0x140] sm:$0xff]
        %v2220 = vld [vmem:[%s11 + $0x148] sm:$0xff]
        %v2221 = vld [vmem:[%s11 + $0x150] sm:$0xff]
        %v2222 = vld [vmem:[%s11 + $0x158] sm:$0xff]
        %v2223 = vld [vmem:[%s11 + $0x160] sm:$0xff]
        %v2224 = vld [vmem:[%s11 + $0x168] sm:$0xff]
        %v2225 = vld [vmem:[%s11 + $0x170] sm:$0xff]
        %v2226 = vld [vmem:[%s11 + $0x178] sm:$0xff]
        %v2227 = vld [vmem:[%s11 + $0x180] sm:$0xff]
        %v2228 = vld [vmem:[%s11 + $0x188] sm:$0xff]
        %v2229 = vld [vmem:[%s11 + $0x190] sm:$0xff]
        %v2230 = vld [vmem:[%s11 + $0x198] sm:$0xff]
        %v2231 = vld [vmem:[%s11 + $0x1a0] sm:$0xff]
        %v2232 = vld [vmem:[%s11 + $0x1a8] sm:$0xff]
        %v2233 = vld [vmem:[%s11 + $0x1b0] sm:$0xff]
        %v2234 = vld [vmem:[%s11 + $0x1b8] sm:$0xff]
        %v2235 = vld [vmem:[%s11 + $0x1c0] sm:$0xff]
        %v2236 = vld [vmem:[%s11 + $0x1c8] sm:$0xff]
        %v2237 = vld [vmem:[%s11 + $0x1d0] sm:$0xff]
        %v2238 = vld [vmem:[%s11 + $0x1d8] sm:$0xff]
        %v2239 = vld [vmem:[%s11 + $0x1e0] sm:$0xff]
        %v2240 = vld [vmem:[%s11 + $0x1e8] sm:$0xff]
        %v2241 = vld [vmem:[%s11 + $0x1f0] sm:$0xff]
        %v2242 = vld [vmem:[%s11 + $0x1f8] sm:$0xff]
        %2243 = vmatprep.subr.mxu0 %v2180
        %2244 = vmatpush1.msra.mxu0 %v2179
        %2245 = vmatprep.subr.mxu0 %v2184
        %2246 = vmatpush1.msra.mxu0 %v2183
        %2247 = vmatprep.subr.mxu0 %v2188
        %2248 = vmatpush1.msra.mxu0 %v2187
        %2249 = vmatprep.subr.mxu0 %v2192
        %2250 = vmatpush1.msra.mxu0 %v2191
        %2251 = vmatprep.subr.mxu0 %v2196
        %2252 = vmatpush1.msra.mxu0 %v2195
        %2253 = vmatprep.subr.mxu0 %v2200
        %2254 = vmatpush1.msra.mxu0 %v2199
        %2255 = vmatprep.subr.mxu0 %v2204
        %2256 = vmatpush1.msra.mxu0 %v2203
        %2257 = vmatprep.subr.mxu0 %v2208
        %2258 = vmatpush1.msra.mxu0 %v2207
        %2259 = vmatprep.subr.mxu0 %v2212
        %2260 = vmatpush1.msra.mxu0 %v2211
        %2261 = vmatprep.subr.mxu0 %v2216
        %2262 = vmatpush1.msra.mxu0 %v2215
        %2263 = vmatprep.subr.mxu0 %v2220
        %2264 = vmatpush1.msra.mxu0 %v2219
        %2265 = vmatprep.subr.mxu0 %v2224
        %2266 = vmatpush1.msra.mxu0 %v2223
        %2267 = vmatprep.subr.mxu0 %v2228
        %2268 = vmatpush1.msra.mxu0 %v2227
        %2269 = vmatprep.subr.mxu0 %v2232
        %2270 = vmatpush1.msra.mxu0 %v2231
        %2271 = vmatprep.subr.mxu0 %v2236
        %2272 = vmatpush1.msra.mxu0 %v2235
        %2273 = vmatprep.subr.mxu0 %v2240
        %2274 = vmatpush1.msra.mxu0 %v2239
        %2275 = vmatprep.subr.mxu0 0.0
        %2276 = vmatpush1.msra.mxu0 0.0
        %2277 = vmatprep.subr.mxu0 0.0
        %2278 = vmatpush1.msra.mxu0 0.0
        %2279 = vmatprep.subr.mxu0 0.0
        %2280 = vmatpush1.msra.mxu0 0.0
        %2281 = vmatprep.subr.mxu0 0.0
        %2282 = vmatpush1.msra.mxu0 0.0
        %2283 = vmatprep.subr.mxu0 0.0
        %2284 = vmatpush1.msra.mxu0 0.0
        %2285 = vmatprep.subr.mxu0 0.0
        %2286 = vmatpush1.msra.mxu0 0.0
        %2287 = vmatprep.subr.mxu0 0.0
        %2288 = vmatpush1.msra.mxu0 0.0
        %2289 = vmatprep.subr.mxu0 0.0
        %2290 = vmatpush1.msra.mxu0 0.0
        %2291 = vmatprep.subr.mxu0 0.0
        %2292 = vmatpush1.msra.mxu0 0.0
        %2293 = vmatprep.subr.mxu0 0.0
        %2294 = vmatpush1.msra.mxu0 0.0
        %2295 = vmatprep.subr.mxu0 0.0
        %2296 = vmatpush1.msra.mxu0 0.0
        %2297 = vmatprep.subr.mxu0 0.0
        %2298 = vmatpush1.msra.mxu0 0.0
        %2299 = vmatprep.subr.mxu0 0.0
        %2300 = vmatpush1.msra.mxu0 0.0
        %2301 = vmatprep.subr.mxu0 0.0
        %2302 = vmatpush1.msra.mxu0 0.0
        %2303 = vmatprep.subr.mxu0 0.0
        %2304 = vmatpush1.msra.mxu0 0.0
        %2305 = vmatprep.subr.mxu0 0.0
        %2306 = vmatpush1.msra.mxu0 0.0
        %2307 = vmatprep.mubr.f32.mxu0 0.0
        %2308 = vmatmul.mubr.f32.gmra.mrb[0].mxu0 %v2163
        %v2309 = vpop.f32.mrb[0].mxu0
        %v2310 = vadd.f32 0.0, %v2309
        %v2311 = vpop.f32.mrb[0].mxu0
        %v2312 = vadd.f32 0.0, %v2311
        %2313 = vmatprep.mubr.f32.mxu0 0.0
        %2314 = vmatmul.mubr.f32.gmra.mrb[0].mxu0 %v2164
        %v2315 = vpop.f32.mrb[0].mxu0
        %v2316 = vadd.f32 0.0, %v2315
        %v2317 = vpop.f32.mrb[0].mxu0
        %v2318 = vadd.f32 0.0, %v2317
        %2319 = vmatprep.mubr.f32.mxu0 0.0
        %2320 = vmatmul.mubr.f32.gmra.mrb[0].mxu0 %v2165
        %v2321 = vpop.f32.mrb[0].mxu0
        %v2322 = vadd.f32 0.0, %v2321
        %v2323 = vpop.f32.mrb[0].mxu0
        %v2324 = vadd.f32 0.0, %v2323
        %2325 = vmatprep.mubr.f32.mxu0 0.0
        %2326 = vmatmul.mubr.f32.gmra.mrb[0].mxu0 %v2166
        %v2327 = vpop.f32.mrb[0].mxu0
        %v2328 = vadd.f32 0.0, %v2327
        %v2329 = vpop.f32.mrb[0].mxu0
        %v2330 = vadd.f32 0.0, %v2329
        %2331 = vmatprep.mubr.f32.mxu0 0.0
        %2332 = vmatmul.mubr.f32.gmra.mrb[0].mxu0 %v2167
        %v2333 = vpop.f32.mrb[0].mxu0
        %v2334 = vadd.f32 0.0, %v2333
        %v2335 = vpop.f32.mrb[0].mxu0
        %v2336 = vadd.f32 0.0, %v2335
        %2337 = vmatprep.mubr.f32.mxu0 0.0
        %2338 = vmatmul.mubr.f32.gmra.mrb[0].mxu0 %v2168
        %v2339 = vpop.f32.mrb[0].mxu0
        %v2340 = vadd.f32 0.0, %v2339
        %v2341 = vpop.f32.mrb[0].mxu0
        %v2342 = vadd.f32 0.0, %v2341
        %2343 = vmatprep.mubr.f32.mxu0 0.0
        %2344 = vmatmul.mubr.f32.gmra.mrb[0].mxu0 %v2169
        %v2345 = vpop.f32.mrb[0].mxu0
        %v2346 = vadd.f32 0.0, %v2345
        %v2347 = vpop.f32.mrb[0].mxu0
        %v2348 = vadd.f32 0.0, %v2347
        %2349 = vmatprep.mubr.f32.mxu0 0.0
        %2350 = vmatmul.mubr.f32.gmra.mrb[0].mxu0 %v2170
        %v2351 = vpop.f32.mrb[0].mxu0
        %v2352 = vadd.f32 0.0, %v2351
        %v2353 = vpop.f32.mrb[0].mxu0
        %v2354 = vadd.f32 0.0, %v2353
        %2355 = vmatprep.mubr.f32.mxu0 0.0
        %2356 = vmatmul.mubr.f32.gmra.mrb[0].mxu0 %v2171
        %v2357 = vpop.f32.mrb[0].mxu0
        %v2358 = vadd.f32 0.0, %v2357
        %v2359 = vpop.f32.mrb[0].mxu0
        %v2360 = vadd.f32 0.0, %v2359
        %2361 = vmatprep.mubr.f32.mxu0 0.0
        %2362 = vmatmul.mubr.f32.gmra.mrb[0].mxu0 %v2172
        %v2363 = vpop.f32.mrb[0].mxu0
        %v2364 = vadd.f32 0.0, %v2363
        %v2365 = vpop.f32.mrb[0].mxu0
        %v2366 = vadd.f32 0.0, %v2365
        %2367 = vmatprep.mubr.f32.mxu0 0.0
        %2368 = vmatmul.mubr.f32.gmra.mrb[0].mxu0 %v2173
        %v2369 = vpop.f32.mrb[0].mxu0
        %v2370 = vadd.f32 0.0, %v2369
        %v2371 = vpop.f32.mrb[0].mxu0
        %v2372 = vadd.f32 0.0, %v2371
        %2373 = vmatprep.mubr.f32.mxu0 0.0
        %2374 = vmatmul.mubr.f32.gmra.mrb[0].mxu0 %v2174
        %v2375 = vpop.f32.mrb[0].mxu0
        %v2376 = vadd.f32 0.0, %v2375
        %v2377 = vpop.f32.mrb[0].mxu0
        %v2378 = vadd.f32 0.0, %v2377
        %2379 = vmatprep.mubr.f32.mxu0 0.0
        %2380 = vmatmul.mubr.f32.gmra.mrb[0].mxu0 %v2175
        %v2381 = vpop.f32.mrb[0].mxu0
        %v2382 = vadd.f32 0.0, %v2381
        %v2383 = vpop.f32.mrb[0].mxu0
        %v2384 = vadd.f32 0.0, %v2383
        %2385 = vmatprep.mubr.f32.mxu0 0.0
        %2386 = vmatmul.mubr.f32.gmra.mrb[0].mxu0 %v2176
        %v2387 = vpop.f32.mrb[0].mxu0
        %v2388 = vadd.f32 0.0, %v2387
        %v2389 = vpop.f32.mrb[0].mxu0
        %v2390 = vadd.f32 0.0, %v2389
        %2391 = vmatprep.mubr.f32.mxu0 0.0
        %2392 = vmatmul.mubr.f32.gmra.mrb[0].mxu0 %v2177
        %v2393 = vpop.f32.mrb[0].mxu0
        %v2394 = vadd.f32 0.0, %v2393
        %v2395 = vpop.f32.mrb[0].mxu0
        %v2396 = vadd.f32 0.0, %v2395
        %2397 = vmatprep.mubr.f32.mxu0 0.0
        %2398 = vmatmul.mubr.f32.gmra.mrb[0].mxu0 %v2178
        %v2399 = vpop.f32.mrb[0].mxu0
        %v2400 = vadd.f32 0.0, %v2399
        %v2401 = vpop.f32.mrb[0].mxu0
        %v2402 = vadd.f32 0.0, %v2401
        %2403 = vdwg.mxu0
        %2404 = vmatprep.subr.mxu0 %v2182
        %2405 = vmatpush1.msra.mxu0 %v2181
        %2406 = vmatprep.subr.mxu0 %v2186
        %2407 = vmatpush1.msra.mxu0 %v2185
        %2408 = vmatprep.subr.mxu0 %v2190
        %2409 = vmatpush1.msra.mxu0 %v2189
        %2410 = vmatprep.subr.mxu0 %v2194
        %2411 = vmatpush1.msra.mxu0 %v2193
        %2412 = vmatprep.subr.mxu0 %v2198
        %2413 = vmatpush1.msra.mxu0 %v2197
        %2414 = vmatprep.subr.mxu0 %v2202
        %2415 = vmatpush1.msra.mxu0 %v2201
        %2416 = vmatprep.subr.mxu0 %v2206
        %2417 = vmatpush1.msra.mxu0 %v2205
        %2418 = vmatprep.subr.mxu0 %v2210
        %2419 = vmatpush1.msra.mxu0 %v2209
        %2420 = vmatprep.subr.mxu0 %v2214
        %2421 = vmatpush1.msra.mxu0 %v2213
        %2422 = vmatprep.subr.mxu0 %v2218
        %2423 = vmatpush1.msra.mxu0 %v2217
        %2424 = vmatprep.subr.mxu0 %v2222
        %2425 = vmatpush1.msra.mxu0 %v2221
        %2426 = vmatprep.subr.mxu0 %v2226
        %2427 = vmatpush1.msra.mxu0 %v2225
        %2428 = vmatprep.subr.mxu0 %v2230
        %2429 = vmatpush1.msra.mxu0 %v2229
        %2430 = vmatprep.subr.mxu0 %v2234
        %2431 = vmatpush1.msra.mxu0 %v2233
        %2432 = vmatprep.subr.mxu0 %v2238
        %2433 = vmatpush1.msra.mxu0 %v2237
        %2434 = vmatprep.subr.mxu0 %v2242
        %2435 = vmatpush1.msra.mxu0 %v2241
        %2436 = vmatprep.subr.mxu0 0.0
        %2437 = vmatpush1.msra.mxu0 0.0
        %2438 = vmatprep.subr.mxu0 0.0
        %2439 = vmatpush1.msra.mxu0 0.0
        %2440 = vmatprep.subr.mxu0 0.0
        %2441 = vmatpush1.msra.mxu0 0.0
        %2442 = vmatprep.subr.mxu0 0.0
        %2443 = vmatpush1.msra.mxu0 0.0
        %2444 = vmatprep.subr.mxu0 0.0
        %2445 = vmatpush1.msra.mxu0 0.0
        %2446 = vmatprep.subr.mxu0 0.0
        %2447 = vmatpush1.msra.mxu0 0.0
        %2448 = vmatprep.subr.mxu0 0.0
        %2449 = vmatpush1.msra.mxu0 0.0
        %2450 = vmatprep.subr.mxu0 0.0
        %2451 = vmatpush1.msra.mxu0 0.0
        %2452 = vmatprep.subr.mxu0 0.0
        %2453 = vmatpush1.msra.mxu0 0.0
        %2454 = vmatprep.subr.mxu0 0.0
        %2455 = vmatpush1.msra.mxu0 0.0
        %2456 = vmatprep.subr.mxu0 0.0
        %2457 = vmatpush1.msra.mxu0 0.0
        %2458 = vmatprep.subr.mxu0 0.0
        %2459 = vmatpush1.msra.mxu0 0.0
        %2460 = vmatprep.subr.mxu0 0.0
        %2461 = vmatpush1.msra.mxu0 0.0
        %2462 = vmatprep.subr.mxu0 0.0
        %2463 = vmatpush1.msra.mxu0 0.0
        %2464 = vmatprep.subr.mxu0 0.0
        %2465 = vmatpush1.msra.mxu0 0.0
        %2466 = vmatprep.subr.mxu0 0.0
        %2467 = vmatpush1.msra.mxu0 0.0
        %2468 = vmatprep.mubr.f32.mxu0 0.0
        %2469 = vmatmul.mubr.f32.gmra.mrb[0].mxu0 %v2163
        %v2470 = vpop.f32.mrb[0].mxu0
        %v2471 = vadd.f32 0.0, %v2470
        %v2472 = vpop.f32.mrb[0].mxu0
        %v2473 = vadd.f32 0.0, %v2472
        %2474 = vmatprep.mubr.f32.mxu0 0.0
        %2475 = vmatmul.mubr.f32.gmra.mrb[0].mxu0 %v2164
        %v2476 = vpop.f32.mrb[0].mxu0
        %v2477 = vadd.f32 0.0, %v2476
        %v2478 = vpop.f32.mrb[0].mxu0
        %v2479 = vadd.f32 0.0, %v2478
        %2480 = vmatprep.mubr.f32.mxu0 0.0
        %2481 = vmatmul.mubr.f32.gmra.mrb[0].mxu0 %v2165
        %v2482 = vpop.f32.mrb[0].mxu0
        %v2483 = vadd.f32 0.0, %v2482
        %v2484 = vpop.f32.mrb[0].mxu0
        %v2485 = vadd.f32 0.0, %v2484
        %2486 = vmatprep.mubr.f32.mxu0 0.0
        %2487 = vmatmul.mubr.f32.gmra.mrb[0].mxu0 %v2166
        %v2488 = vpop.f32.mrb[0].mxu0
        %v2489 = vadd.f32 0.0, %v2488
        %v2490 = vpop.f32.mrb[0].mxu0
        %v2491 = vadd.f32 0.0, %v2490
        %2492 = vmatprep.mubr.f32.mxu0 0.0
        %2493 = vmatmul.mubr.f32.gmra.mrb[0].mxu0 %v2167
        %v2494 = vpop.f32.mrb[0].mxu0
        %v2495 = vadd.f32 0.0, %v2494
        %v2496 = vpop.f32.mrb[0].mxu0
        %v2497 = vadd.f32 0.0, %v2496
        %2498 = vmatprep.mubr.f32.mxu0 0.0
        %2499 = vmatmul.mubr.f32.gmra.mrb[0].mxu0 %v2168
        %v2500 = vpop.f32.mrb[0].mxu0
        %v2501 = vadd.f32 0.0, %v2500
        %v2502 = vpop.f32.mrb[0].mxu0
        %v2503 = vadd.f32 0.0, %v2502
        %2504 = vmatprep.mubr.f32.mxu0 0.0
        %2505 = vmatmul.mubr.f32.gmra.mrb[0].mxu0 %v2169
        %v2506 = vpop.f32.mrb[0].mxu0
        %v2507 = vadd.f32 0.0, %v2506
        %v2508 = vpop.f32.mrb[0].mxu0
        %v2509 = vadd.f32 0.0, %v2508
        %2510 = vmatprep.mubr.f32.mxu0 0.0
        %2511 = vmatmul.mubr.f32.gmra.mrb[0].mxu0 %v2170
        %v2512 = vpop.f32.mrb[0].mxu0
        %v2513 = vadd.f32 0.0, %v2512
        %v2514 = vpop.f32.mrb[0].mxu0
        %v2515 = vadd.f32 0.0, %v2514
        %2516 = vmatprep.mubr.f32.mxu0 0.0
        %2517 = vmatmul.mubr.f32.gmra.mrb[0].mxu0 %v2171
        %v2518 = vpop.f32.mrb[0].mxu0
        %v2519 = vadd.f32 0.0, %v2518
        %v2520 = vpop.f32.mrb[0].mxu0
        %v2521 = vadd.f32 0.0, %v2520
        %2522 = vmatprep.mubr.f32.mxu0 0.0
        %2523 = vmatmul.mubr.f32.gmra.mrb[0].mxu0 %v2172
        %v2524 = vpop.f32.mrb[0].mxu0
        %v2525 = vadd.f32 0.0, %v2524
        %v2526 = vpop.f32.mrb[0].mxu0
        %v2527 = vadd.f32 0.0, %v2526
        %2528 = vmatprep.mubr.f32.mxu0 0.0
        %2529 = vmatmul.mubr.f32.gmra.mrb[0].mxu0 %v2173
        %v2530 = vpop.f32.mrb[0].mxu0
        %v2531 = vadd.f32 0.0, %v2530
        %v2532 = vpop.f32.mrb[0].mxu0
        %v2533 = vadd.f32 0.0, %v2532
        %2534 = vmatprep.mubr.f32.mxu0 0.0
        %2535 = vmatmul.mubr.f32.gmra.mrb[0].mxu0 %v2174
        %v2536 = vpop.f32.mrb[0].mxu0
        %v2537 = vadd.f32 0.0, %v2536
        %v2538 = vpop.f32.mrb[0].mxu0
        %v2539 = vadd.f32 0.0, %v2538
        %2540 = vmatprep.mubr.f32.mxu0 0.0
        %2541 = vmatmul.mubr.f32.gmra.mrb[0].mxu0 %v2175
        %v2542 = vpop.f32.mrb[0].mxu0
        %v2543 = vadd.f32 0.0, %v2542
        %v2544 = vpop.f32.mrb[0].mxu0
        %v2545 = vadd.f32 0.0, %v2544
        %2546 = vmatprep.mubr.f32.mxu0 0.0
        %2547 = vmatmul.mubr.f32.gmra.mrb[0].mxu0 %v2176
        %v2548 = vpop.f32.mrb[0].mxu0
        %v2549 = vadd.f32 0.0, %v2548
        %v2550 = vpop.f32.mrb[0].mxu0
        %v2551 = vadd.f32 0.0, %v2550
        %2552 = vmatprep.mubr.f32.mxu0 0.0
        %2553 = vmatmul.mubr.f32.gmra.mrb[0].mxu0 %v2177
        %v2554 = vpop.f32.mrb[0].mxu0
        %v2555 = vadd.f32 0.0, %v2554
        %v2556 = vpop.f32.mrb[0].mxu0
        %v2557 = vadd.f32 0.0, %v2556
        %2558 = vmatprep.mubr.f32.mxu0 0.0
        %2559 = vmatmul.mubr.f32.gmra.mrb[0].mxu0 %v2178
        %v2560 = vpop.f32.mrb[0].mxu0
        %v2561 = vadd.f32 0.0, %v2560
        %v2562 = vpop.f32.mrb[0].mxu0
        %v2563 = vadd.f32 0.0, %v2562
        %2564 = vdwg.mxu0
        %2565 = vmatprep.subr.mxu0 %v2312
        %2566 = vmatpush1.msra.mxu0 %v2310
        %2567 = vmatprep.subr.mxu0 %v2318
        %2568 = vmatpush1.msra.mxu0 %v2316
        %2569 = vmatprep.subr.mxu0 %v2324
        %2570 = vmatpush1.msra.mxu0 %v2322
        %2571 = vmatprep.subr.mxu0 %v2330
        %2572 = vmatpush1.msra.mxu0 %v2328
        %2573 = vmatprep.subr.mxu0 %v2336
        %2574 = vmatpush1.msra.mxu0 %v2334
        %2575 = vmatprep.subr.mxu0 %v2342
        %2576 = vmatpush1.msra.mxu0 %v2340
        %2577 = vmatprep.subr.mxu0 %v2348
        %2578 = vmatpush1.msra.mxu0 %v2346
        %2579 = vmatprep.subr.mxu0 %v2354
        %2580 = vmatpush1.msra.mxu0 %v2352
        %2581 = vmatprep.subr.mxu0 %v2360
        %2582 = vmatpush1.msra.mxu0 %v2358
        %2583 = vmatprep.subr.mxu0 %v2366
        %2584 = vmatpush1.msra.mxu0 %v2364
        %2585 = vmatprep.subr.mxu0 %v2372
        %2586 = vmatpush1.msra.mxu0 %v2370
        %2587 = vmatprep.subr.mxu0 %v2378
        %2588 = vmatpush1.msra.mxu0 %v2376
        %2589 = vmatprep.subr.mxu0 %v2384
        %2590 = vmatpush1.msra.mxu0 %v2382
        %2591 = vmatprep.subr.mxu0 %v2390
        %2592 = vmatpush1.msra.mxu0 %v2388
        %2593 = vmatprep.subr.mxu0 %v2396
        %2594 = vmatpush1.msra.mxu0 %v2394
        %2595 = vmatprep.subr.mxu0 %v2402
        %2596 = vmatpush1.msra.mxu0 %v2400
        %2597 = vmatprep.subr.mxu0 0.0
        %2598 = vmatpush1.msra.mxu0 0.0
        %2599 = vmatprep.subr.mxu0 0.0
        %2600 = vmatpush1.msra.mxu0 0.0
        %2601 = vmatprep.subr.mxu0 0.0
        %2602 = vmatpush1.msra.mxu0 0.0
        %2603 = vmatprep.subr.mxu0 0.0
        %2604 = vmatpush1.msra.mxu0 0.0
        %2605 = vmatprep.subr.mxu0 0.0
        %2606 = vmatpush1.msra.mxu0 0.0
        %2607 = vmatprep.subr.mxu0 0.0
        %2608 = vmatpush1.msra.mxu0 0.0
        %2609 = vmatprep.subr.mxu0 0.0
        %2610 = vmatpush1.msra.mxu0 0.0
        %2611 = vmatprep.subr.mxu0 0.0
        %2612 = vmatpush1.msra.mxu0 0.0
        %2613 = vmatprep.subr.mxu0 0.0
        %2614 = vmatpush1.msra.mxu0 0.0
        %2615 = vmatprep.subr.mxu0 0.0
        %2616 = vmatpush1.msra.mxu0 0.0
        %2617 = vmatprep.subr.mxu0 0.0
        %2618 = vmatpush1.msra.mxu0 0.0
        %2619 = vmatprep.subr.mxu0 0.0
        %2620 = vmatpush1.msra.mxu0 0.0
        %2621 = vmatprep.subr.mxu0 0.0
        %2622 = vmatpush1.msra.mxu0 0.0
        %2623 = vmatprep.subr.mxu0 0.0
        %2624 = vmatpush1.msra.mxu0 0.0
        %2625 = vmatprep.subr.mxu0 0.0
        %2626 = vmatpush1.msra.mxu0 0.0
        %2627 = vmatprep.subr.mxu0 0.0
        %2628 = vmatpush1.msra.mxu0 0.0
        %2629 = vmatprep.mubr.f32.mxu0 0.0
        %2630 = vmatmul.mubr.f32.gmra.mrb[0].mxu0 %v663
        %v2631 = vpop.f32.mrb[0].mxu0
        %v2632 = vadd.f32 %v2471, %v2631
        %v2633 = vpop.f32.mrb[0].mxu0
        %v2634 = vadd.f32 %v2473, %v2633
        %2635 = vmatprep.mubr.f32.mxu0 0.0
        %2636 = vmatmul.mubr.f32.gmra.mrb[0].mxu0 %v664
        %v2637 = vpop.f32.mrb[0].mxu0
        %v2638 = vadd.f32 %v2477, %v2637
        %v2639 = vpop.f32.mrb[0].mxu0
        %v2640 = vadd.f32 %v2479, %v2639
        %2641 = vmatprep.mubr.f32.mxu0 0.0
        %2642 = vmatmul.mubr.f32.gmra.mrb[0].mxu0 %v665
        %v2643 = vpop.f32.mrb[0].mxu0
        %v2644 = vadd.f32 %v2483, %v2643
        %v2645 = vpop.f32.mrb[0].mxu0
        %v2646 = vadd.f32 %v2485, %v2645
        %2647 = vmatprep.mubr.f32.mxu0 0.0
        %2648 = vmatmul.mubr.f32.gmra.mrb[0].mxu0 %v666
        %v2649 = vpop.f32.mrb[0].mxu0
        %v2650 = vadd.f32 %v2489, %v2649
        %v2651 = vpop.f32.mrb[0].mxu0
        %v2652 = vadd.f32 %v2491, %v2651
        %2653 = vmatprep.mubr.f32.mxu0 0.0
        %2654 = vmatmul.mubr.f32.gmra.mrb[0].mxu0 %v667
        %v2655 = vpop.f32.mrb[0].mxu0
        %v2656 = vadd.f32 %v2495, %v2655
        %v2657 = vpop.f32.mrb[0].mxu0
        %v2658 = vadd.f32 %v2497, %v2657
        %2659 = vmatprep.mubr.f32.mxu0 0.0
        %2660 = vmatmul.mubr.f32.gmra.mrb[0].mxu0 %v668
        %v2661 = vpop.f32.mrb[0].mxu0
        %v2662 = vadd.f32 %v2501, %v2661
        %v2663 = vpop.f32.mrb[0].mxu0
        %v2664 = vadd.f32 %v2503, %v2663
        %2665 = vmatprep.mubr.f32.mxu0 0.0
        %2666 = vmatmul.mubr.f32.gmra.mrb[0].mxu0 %v669
        %v2667 = vpop.f32.mrb[0].mxu0
        %v2668 = vadd.f32 %v2507, %v2667
        %v2669 = vpop.f32.mrb[0].mxu0
        %v2670 = vadd.f32 %v2509, %v2669
        %2671 = vmatprep.mubr.f32.mxu0 0.0
        %2672 = vmatmul.mubr.f32.gmra.mrb[0].mxu0 %v670
        %v2673 = vpop.f32.mrb[0].mxu0
        %v2674 = vadd.f32 %v2513, %v2673
        %v2675 = vpop.f32.mrb[0].mxu0
        %v2676 = vadd.f32 %v2515, %v2675
        %2677 = vmatprep.mubr.f32.mxu0 0.0
        %2678 = vmatmul.mubr.f32.gmra.mrb[0].mxu0 %v671
        %v2679 = vpop.f32.mrb[0].mxu0
        %v2680 = vadd.f32 %v2519, %v2679
        %v2681 = vpop.f32.mrb[0].mxu0
        %v2682 = vadd.f32 %v2521, %v2681
        %2683 = vmatprep.mubr.f32.mxu0 0.0
        %2684 = vmatmul.mubr.f32.gmra.mrb[0].mxu0 %v672
        %v2685 = vpop.f32.mrb[0].mxu0
        %v2686 = vadd.f32 %v2525, %v2685
        %v2687 = vpop.f32.mrb[0].mxu0
        %v2688 = vadd.f32 %v2527, %v2687
        %2689 = vmatprep.mubr.f32.mxu0 0.0
        %2690 = vmatmul.mubr.f32.gmra.mrb[0].mxu0 %v673
        %v2691 = vpop.f32.mrb[0].mxu0
        %v2692 = vadd.f32 %v2531, %v2691
        %v2693 = vpop.f32.mrb[0].mxu0
        %v2694 = vadd.f32 %v2533, %v2693
        %2695 = vmatprep.mubr.f32.mxu0 0.0
        %2696 = vmatmul.mubr.f32.gmra.mrb[0].mxu0 %v674
        %v2697 = vpop.f32.mrb[0].mxu0
        %v2698 = vadd.f32 %v2537, %v2697
        %v2699 = vpop.f32.mrb[0].mxu0
        %v2700 = vadd.f32 %v2539, %v2699
        %2701 = vmatprep.mubr.f32.mxu0 0.0
        %2702 = vmatmul.mubr.f32.gmra.mrb[0].mxu0 %v675
        %v2703 = vpop.f32.mrb[0].mxu0
        %v2704 = vadd.f32 %v2543, %v2703
        %v2705 = vpop.f32.mrb[0].mxu0
        %v2706 = vadd.f32 %v2545, %v2705
        %2707 = vmatprep.mubr.f32.mxu0 0.0
        %2708 = vmatmul.mubr.f32.gmra.mrb[0].mxu0 %v676
        %v2709 = vpop.f32.mrb[0].mxu0
        %v2710 = vadd.f32 %v2549, %v2709
        %v2711 = vpop.f32.mrb[0].mxu0
        %v2712 = vadd.f32 %v2551, %v2711
        %2713 = vmatprep.mubr.f32.mxu0 0.0
        %2714 = vmatmul.mubr.f32.gmra.mrb[0].mxu0 %v677
        %v2715 = vpop.f32.mrb[0].mxu0
        %v2716 = vadd.f32 %v2555, %v2715
        %v2717 = vpop.f32.mrb[0].mxu0
        %v2718 = vadd.f32 %v2557, %v2717
        %2719 = vmatprep.mubr.f32.mxu0 0.0
        %2720 = vmatmul.mubr.f32.gmra.mrb[0].mxu0 %v678
        %v2721 = vpop.f32.mrb[0].mxu0
        %v2722 = vadd.f32 %v2561, %v2721
        %v2723 = vpop.f32.mrb[0].mxu0
        %v2724 = vadd.f32 %v2563, %v2723
        %2725 = vdwg.mxu0
        %v2726 = vld [vmem:[%s12] sm:$0x3]
        %v2728 = vlaneseq
        %v2729 = vshrl.u32 %v2728, 7
        %v2730 = vsub.s32 0, %v2729
        %v2731 = vrot.slane %v2726, %v2730
        %v2732 = vlaneseq
        %v2733 = vshrl.u32 %v2732, 7
        %v2734 = vsub.s32 1, %v2733
        %v2735 = vrot.slane %v2726, %v2734
        %v2738 = vadd.f32 %v2632, %v2731
        %v2739 = vadd.f32 %v2634, %v2735
        %v2740 = vadd.f32 %v2638, %v2731
        %v2741 = vadd.f32 %v2640, %v2735
        %v2742 = vadd.f32 %v2644, %v2731
        %v2743 = vadd.f32 %v2646, %v2735
        %v2744 = vadd.f32 %v2650, %v2731
        %v2745 = vadd.f32 %v2652, %v2735
        %v2746 = vadd.f32 %v2656, %v2731
        %v2747 = vadd.f32 %v2658, %v2735
        %v2748 = vadd.f32 %v2662, %v2731
        %v2749 = vadd.f32 %v2664, %v2735
        %v2750 = vadd.f32 %v2668, %v2731
        %v2751 = vadd.f32 %v2670, %v2735
        %v2752 = vadd.f32 %v2674, %v2731
        %v2753 = vadd.f32 %v2676, %v2735
        %v2754 = vadd.f32 %v2680, %v2731
        %v2755 = vadd.f32 %v2682, %v2735
        %v2756 = vadd.f32 %v2686, %v2731
        %v2757 = vadd.f32 %v2688, %v2735
        %v2758 = vadd.f32 %v2692, %v2731
        %v2759 = vadd.f32 %v2694, %v2735
        %v2760 = vadd.f32 %v2698, %v2731
        %v2761 = vadd.f32 %v2700, %v2735
        %v2762 = vadd.f32 %v2704, %v2731
        %v2763 = vadd.f32 %v2706, %v2735
        %v2764 = vadd.f32 %v2710, %v2731
        %v2765 = vadd.f32 %v2712, %v2735
        %v2766 = vadd.f32 %v2716, %v2731
        %v2767 = vadd.f32 %v2718, %v2735
        %v2768 = vadd.f32 %v2722, %v2731
        %v2769 = vadd.f32 %v2724, %v2735
        %v2770 = vld [vmem:[%s13] sm:$0x3]
        %v2771 = vld [vmem:[%s14] sm:$0x3]
        %v2772 = vadd.f32 %v2738, %v2739
        %2773 = vadd.xlane.f32.xlu0 %v2772
        %v2774 = vpop.xlane.xlu0 %2773
        %v2775 = vadd.f32 %v2740, %v2741
        %2776 = vadd.xlane.f32.xlu0 %v2775
        %v2777 = vpop.xlane.xlu0 %2776
        %v2778 = vadd.f32 %v2742, %v2743
        %2779 = vadd.xlane.f32.xlu0 %v2778
        %v2780 = vpop.xlane.xlu0 %2779
        %v2781 = vadd.f32 %v2744, %v2745
        %2782 = vadd.xlane.f32.xlu0 %v2781
        %v2783 = vpop.xlane.xlu0 %2782
        %v2784 = vadd.f32 %v2746, %v2747
        %2785 = vadd.xlane.f32.xlu0 %v2784
        %v2786 = vpop.xlane.xlu0 %2785
        %v2787 = vadd.f32 %v2748, %v2749
        %2788 = vadd.xlane.f32.xlu0 %v2787
        %v2789 = vpop.xlane.xlu0 %2788
        %v2790 = vadd.f32 %v2750, %v2751
        %2791 = vadd.xlane.f32.xlu0 %v2790
        %v2792 = vpop.xlane.xlu0 %2791
        %v2793 = vadd.f32 %v2752, %v2753
        %2794 = vadd.xlane.f32.xlu0 %v2793
        %v2795 = vpop.xlane.xlu0 %2794
        %v2796 = vadd.f32 %v2754, %v2755
        %2797 = vadd.xlane.f32.xlu0 %v2796
        %v2798 = vpop.xlane.xlu0 %2797
        %v2799 = vadd.f32 %v2756, %v2757
        %2800 = vadd.xlane.f32.xlu0 %v2799
        %v2801 = vpop.xlane.xlu0 %2800
        %v2802 = vadd.f32 %v2758, %v2759
        %2803 = vadd.xlane.f32.xlu0 %v2802
        %v2804 = vpop.xlane.xlu0 %2803
        %v2805 = vadd.f32 %v2760, %v2761
        %2806 = vadd.xlane.f32.xlu0 %v2805
        %v2807 = vpop.xlane.xlu0 %2806
        %v2808 = vadd.f32 %v2762, %v2763
        %2809 = vadd.xlane.f32.xlu0 %v2808
        %v2810 = vpop.xlane.xlu0 %2809
        %v2811 = vadd.f32 %v2764, %v2765
        %2812 = vadd.xlane.f32.xlu0 %v2811
        %v2813 = vpop.xlane.xlu0 %2812
        %v2814 = vadd.f32 %v2766, %v2767
        %2815 = vadd.xlane.f32.xlu0 %v2814
        %v2816 = vpop.xlane.xlu0 %2815
        %v2817 = vadd.f32 %v2768, %v2769
        %2818 = vadd.xlane.f32.xlu0 %v2817
        %v2819 = vpop.xlane.xlu0 %2818
        %v2820 = vrcp.pop 256.0
        %v2821 = vmul.f32 %v2774, %v2820
        %v2822 = vmul.f32 %v2777, %v2820
        %v2823 = vmul.f32 %v2780, %v2820
        %v2824 = vmul.f32 %v2783, %v2820
        %v2825 = vmul.f32 %v2786, %v2820
        %v2826 = vmul.f32 %v2789, %v2820
        %v2827 = vmul.f32 %v2792, %v2820
        %v2828 = vmul.f32 %v2795, %v2820
        %v2829 = vmul.f32 %v2798, %v2820
        %v2830 = vmul.f32 %v2801, %v2820
        %v2831 = vmul.f32 %v2804, %v2820
        %v2832 = vmul.f32 %v2807, %v2820
        %v2833 = vmul.f32 %v2810, %v2820
        %v2834 = vmul.f32 %v2813, %v2820
        %v2835 = vmul.f32 %v2816, %v2820
        %v2836 = vmul.f32 %v2819, %v2820
        %v2837 = vsub.f32 %v2738, %v2821
        %v2838 = vsub.f32 %v2739, %v2821
        %v2839 = vsub.f32 %v2740, %v2822
        %v2840 = vsub.f32 %v2741, %v2822
        %v2841 = vsub.f32 %v2742, %v2823
        %v2842 = vsub.f32 %v2743, %v2823
        %v2843 = vsub.f32 %v2744, %v2824
        %v2844 = vsub.f32 %v2745, %v2824
        %v2845 = vsub.f32 %v2746, %v2825
        %v2846 = vsub.f32 %v2747, %v2825
        %v2847 = vsub.f32 %v2748, %v2826
        %v2848 = vsub.f32 %v2749, %v2826
        %v2849 = vsub.f32 %v2750, %v2827
        %v2850 = vsub.f32 %v2751, %v2827
        %v2851 = vsub.f32 %v2752, %v2828
        %v2852 = vsub.f32 %v2753, %v2828
        %v2853 = vsub.f32 %v2754, %v2829
        %v2854 = vsub.f32 %v2755, %v2829
        %v2855 = vsub.f32 %v2756, %v2830
        %v2856 = vsub.f32 %v2757, %v2830
        %v2857 = vsub.f32 %v2758, %v2831
        %v2858 = vsub.f32 %v2759, %v2831
        %v2859 = vsub.f32 %v2760, %v2832
        %v2860 = vsub.f32 %v2761, %v2832
        %v2861 = vsub.f32 %v2762, %v2833
        %v2862 = vsub.f32 %v2763, %v2833
        %v2863 = vsub.f32 %v2764, %v2834
        %v2864 = vsub.f32 %v2765, %v2834
        %v2865 = vsub.f32 %v2766, %v2835
        %v2866 = vsub.f32 %v2767, %v2835
        %v2867 = vsub.f32 %v2768, %v2836
        %v2868 = vsub.f32 %v2769, %v2836
        %v2869 = vmul.f32 %v2837, %v2837
        %v2870 = vmul.f32 %v2838, %v2838
        %v2871 = vmul.f32 %v2839, %v2839
        %v2872 = vmul.f32 %v2840, %v2840
        %v2873 = vmul.f32 %v2841, %v2841
        %v2874 = vmul.f32 %v2842, %v2842
        %v2875 = vmul.f32 %v2843, %v2843
        %v2876 = vmul.f32 %v2844, %v2844
        %v2877 = vmul.f32 %v2845, %v2845
        %v2878 = vmul.f32 %v2846, %v2846
        %v2879 = vmul.f32 %v2847, %v2847
        %v2880 = vmul.f32 %v2848, %v2848
        %v2881 = vmul.f32 %v2849, %v2849
        %v2882 = vmul.f32 %v2850, %v2850
        %v2883 = vmul.f32 %v2851, %v2851
        %v2884 = vmul.f32 %v2852, %v2852
        %v2885 = vmul.f32 %v2853, %v2853
        %v2886 = vmul.f32 %v2854, %v2854
        %v2887 = vmul.f32 %v2855, %v2855
        %v2888 = vmul.f32 %v2856, %v2856
        %v2889 = vmul.f32 %v2857, %v2857
        %v2890 = vmul.f32 %v2858, %v2858
        %v2891 = vmul.f32 %v2859, %v2859
        %v2892 = vmul.f32 %v2860, %v2860
        %v2893 = vmul.f32 %v2861, %v2861
        %v2894 = vmul.f32 %v2862, %v2862
        %v2895 = vmul.f32 %v2863, %v2863
        %v2896 = vmul.f32 %v2864, %v2864
        %v2897 = vmul.f32 %v2865, %v2865
        %v2898 = vmul.f32 %v2866, %v2866
        %v2899 = vmul.f32 %v2867, %v2867
        %v2900 = vmul.f32 %v2868, %v2868
        %v2901 = vadd.f32 %v2869, %v2870
        %2902 = vadd.xlane.f32.xlu0 %v2901
        %v2903 = vpop.xlane.xlu0 %2902
        %v2904 = vadd.f32 %v2871, %v2872
        %2905 = vadd.xlane.f32.xlu0 %v2904
        %v2906 = vpop.xlane.xlu0 %2905
        %v2907 = vadd.f32 %v2873, %v2874
        %2908 = vadd.xlane.f32.xlu0 %v2907
        %v2909 = vpop.xlane.xlu0 %2908
        %v2910 = vadd.f32 %v2875, %v2876
        %2911 = vadd.xlane.f32.xlu0 %v2910
        %v2912 = vpop.xlane.xlu0 %2911
        %v2913 = vadd.f32 %v2877, %v2878
        %2914 = vadd.xlane.f32.xlu0 %v2913
        %v2915 = vpop.xlane.xlu0 %2914
        %v2916 = vadd.f32 %v2879, %v2880
        %2917 = vadd.xlane.f32.xlu0 %v2916
        %v2918 = vpop.xlane.xlu0 %2917
        %v2919 = vadd.f32 %v2881, %v2882
        %2920 = vadd.xlane.f32.xlu0 %v2919
        %v2921 = vpop.xlane.xlu0 %2920
        %v2922 = vadd.f32 %v2883, %v2884
        %2923 = vadd.xlane.f32.xlu0 %v2922
        %v2924 = vpop.xlane.xlu0 %2923
        %v2925 = vadd.f32 %v2885, %v2886
        %2926 = vadd.xlane.f32.xlu0 %v2925
        %v2927 = vpop.xlane.xlu0 %2926
        %v2928 = vadd.f32 %v2887, %v2888
        %2929 = vadd.xlane.f32.xlu0 %v2928
        %v2930 = vpop.xlane.xlu0 %2929
        %v2931 = vadd.f32 %v2889, %v2890
        %2932 = vadd.xlane.f32.xlu0 %v2931
        %v2933 = vpop.xlane.xlu0 %2932
        %v2934 = vadd.f32 %v2891, %v2892
        %2935 = vadd.xlane.f32.xlu0 %v2934
        %v2936 = vpop.xlane.xlu0 %2935
        %v2937 = vadd.f32 %v2893, %v2894
        %2938 = vadd.xlane.f32.xlu0 %v2937
        %v2939 = vpop.xlane.xlu0 %2938
        %v2940 = vadd.f32 %v2895, %v2896
        %2941 = vadd.xlane.f32.xlu0 %v2940
        %v2942 = vpop.xlane.xlu0 %2941
        %v2943 = vadd.f32 %v2897, %v2898
        %2944 = vadd.xlane.f32.xlu0 %v2943
        %v2945 = vpop.xlane.xlu0 %2944
        %v2946 = vadd.f32 %v2899, %v2900
        %2947 = vadd.xlane.f32.xlu0 %v2946
        %v2948 = vpop.xlane.xlu0 %2947
        %v2949 = vmul.f32 %v2903, %v2820
        %v2950 = vmul.f32 %v2906, %v2820
        %v2951 = vmul.f32 %v2909, %v2820
        %v2952 = vmul.f32 %v2912, %v2820
        %v2953 = vmul.f32 %v2915, %v2820
        %v2954 = vmul.f32 %v2918, %v2820
        %v2955 = vmul.f32 %v2921, %v2820
        %v2956 = vmul.f32 %v2924, %v2820
        %v2957 = vmul.f32 %v2927, %v2820
        %v2958 = vmul.f32 %v2930, %v2820
        %v2959 = vmul.f32 %v2933, %v2820
        %v2960 = vmul.f32 %v2936, %v2820
        %v2961 = vmul.f32 %v2939, %v2820
        %v2962 = vmul.f32 %v2942, %v2820
        %v2963 = vmul.f32 %v2945, %v2820
        %v2964 = vmul.f32 %v2948, %v2820
        %v2965 = vadd.f32 %v2949, 1e-05
        %v2966 = vadd.f32 %v2950, 1e-05
        %v2967 = vadd.f32 %v2951, 1e-05
        %v2968 = vadd.f32 %v2952, 1e-05
        %v2969 = vadd.f32 %v2953, 1e-05
        %v2970 = vadd.f32 %v2954, 1e-05
        %v2971 = vadd.f32 %v2955, 1e-05
        %v2972 = vadd.f32 %v2956, 1e-05
        %v2973 = vadd.f32 %v2957, 1e-05
        %v2974 = vadd.f32 %v2958, 1e-05
        %v2975 = vadd.f32 %v2959, 1e-05
        %v2976 = vadd.f32 %v2960, 1e-05
        %v2977 = vadd.f32 %v2961, 1e-05
        %v2978 = vadd.f32 %v2962, 1e-05
        %v2979 = vadd.f32 %v2963, 1e-05
        %v2980 = vadd.f32 %v2964, 1e-05
        %v2981 = vrsqrt.pop %v2965
        %v2982 = vrsqrt.pop %v2966
        %v2983 = vrsqrt.pop %v2967
        %v2984 = vrsqrt.pop %v2968
        %v2985 = vrsqrt.pop %v2969
        %v2986 = vrsqrt.pop %v2970
        %v2987 = vrsqrt.pop %v2971
        %v2988 = vrsqrt.pop %v2972
        %v2989 = vrsqrt.pop %v2973
        %v2990 = vrsqrt.pop %v2974
        %v2991 = vrsqrt.pop %v2975
        %v2992 = vrsqrt.pop %v2976
        %v2993 = vrsqrt.pop %v2977
        %v2994 = vrsqrt.pop %v2978
        %v2995 = vrsqrt.pop %v2979
        %v2996 = vrsqrt.pop %v2980
        %v2997 = vmul.f32 %v2837, %v2981
        %v2998 = vmul.f32 %v2838, %v2981
        %v2999 = vmul.f32 %v2839, %v2982
        %v3000 = vmul.f32 %v2840, %v2982
        %v3001 = vmul.f32 %v2841, %v2983
        %v3002 = vmul.f32 %v2842, %v2983
        %v3003 = vmul.f32 %v2843, %v2984
        %v3004 = vmul.f32 %v2844, %v2984
        %v3005 = vmul.f32 %v2845, %v2985
        %v3006 = vmul.f32 %v2846, %v2985
        %v3007 = vmul.f32 %v2847, %v2986
        %v3008 = vmul.f32 %v2848, %v2986
        %v3009 = vmul.f32 %v2849, %v2987
        %v3010 = vmul.f32 %v2850, %v2987
        %v3011 = vmul.f32 %v2851, %v2988
        %v3012 = vmul.f32 %v2852, %v2988
        %v3013 = vmul.f32 %v2853, %v2989
        %v3014 = vmul.f32 %v2854, %v2989
        %v3015 = vmul.f32 %v2855, %v2990
        %v3016 = vmul.f32 %v2856, %v2990
        %v3017 = vmul.f32 %v2857, %v2991
        %v3018 = vmul.f32 %v2858, %v2991
        %v3019 = vmul.f32 %v2859, %v2992
        %v3020 = vmul.f32 %v2860, %v2992
        %v3021 = vmul.f32 %v2861, %v2993
        %v3022 = vmul.f32 %v2862, %v2993
        %v3023 = vmul.f32 %v2863, %v2994
        %v3024 = vmul.f32 %v2864, %v2994
        %v3025 = vmul.f32 %v2865, %v2995
        %v3026 = vmul.f32 %v2866, %v2995
        %v3027 = vmul.f32 %v2867, %v2996
        %v3028 = vmul.f32 %v2868, %v2996
        %v3030 = vlaneseq
        %v3031 = vshrl.u32 %v3030, 7
        %v3032 = vsub.s32 0, %v3031
        %v3033 = vrot.slane %v2770, %v3032
        %v3034 = vlaneseq
        %v3035 = vshrl.u32 %v3034, 7
        %v3036 = vsub.s32 1, %v3035
        %v3037 = vrot.slane %v2770, %v3036
        %v3040 = vmul.f32 %v2997, %v3033
        %v3041 = vmul.f32 %v2998, %v3037
        %v3042 = vmul.f32 %v2999, %v3033
        %v3043 = vmul.f32 %v3000, %v3037
        %v3044 = vmul.f32 %v3001, %v3033
        %v3045 = vmul.f32 %v3002, %v3037
        %v3046 = vmul.f32 %v3003, %v3033
        %v3047 = vmul.f32 %v3004, %v3037
        %v3048 = vmul.f32 %v3005, %v3033
        %v3049 = vmul.f32 %v3006, %v3037
        %v3050 = vmul.f32 %v3007, %v3033
        %v3051 = vmul.f32 %v3008, %v3037
        %v3052 = vmul.f32 %v3009, %v3033
        %v3053 = vmul.f32 %v3010, %v3037
        %v3054 = vmul.f32 %v3011, %v3033
        %v3055 = vmul.f32 %v3012, %v3037
        %v3056 = vmul.f32 %v3013, %v3033
        %v3057 = vmul.f32 %v3014, %v3037
        %v3058 = vmul.f32 %v3015, %v3033
        %v3059 = vmul.f32 %v3016, %v3037
        %v3060 = vmul.f32 %v3017, %v3033
        %v3061 = vmul.f32 %v3018, %v3037
        %v3062 = vmul.f32 %v3019, %v3033
        %v3063 = vmul.f32 %v3020, %v3037
        %v3064 = vmul.f32 %v3021, %v3033
        %v3065 = vmul.f32 %v3022, %v3037
        %v3066 = vmul.f32 %v3023, %v3033
        %v3067 = vmul.f32 %v3024, %v3037
        %v3068 = vmul.f32 %v3025, %v3033
        %v3069 = vmul.f32 %v3026, %v3037
        %v3070 = vmul.f32 %v3027, %v3033
        %v3071 = vmul.f32 %v3028, %v3037
        %v3073 = vlaneseq
        %v3074 = vshrl.u32 %v3073, 7
        %v3075 = vsub.s32 0, %v3074
        %v3076 = vrot.slane %v2771, %v3075
        %v3077 = vlaneseq
        %v3078 = vshrl.u32 %v3077, 7
        %v3079 = vsub.s32 1, %v3078
        %v3080 = vrot.slane %v2771, %v3079
        %v3083 = vadd.f32 %v3040, %v3076
        %v3084 = vadd.f32 %v3041, %v3080
        %v3085 = vadd.f32 %v3042, %v3076
        %v3086 = vadd.f32 %v3043, %v3080
        %v3087 = vadd.f32 %v3044, %v3076
        %v3088 = vadd.f32 %v3045, %v3080
        %v3089 = vadd.f32 %v3046, %v3076
        %v3090 = vadd.f32 %v3047, %v3080
        %v3091 = vadd.f32 %v3048, %v3076
        %v3092 = vadd.f32 %v3049, %v3080
        %v3093 = vadd.f32 %v3050, %v3076
        %v3094 = vadd.f32 %v3051, %v3080
        %v3095 = vadd.f32 %v3052, %v3076
        %v3096 = vadd.f32 %v3053, %v3080
        %v3097 = vadd.f32 %v3054, %v3076
        %v3098 = vadd.f32 %v3055, %v3080
        %v3099 = vadd.f32 %v3056, %v3076
        %v3100 = vadd.f32 %v3057, %v3080
        %v3101 = vadd.f32 %v3058, %v3076
        %v3102 = vadd.f32 %v3059, %v3080
        %v3103 = vadd.f32 %v3060, %v3076
        %v3104 = vadd.f32 %v3061, %v3080
        %v3105 = vadd.f32 %v3062, %v3076
        %v3106 = vadd.f32 %v3063, %v3080
        %v3107 = vadd.f32 %v3064, %v3076
        %v3108 = vadd.f32 %v3065, %v3080
        %v3109 = vadd.f32 %v3066, %v3076
        %v3110 = vadd.f32 %v3067, %v3080
        %v3111 = vadd.f32 %v3068, %v3076
        %v3112 = vadd.f32 %v3069, %v3080
        %v3113 = vadd.f32 %v3070, %v3076
        %v3114 = vadd.f32 %v3071, %v3080
        %vm3115 = vcmp.gt.f32.partialorder %v3083, 0.0
        %vm3116 = vcmp.gt.f32.partialorder %v3084, 0.0
        %vm3117 = vcmp.gt.f32.partialorder %v3085, 0.0
        %vm3118 = vcmp.gt.f32.partialorder %v3086, 0.0
        %vm3119 = vcmp.gt.f32.partialorder %v3087, 0.0
        %vm3120 = vcmp.gt.f32.partialorder %v3088, 0.0
        %vm3121 = vcmp.gt.f32.partialorder %v3089, 0.0
        %vm3122 = vcmp.gt.f32.partialorder %v3090, 0.0
        %vm3123 = vcmp.gt.f32.partialorder %v3091, 0.0
        %vm3124 = vcmp.gt.f32.partialorder %v3092, 0.0
        %vm3125 = vcmp.gt.f32.partialorder %v3093, 0.0
        %vm3126 = vcmp.gt.f32.partialorder %v3094, 0.0
        %vm3127 = vcmp.gt.f32.partialorder %v3095, 0.0
        %vm3128 = vcmp.gt.f32.partialorder %v3096, 0.0
        %vm3129 = vcmp.gt.f32.partialorder %v3097, 0.0
        %vm3130 = vcmp.gt.f32.partialorder %v3098, 0.0
        %vm3131 = vcmp.gt.f32.partialorder %v3099, 0.0
        %vm3132 = vcmp.gt.f32.partialorder %v3100, 0.0
        %vm3133 = vcmp.gt.f32.partialorder %v3101, 0.0
        %vm3134 = vcmp.gt.f32.partialorder %v3102, 0.0
        %vm3135 = vcmp.gt.f32.partialorder %v3103, 0.0
        %vm3136 = vcmp.gt.f32.partialorder %v3104, 0.0
        %vm3137 = vcmp.gt.f32.partialorder %v3105, 0.0
        %vm3138 = vcmp.gt.f32.partialorder %v3106, 0.0
        %vm3139 = vcmp.gt.f32.partialorder %v3107, 0.0
        %vm3140 = vcmp.gt.f32.partialorder %v3108, 0.0
        %vm3141 = vcmp.gt.f32.partialorder %v3109, 0.0
        %vm3142 = vcmp.gt.f32.partialorder %v3110, 0.0
        %vm3143 = vcmp.gt.f32.partialorder %v3111, 0.0
        %vm3144 = vcmp.gt.f32.partialorder %v3112, 0.0
        %vm3145 = vcmp.gt.f32.partialorder %v3113, 0.0
        %vm3146 = vcmp.gt.f32.partialorder %v3114, 0.0
        %v3147 = vmul.f32 %v3083, 0.01
        %v3148 = vmul.f32 %v3084, 0.01
        %v3149 = vmul.f32 %v3085, 0.01
        %v3150 = vmul.f32 %v3086, 0.01
        %v3151 = vmul.f32 %v3087, 0.01
        %v3152 = vmul.f32 %v3088, 0.01
        %v3153 = vmul.f32 %v3089, 0.01
        %v3154 = vmul.f32 %v3090, 0.01
        %v3155 = vmul.f32 %v3091, 0.01
        %v3156 = vmul.f32 %v3092, 0.01
        %v3157 = vmul.f32 %v3093, 0.01
        %v3158 = vmul.f32 %v3094, 0.01
        %v3159 = vmul.f32 %v3095, 0.01
        %v3160 = vmul.f32 %v3096, 0.01
        %v3161 = vmul.f32 %v3097, 0.01
        %v3162 = vmul.f32 %v3098, 0.01
        %v3163 = vmul.f32 %v3099, 0.01
        %v3164 = vmul.f32 %v3100, 0.01
        %v3165 = vmul.f32 %v3101, 0.01
        %v3166 = vmul.f32 %v3102, 0.01
        %v3167 = vmul.f32 %v3103, 0.01
        %v3168 = vmul.f32 %v3104, 0.01
        %v3169 = vmul.f32 %v3105, 0.01
        %v3170 = vmul.f32 %v3106, 0.01
        %v3171 = vmul.f32 %v3107, 0.01
        %v3172 = vmul.f32 %v3108, 0.01
        %v3173 = vmul.f32 %v3109, 0.01
        %v3174 = vmul.f32 %v3110, 0.01
        %v3175 = vmul.f32 %v3111, 0.01
        %v3176 = vmul.f32 %v3112, 0.01
        %v3177 = vmul.f32 %v3113, 0.01
        %v3178 = vmul.f32 %v3114, 0.01
        %v3179 = vsel %vm3115, %v3083, %v3147
        %v3180 = vsel %vm3116, %v3084, %v3148
        %v3181 = vsel %vm3117, %v3085, %v3149
        %v3182 = vsel %vm3118, %v3086, %v3150
        %v3183 = vsel %vm3119, %v3087, %v3151
        %v3184 = vsel %vm3120, %v3088, %v3152
        %v3185 = vsel %vm3121, %v3089, %v3153
        %v3186 = vsel %vm3122, %v3090, %v3154
        %v3187 = vsel %vm3123, %v3091, %v3155
        %v3188 = vsel %vm3124, %v3092, %v3156
        %v3189 = vsel %vm3125, %v3093, %v3157
        %v3190 = vsel %vm3126, %v3094, %v3158
        %v3191 = vsel %vm3127, %v3095, %v3159
        %v3192 = vsel %vm3128, %v3096, %v3160
        %v3193 = vsel %vm3129, %v3097, %v3161
        %v3194 = vsel %vm3130, %v3098, %v3162
        %v3195 = vsel %vm3131, %v3099, %v3163
        %v3196 = vsel %vm3132, %v3100, %v3164
        %v3197 = vsel %vm3133, %v3101, %v3165
        %v3198 = vsel %vm3134, %v3102, %v3166
        %v3199 = vsel %vm3135, %v3103, %v3167
        %v3200 = vsel %vm3136, %v3104, %v3168
        %v3201 = vsel %vm3137, %v3105, %v3169
        %v3202 = vsel %vm3138, %v3106, %v3170
        %v3203 = vsel %vm3139, %v3107, %v3171
        %v3204 = vsel %vm3140, %v3108, %v3172
        %v3205 = vsel %vm3141, %v3109, %v3173
        %v3206 = vsel %vm3142, %v3110, %v3174
        %v3207 = vsel %vm3143, %v3111, %v3175
        %v3208 = vsel %vm3144, %v3112, %v3176
        %v3209 = vsel %vm3145, %v3113, %v3177
        %v3210 = vsel %vm3146, %v3114, %v3178
        %v3211 = vld [vmem:[%s15] sm:$0xff]
        %v3212 = vld [vmem:[%s15 + $0x8] sm:$0xff]
        %v3213 = vld [vmem:[%s15 + $0x10] sm:$0xff]
        %v3214 = vld [vmem:[%s15 + $0x18] sm:$0xff]
        %v3215 = vld [vmem:[%s15 + $0x20] sm:$0xff]
        %v3216 = vld [vmem:[%s15 + $0x28] sm:$0xff]
        %v3217 = vld [vmem:[%s15 + $0x30] sm:$0xff]
        %v3218 = vld [vmem:[%s15 + $0x38] sm:$0xff]
        %v3219 = vld [vmem:[%s15 + $0x40] sm:$0xff]
        %v3220 = vld [vmem:[%s15 + $0x48] sm:$0xff]
        %v3221 = vld [vmem:[%s15 + $0x50] sm:$0xff]
        %v3222 = vld [vmem:[%s15 + $0x58] sm:$0xff]
        %v3223 = vld [vmem:[%s15 + $0x60] sm:$0xff]
        %v3224 = vld [vmem:[%s15 + $0x68] sm:$0xff]
        %v3225 = vld [vmem:[%s15 + $0x70] sm:$0xff]
        %v3226 = vld [vmem:[%s15 + $0x78] sm:$0xff]
        %v3227 = vld [vmem:[%s15 + $0x80] sm:$0xff]
        %v3228 = vld [vmem:[%s15 + $0x88] sm:$0xff]
        %v3229 = vld [vmem:[%s15 + $0x90] sm:$0xff]
        %v3230 = vld [vmem:[%s15 + $0x98] sm:$0xff]
        %v3231 = vld [vmem:[%s15 + $0xa0] sm:$0xff]
        %v3232 = vld [vmem:[%s15 + $0xa8] sm:$0xff]
        %v3233 = vld [vmem:[%s15 + $0xb0] sm:$0xff]
        %v3234 = vld [vmem:[%s15 + $0xb8] sm:$0xff]
        %v3235 = vld [vmem:[%s15 + $0xc0] sm:$0xff]
        %v3236 = vld [vmem:[%s15 + $0xc8] sm:$0xff]
        %v3237 = vld [vmem:[%s15 + $0xd0] sm:$0xff]
        %v3238 = vld [vmem:[%s15 + $0xd8] sm:$0xff]
        %v3239 = vld [vmem:[%s15 + $0xe0] sm:$0xff]
        %v3240 = vld [vmem:[%s15 + $0xe8] sm:$0xff]
        %v3241 = vld [vmem:[%s15 + $0xf0] sm:$0xff]
        %v3242 = vld [vmem:[%s15 + $0xf8] sm:$0xff]
        %v3243 = vld [vmem:[%s16] sm:$0xf]
        %v3245 = vsel %vm745, %v3243, 0
        %3247 = vmatprep.subr.mxu0 0.0
        %3248 = vmatpush1.msra.mxu0 %v3245
        %3249 = vmatprep.subr.mxu0 0.0
        %3250 = vmatpush1.msra.mxu0 0.0
        %3251 = vmatprep.subr.mxu0 0.0
        %3252 = vmatpush1.msra.mxu0 0.0
        %3253 = vmatprep.subr.mxu0 0.0
        %3254 = vmatpush1.msra.mxu0 0.0
        %3255 = vmatprep.subr.mxu0 0.0
        %3256 = vmatpush1.msra.mxu0 0.0
        %3257 = vmatprep.subr.mxu0 0.0
        %3258 = vmatpush1.msra.mxu0 0.0
        %3259 = vmatprep.subr.mxu0 0.0
        %3260 = vmatpush1.msra.mxu0 0.0
        %3261 = vmatprep.subr.mxu0 0.0
        %3262 = vmatpush1.msra.mxu0 0.0
        %3263 = vmatprep.subr.mxu0 0.0
        %3264 = vmatpush1.msra.mxu0 0.0
        %3265 = vmatprep.subr.mxu0 0.0
        %3266 = vmatpush1.msra.mxu0 0.0
        %3267 = vmatprep.subr.mxu0 0.0
        %3268 = vmatpush1.msra.mxu0 0.0
        %3269 = vmatprep.subr.mxu0 0.0
        %3270 = vmatpush1.msra.mxu0 0.0
        %3271 = vmatprep.subr.mxu0 0.0
        %3272 = vmatpush1.msra.mxu0 0.0
        %3273 = vmatprep.subr.mxu0 0.0
        %3274 = vmatpush1.msra.mxu0 0.0
        %3275 = vmatprep.subr.mxu0 0.0
        %3276 = vmatpush1.msra.mxu0 0.0
        %3277 = vmatprep.subr.mxu0 0.0
        %3278 = vmatpush1.msra.mxu0 0.0
        %3279 = vmatprep.subr.mxu0 0.0
        %3280 = vmatpush1.msra.mxu0 0.0
        %3281 = vmatprep.subr.mxu0 0.0
        %3282 = vmatpush1.msra.mxu0 0.0
        %3283 = vmatprep.subr.mxu0 0.0
        %3284 = vmatpush1.msra.mxu0 0.0
        %3285 = vmatprep.subr.mxu0 0.0
        %3286 = vmatpush1.msra.mxu0 0.0
        %3287 = vmatprep.subr.mxu0 0.0
        %3288 = vmatpush1.msra.mxu0 0.0
        %3289 = vmatprep.subr.mxu0 0.0
        %3290 = vmatpush1.msra.mxu0 0.0
        %3291 = vmatprep.subr.mxu0 0.0
        %3292 = vmatpush1.msra.mxu0 0.0
        %3293 = vmatprep.subr.mxu0 0.0
        %3294 = vmatpush1.msra.mxu0 0.0
        %3295 = vmatprep.subr.mxu0 0.0
        %3296 = vmatpush1.msra.mxu0 0.0
        %3297 = vmatprep.subr.mxu0 0.0
        %3298 = vmatpush1.msra.mxu0 0.0
        %3299 = vmatprep.subr.mxu0 0.0
        %3300 = vmatpush1.msra.mxu0 0.0
        %3301 = vmatprep.subr.mxu0 0.0
        %3302 = vmatpush1.msra.mxu0 0.0
        %3303 = vmatprep.subr.mxu0 0.0
        %3304 = vmatpush1.msra.mxu0 0.0
        %3305 = vmatprep.subr.mxu0 0.0
        %3306 = vmatpush1.msra.mxu0 0.0
        %3307 = vmatprep.subr.mxu0 0.0
        %3308 = vmatpush1.msra.mxu0 0.0
        %3309 = vmatprep.subr.mxu0 0.0
        %3310 = vmatpush1.msra.mxu0 0.0
        %3311 = vmatprep.mubr.f32.mxu0 0.0
        %3312 = vmatmul.mubr.f32.gmra.mrb[0].mxu0 %v698
        %v3313 = vpop.f32.mrb[0].mxu0
        %v3314 = vadd.f32 0.0, %v3313
        %v3315 = vpop.f32.mrb[0].mxu0
        %3316 = vmatprep.mubr.f32.mxu0 0.0
        %3317 = vmatmul.mubr.f32.gmra.mrb[0].mxu0 %v701
        %v3318 = vpop.f32.mrb[0].mxu0
        %v3319 = vadd.f32 0.0, %v3318
        %v3320 = vpop.f32.mrb[0].mxu0
        %3321 = vmatprep.mubr.f32.mxu0 0.0
        %3322 = vmatmul.mubr.f32.gmra.mrb[0].mxu0 %v704
        %v3323 = vpop.f32.mrb[0].mxu0
        %v3324 = vadd.f32 0.0, %v3323
        %v3325 = vpop.f32.mrb[0].mxu0
        %3326 = vmatprep.mubr.f32.mxu0 0.0
        %3327 = vmatmul.mubr.f32.gmra.mrb[0].mxu0 %v707
        %v3328 = vpop.f32.mrb[0].mxu0
        %v3329 = vadd.f32 0.0, %v3328
        %v3330 = vpop.f32.mrb[0].mxu0
        %3331 = vmatprep.mubr.f32.mxu0 0.0
        %3332 = vmatmul.mubr.f32.gmra.mrb[0].mxu0 %v710
        %v3333 = vpop.f32.mrb[0].mxu0
        %v3334 = vadd.f32 0.0, %v3333
        %v3335 = vpop.f32.mrb[0].mxu0
        %3336 = vmatprep.mubr.f32.mxu0 0.0
        %3337 = vmatmul.mubr.f32.gmra.mrb[0].mxu0 %v713
        %v3338 = vpop.f32.mrb[0].mxu0
        %v3339 = vadd.f32 0.0, %v3338
        %v3340 = vpop.f32.mrb[0].mxu0
        %3341 = vmatprep.mubr.f32.mxu0 0.0
        %3342 = vmatmul.mubr.f32.gmra.mrb[0].mxu0 %v716
        %v3343 = vpop.f32.mrb[0].mxu0
        %v3344 = vadd.f32 0.0, %v3343
        %v3345 = vpop.f32.mrb[0].mxu0
        %3346 = vmatprep.mubr.f32.mxu0 0.0
        %3347 = vmatmul.mubr.f32.gmra.mrb[0].mxu0 %v719
        %v3348 = vpop.f32.mrb[0].mxu0
        %v3349 = vadd.f32 0.0, %v3348
        %v3350 = vpop.f32.mrb[0].mxu0
        %3351 = vmatprep.mubr.f32.mxu0 0.0
        %3352 = vmatmul.mubr.f32.gmra.mrb[0].mxu0 %v722
        %v3353 = vpop.f32.mrb[0].mxu0
        %v3354 = vadd.f32 0.0, %v3353
        %v3355 = vpop.f32.mrb[0].mxu0
        %3356 = vmatprep.mubr.f32.mxu0 0.0
        %3357 = vmatmul.mubr.f32.gmra.mrb[0].mxu0 %v725
        %v3358 = vpop.f32.mrb[0].mxu0
        %v3359 = vadd.f32 0.0, %v3358
        %v3360 = vpop.f32.mrb[0].mxu0
        %3361 = vmatprep.mubr.f32.mxu0 0.0
        %3362 = vmatmul.mubr.f32.gmra.mrb[0].mxu0 %v728
        %v3363 = vpop.f32.mrb[0].mxu0
        %v3364 = vadd.f32 0.0, %v3363
        %v3365 = vpop.f32.mrb[0].mxu0
        %3366 = vmatprep.mubr.f32.mxu0 0.0
        %3367 = vmatmul.mubr.f32.gmra.mrb[0].mxu0 %v731
        %v3368 = vpop.f32.mrb[0].mxu0
        %v3369 = vadd.f32 0.0, %v3368
        %v3370 = vpop.f32.mrb[0].mxu0
        %3371 = vmatprep.mubr.f32.mxu0 0.0
        %3372 = vmatmul.mubr.f32.gmra.mrb[0].mxu0 %v734
        %v3373 = vpop.f32.mrb[0].mxu0
        %v3374 = vadd.f32 0.0, %v3373
        %v3375 = vpop.f32.mrb[0].mxu0
        %3376 = vmatprep.mubr.f32.mxu0 0.0
        %3377 = vmatmul.mubr.f32.gmra.mrb[0].mxu0 %v737
        %v3378 = vpop.f32.mrb[0].mxu0
        %v3379 = vadd.f32 0.0, %v3378
        %v3380 = vpop.f32.mrb[0].mxu0
        %3381 = vmatprep.mubr.f32.mxu0 0.0
        %3382 = vmatmul.mubr.f32.gmra.mrb[0].mxu0 %v740
        %v3383 = vpop.f32.mrb[0].mxu0
        %v3384 = vadd.f32 0.0, %v3383
        %v3385 = vpop.f32.mrb[0].mxu0
        %3386 = vmatprep.mubr.f32.mxu0 0.0
        %3387 = vmatmul.mubr.f32.gmra.mrb[0].mxu0 %v743
        %v3388 = vpop.f32.mrb[0].mxu0
        %v3389 = vadd.f32 0.0, %v3388
        %v3390 = vpop.f32.mrb[0].mxu0
        %3391 = vdwg.mxu0
        %3392 = vmatprep.subr.mxu0 0.0
        %3393 = vmatpush1.msra.mxu0 %v3211
        %3394 = vmatprep.subr.mxu0 0.0
        %3395 = vmatpush1.msra.mxu0 %v3212
        %3396 = vmatprep.subr.mxu0 0.0
        %3397 = vmatpush1.msra.mxu0 %v3213
        %3398 = vmatprep.subr.mxu0 0.0
        %3399 = vmatpush1.msra.mxu0 %v3214
        %3400 = vmatprep.subr.mxu0 0.0
        %3401 = vmatpush1.msra.mxu0 %v3215
        %3402 = vmatprep.subr.mxu0 0.0
        %3403 = vmatpush1.msra.mxu0 %v3216
        %3404 = vmatprep.subr.mxu0 0.0
        %3405 = vmatpush1.msra.mxu0 %v3217
        %3406 = vmatprep.subr.mxu0 0.0
        %3407 = vmatpush1.msra.mxu0 %v3218
        %3408 = vmatprep.subr.mxu0 0.0
        %3409 = vmatpush1.msra.mxu0 %v3219
        %3410 = vmatprep.subr.mxu0 0.0
        %3411 = vmatpush1.msra.mxu0 %v3220
        %3412 = vmatprep.subr.mxu0 0.0
        %3413 = vmatpush1.msra.mxu0 %v3221
        %3414 = vmatprep.subr.mxu0 0.0
        %3415 = vmatpush1.msra.mxu0 %v3222
        %3416 = vmatprep.subr.mxu0 0.0
        %3417 = vmatpush1.msra.mxu0 %v3223
        %3418 = vmatprep.subr.mxu0 0.0
        %3419 = vmatpush1.msra.mxu0 %v3224
        %3420 = vmatprep.subr.mxu0 0.0
        %3421 = vmatpush1.msra.mxu0 %v3225
        %3422 = vmatprep.subr.mxu0 0.0
        %3423 = vmatpush1.msra.mxu0 %v3226
        %3424 = vmatprep.subr.mxu0 0.0
        %3425 = vmatpush1.msra.mxu0 %v3227
        %3426 = vmatprep.subr.mxu0 0.0
        %3427 = vmatpush1.msra.mxu0 %v3228
        %3428 = vmatprep.subr.mxu0 0.0
        %3429 = vmatpush1.msra.mxu0 %v3229
        %3430 = vmatprep.subr.mxu0 0.0
        %3431 = vmatpush1.msra.mxu0 %v3230
        %3432 = vmatprep.subr.mxu0 0.0
        %3433 = vmatpush1.msra.mxu0 %v3231
        %3434 = vmatprep.subr.mxu0 0.0
        %3435 = vmatpush1.msra.mxu0 %v3232
        %3436 = vmatprep.subr.mxu0 0.0
        %3437 = vmatpush1.msra.mxu0 %v3233
        %3438 = vmatprep.subr.mxu0 0.0
        %3439 = vmatpush1.msra.mxu0 %v3234
        %3440 = vmatprep.subr.mxu0 0.0
        %3441 = vmatpush1.msra.mxu0 %v3235
        %3442 = vmatprep.subr.mxu0 0.0
        %3443 = vmatpush1.msra.mxu0 %v3236
        %3444 = vmatprep.subr.mxu0 0.0
        %3445 = vmatpush1.msra.mxu0 %v3237
        %3446 = vmatprep.subr.mxu0 0.0
        %3447 = vmatpush1.msra.mxu0 %v3238
        %3448 = vmatprep.subr.mxu0 0.0
        %3449 = vmatpush1.msra.mxu0 %v3239
        %3450 = vmatprep.subr.mxu0 0.0
        %3451 = vmatpush1.msra.mxu0 %v3240
        %3452 = vmatprep.subr.mxu0 0.0
        %3453 = vmatpush1.msra.mxu0 %v3241
        %3454 = vmatprep.subr.mxu0 0.0
        %3455 = vmatpush1.msra.mxu0 %v3242
        %3456 = vmatprep.mubr.f32.mxu0 %v3180
        %3457 = vmatmul.mubr.f32.gmra.mrb[0].mxu0 %v3179
        %v3458 = vpop.f32.mrb[0].mxu0
        %v3459 = vadd.f32 %v3314, %v3458
        %v3460 = vpop.f32.mrb[0].mxu0
        %3461 = vmatprep.mubr.f32.mxu0 %v3182
        %3462 = vmatmul.mubr.f32.gmra.mrb[0].mxu0 %v3181
        %v3463 = vpop.f32.mrb[0].mxu0
        %v3464 = vadd.f32 %v3319, %v3463
        %v3465 = vpop.f32.mrb[0].mxu0
        %3466 = vmatprep.mubr.f32.mxu0 %v3184
        %3467 = vmatmul.mubr.f32.gmra.mrb[0].mxu0 %v3183
        %v3468 = vpop.f32.mrb[0].mxu0
        %v3469 = vadd.f32 %v3324, %v3468
        %v3470 = vpop.f32.mrb[0].mxu0
        %3471 = vmatprep.mubr.f32.mxu0 %v3186
        %3472 = vmatmul.mubr.f32.gmra.mrb[0].mxu0 %v3185
        %v3473 = vpop.f32.mrb[0].mxu0
        %v3474 = vadd.f32 %v3329, %v3473
        %v3475 = vpop.f32.mrb[0].mxu0
        %3476 = vmatprep.mubr.f32.mxu0 %v3188
        %3477 = vmatmul.mubr.f32.gmra.mrb[0].mxu0 %v3187
        %v3478 = vpop.f32.mrb[0].mxu0
        %v3479 = vadd.f32 %v3334, %v3478
        %v3480 = vpop.f32.mrb[0].mxu0
        %3481 = vmatprep.mubr.f32.mxu0 %v3190
        %3482 = vmatmul.mubr.f32.gmra.mrb[0].mxu0 %v3189
        %v3483 = vpop.f32.mrb[0].mxu0
        %v3484 = vadd.f32 %v3339, %v3483
        %v3485 = vpop.f32.mrb[0].mxu0
        %3486 = vmatprep.mubr.f32.mxu0 %v3192
        %3487 = vmatmul.mubr.f32.gmra.mrb[0].mxu0 %v3191
        %v3488 = vpop.f32.mrb[0].mxu0
        %v3489 = vadd.f32 %v3344, %v3488
        %v3490 = vpop.f32.mrb[0].mxu0
        %3491 = vmatprep.mubr.f32.mxu0 %v3194
        %3492 = vmatmul.mubr.f32.gmra.mrb[0].mxu0 %v3193
        %v3493 = vpop.f32.mrb[0].mxu0
        %v3494 = vadd.f32 %v3349, %v3493
        %v3495 = vpop.f32.mrb[0].mxu0
        %3496 = vmatprep.mubr.f32.mxu0 %v3196
        %3497 = vmatmul.mubr.f32.gmra.mrb[0].mxu0 %v3195
        %v3498 = vpop.f32.mrb[0].mxu0
        %v3499 = vadd.f32 %v3354, %v3498
        %v3500 = vpop.f32.mrb[0].mxu0
        %3501 = vmatprep.mubr.f32.mxu0 %v3198
        %3502 = vmatmul.mubr.f32.gmra.mrb[0].mxu0 %v3197
        %v3503 = vpop.f32.mrb[0].mxu0
        %v3504 = vadd.f32 %v3359, %v3503
        %v3505 = vpop.f32.mrb[0].mxu0
        %3506 = vmatprep.mubr.f32.mxu0 %v3200
        %3507 = vmatmul.mubr.f32.gmra.mrb[0].mxu0 %v3199
        %v3508 = vpop.f32.mrb[0].mxu0
        %v3509 = vadd.f32 %v3364, %v3508
        %v3510 = vpop.f32.mrb[0].mxu0
        %3511 = vmatprep.mubr.f32.mxu0 %v3202
        %3512 = vmatmul.mubr.f32.gmra.mrb[0].mxu0 %v3201
        %v3513 = vpop.f32.mrb[0].mxu0
        %v3514 = vadd.f32 %v3369, %v3513
        %v3515 = vpop.f32.mrb[0].mxu0
        %3516 = vmatprep.mubr.f32.mxu0 %v3204
        %3517 = vmatmul.mubr.f32.gmra.mrb[0].mxu0 %v3203
        %v3518 = vpop.f32.mrb[0].mxu0
        %v3519 = vadd.f32 %v3374, %v3518
        %v3520 = vpop.f32.mrb[0].mxu0
        %3521 = vmatprep.mubr.f32.mxu0 %v3206
        %3522 = vmatmul.mubr.f32.gmra.mrb[0].mxu0 %v3205
        %v3523 = vpop.f32.mrb[0].mxu0
        %v3524 = vadd.f32 %v3379, %v3523
        %v3525 = vpop.f32.mrb[0].mxu0
        %3526 = vmatprep.mubr.f32.mxu0 %v3208
        %3527 = vmatmul.mubr.f32.gmra.mrb[0].mxu0 %v3207
        %v3528 = vpop.f32.mrb[0].mxu0
        %v3529 = vadd.f32 %v3384, %v3528
        %v3530 = vpop.f32.mrb[0].mxu0
        %3531 = vmatprep.mubr.f32.mxu0 %v3210
        %3532 = vmatmul.mubr.f32.gmra.mrb[0].mxu0 %v3209
        %v3533 = vpop.f32.mrb[0].mxu0
        %v3534 = vadd.f32 %v3389, %v3533
        %v3535 = vpop.f32.mrb[0].mxu0
        %3536 = vdwg.mxu0
        %v3537 = vld [vmem:[%s17] sm:$0x1]
        %v3539 = vlaneseq
        %v3540 = vshrl.u32 %v3539, 7
        %v3541 = vsub.s32 0, %v3540
        %v3542 = vrot.slane %v3537, %v3541
        %v3544 = vadd.f32 %v3459, %v3542
        %v3545 = vadd.f32 %v3464, %v3542
        %v3546 = vadd.f32 %v3469, %v3542
        %v3547 = vadd.f32 %v3474, %v3542
        %v3548 = vadd.f32 %v3479, %v3542
        %v3549 = vadd.f32 %v3484, %v3542
        %v3550 = vadd.f32 %v3489, %v3542
        %v3551 = vadd.f32 %v3494, %v3542
        %v3552 = vadd.f32 %v3499, %v3542
        %v3553 = vadd.f32 %v3504, %v3542
        %v3554 = vadd.f32 %v3509, %v3542
        %v3555 = vadd.f32 %v3514, %v3542
        %v3556 = vadd.f32 %v3519, %v3542
        %v3557 = vadd.f32 %v3524, %v3542
        %v3558 = vadd.f32 %v3529, %v3542
        %v3559 = vadd.f32 %v3534, %v3542
        %v3560 = vld [vmem:[%s18] sm:$0x1]
        %v3561 = vld [vmem:[%s19] sm:$0x1]
        %vm3562 = vcmask 130048
        %v3563 = vsel %vm3562, %v3544, 0.0
        %3564 = vadd.xlane.f32.xlu0 %v3563
        %v3565 = vpop.xlane.xlu0 %3564
        %v3566 = vsel %vm3562, %v3545, 0.0
        %3567 = vadd.xlane.f32.xlu0 %v3566
        %v3568 = vpop.xlane.xlu0 %3567
        %v3569 = vsel %vm3562, %v3546, 0.0
        %3570 = vadd.xlane.f32.xlu0 %v3569
        %v3571 = vpop.xlane.xlu0 %3570
        %v3572 = vsel %vm3562, %v3547, 0.0
        %3573 = vadd.xlane.f32.xlu0 %v3572
        %v3574 = vpop.xlane.xlu0 %3573
        %v3575 = vsel %vm3562, %v3548, 0.0
        %3576 = vadd.xlane.f32.xlu0 %v3575
        %v3577 = vpop.xlane.xlu0 %3576
        %v3578 = vsel %vm3562, %v3549, 0.0
        %3579 = vadd.xlane.f32.xlu0 %v3578
        %v3580 = vpop.xlane.xlu0 %3579
        %v3581 = vsel %vm3562, %v3550, 0.0
        %3582 = vadd.xlane.f32.xlu0 %v3581
        %v3583 = vpop.xlane.xlu0 %3582
        %v3584 = vsel %vm3562, %v3551, 0.0
        %3585 = vadd.xlane.f32.xlu0 %v3584
        %v3586 = vpop.xlane.xlu0 %3585
        %v3587 = vsel %vm3562, %v3552, 0.0
        %3588 = vadd.xlane.f32.xlu0 %v3587
        %v3589 = vpop.xlane.xlu0 %3588
        %v3590 = vsel %vm3562, %v3553, 0.0
        %3591 = vadd.xlane.f32.xlu0 %v3590
        %v3592 = vpop.xlane.xlu0 %3591
        %v3593 = vsel %vm3562, %v3554, 0.0
        %3594 = vadd.xlane.f32.xlu0 %v3593
        %v3595 = vpop.xlane.xlu0 %3594
        %v3596 = vsel %vm3562, %v3555, 0.0
        %3597 = vadd.xlane.f32.xlu0 %v3596
        %v3598 = vpop.xlane.xlu0 %3597
        %v3599 = vsel %vm3562, %v3556, 0.0
        %3600 = vadd.xlane.f32.xlu0 %v3599
        %v3601 = vpop.xlane.xlu0 %3600
        %v3602 = vsel %vm3562, %v3557, 0.0
        %3603 = vadd.xlane.f32.xlu0 %v3602
        %v3604 = vpop.xlane.xlu0 %3603
        %v3605 = vsel %vm3562, %v3558, 0.0
        %3606 = vadd.xlane.f32.xlu0 %v3605
        %v3607 = vpop.xlane.xlu0 %3606
        %v3608 = vsel %vm3562, %v3559, 0.0
        %3609 = vadd.xlane.f32.xlu0 %v3608
        %v3610 = vpop.xlane.xlu0 %3609
        %v3611 = vrcp.pop 16.0
        %v3612 = vmul.f32 %v3565, %v3611
        %v3613 = vmul.f32 %v3568, %v3611
        %v3614 = vmul.f32 %v3571, %v3611
        %v3615 = vmul.f32 %v3574, %v3611
        %v3616 = vmul.f32 %v3577, %v3611
        %v3617 = vmul.f32 %v3580, %v3611
        %v3618 = vmul.f32 %v3583, %v3611
        %v3619 = vmul.f32 %v3586, %v3611
        %v3620 = vmul.f32 %v3589, %v3611
        %v3621 = vmul.f32 %v3592, %v3611
        %v3622 = vmul.f32 %v3595, %v3611
        %v3623 = vmul.f32 %v3598, %v3611
        %v3624 = vmul.f32 %v3601, %v3611
        %v3625 = vmul.f32 %v3604, %v3611
        %v3626 = vmul.f32 %v3607, %v3611
        %v3627 = vmul.f32 %v3610, %v3611
        %v3628 = vsub.f32 %v3544, %v3612
        %v3629 = vsub.f32 %v3545, %v3613
        %v3630 = vsub.f32 %v3546, %v3614
        %v3631 = vsub.f32 %v3547, %v3615
        %v3632 = vsub.f32 %v3548, %v3616
        %v3633 = vsub.f32 %v3549, %v3617
        %v3634 = vsub.f32 %v3550, %v3618
        %v3635 = vsub.f32 %v3551, %v3619
        %v3636 = vsub.f32 %v3552, %v3620
        %v3637 = vsub.f32 %v3553, %v3621
        %v3638 = vsub.f32 %v3554, %v3622
        %v3639 = vsub.f32 %v3555, %v3623
        %v3640 = vsub.f32 %v3556, %v3624
        %v3641 = vsub.f32 %v3557, %v3625
        %v3642 = vsub.f32 %v3558, %v3626
        %v3643 = vsub.f32 %v3559, %v3627
        %v3644 = vmul.f32 %v3628, %v3628
        %v3645 = vmul.f32 %v3629, %v3629
        %v3646 = vmul.f32 %v3630, %v3630
        %v3647 = vmul.f32 %v3631, %v3631
        %v3648 = vmul.f32 %v3632, %v3632
        %v3649 = vmul.f32 %v3633, %v3633
        %v3650 = vmul.f32 %v3634, %v3634
        %v3651 = vmul.f32 %v3635, %v3635
        %v3652 = vmul.f32 %v3636, %v3636
        %v3653 = vmul.f32 %v3637, %v3637
        %v3654 = vmul.f32 %v3638, %v3638
        %v3655 = vmul.f32 %v3639, %v3639
        %v3656 = vmul.f32 %v3640, %v3640
        %v3657 = vmul.f32 %v3641, %v3641
        %v3658 = vmul.f32 %v3642, %v3642
        %v3659 = vmul.f32 %v3643, %v3643
        %v3660 = vsel %vm3562, %v3644, 0.0
        %3661 = vadd.xlane.f32.xlu0 %v3660
        %v3662 = vpop.xlane.xlu0 %3661
        %v3663 = vsel %vm3562, %v3645, 0.0
        %3664 = vadd.xlane.f32.xlu0 %v3663
        %v3665 = vpop.xlane.xlu0 %3664
        %v3666 = vsel %vm3562, %v3646, 0.0
        %3667 = vadd.xlane.f32.xlu0 %v3666
        %v3668 = vpop.xlane.xlu0 %3667
        %v3669 = vsel %vm3562, %v3647, 0.0
        %3670 = vadd.xlane.f32.xlu0 %v3669
        %v3671 = vpop.xlane.xlu0 %3670
        %v3672 = vsel %vm3562, %v3648, 0.0
        %3673 = vadd.xlane.f32.xlu0 %v3672
        %v3674 = vpop.xlane.xlu0 %3673
        %v3675 = vsel %vm3562, %v3649, 0.0
        %3676 = vadd.xlane.f32.xlu0 %v3675
        %v3677 = vpop.xlane.xlu0 %3676
        %v3678 = vsel %vm3562, %v3650, 0.0
        %3679 = vadd.xlane.f32.xlu0 %v3678
        %v3680 = vpop.xlane.xlu0 %3679
        %v3681 = vsel %vm3562, %v3651, 0.0
        %3682 = vadd.xlane.f32.xlu0 %v3681
        %v3683 = vpop.xlane.xlu0 %3682
        %v3684 = vsel %vm3562, %v3652, 0.0
        %3685 = vadd.xlane.f32.xlu0 %v3684
        %v3686 = vpop.xlane.xlu0 %3685
        %v3687 = vsel %vm3562, %v3653, 0.0
        %3688 = vadd.xlane.f32.xlu0 %v3687
        %v3689 = vpop.xlane.xlu0 %3688
        %v3690 = vsel %vm3562, %v3654, 0.0
        %3691 = vadd.xlane.f32.xlu0 %v3690
        %v3692 = vpop.xlane.xlu0 %3691
        %v3693 = vsel %vm3562, %v3655, 0.0
        %3694 = vadd.xlane.f32.xlu0 %v3693
        %v3695 = vpop.xlane.xlu0 %3694
        %v3696 = vsel %vm3562, %v3656, 0.0
        %3697 = vadd.xlane.f32.xlu0 %v3696
        %v3698 = vpop.xlane.xlu0 %3697
        %v3699 = vsel %vm3562, %v3657, 0.0
        %3700 = vadd.xlane.f32.xlu0 %v3699
        %v3701 = vpop.xlane.xlu0 %3700
        %v3702 = vsel %vm3562, %v3658, 0.0
        %3703 = vadd.xlane.f32.xlu0 %v3702
        %v3704 = vpop.xlane.xlu0 %3703
        %v3705 = vsel %vm3562, %v3659, 0.0
        %3706 = vadd.xlane.f32.xlu0 %v3705
        %v3707 = vpop.xlane.xlu0 %3706
        %v3708 = vmul.f32 %v3662, %v3611
        %v3709 = vmul.f32 %v3665, %v3611
        %v3710 = vmul.f32 %v3668, %v3611
        %v3711 = vmul.f32 %v3671, %v3611
        %v3712 = vmul.f32 %v3674, %v3611
        %v3713 = vmul.f32 %v3677, %v3611
        %v3714 = vmul.f32 %v3680, %v3611
        %v3715 = vmul.f32 %v3683, %v3611
        %v3716 = vmul.f32 %v3686, %v3611
        %v3717 = vmul.f32 %v3689, %v3611
        %v3718 = vmul.f32 %v3692, %v3611
        %v3719 = vmul.f32 %v3695, %v3611
        %v3720 = vmul.f32 %v3698, %v3611
        %v3721 = vmul.f32 %v3701, %v3611
        %v3722 = vmul.f32 %v3704, %v3611
        %v3723 = vmul.f32 %v3707, %v3611
        %v3724 = vadd.f32 %v3708, 1e-05
        %v3725 = vadd.f32 %v3709, 1e-05
        %v3726 = vadd.f32 %v3710, 1e-05
        %v3727 = vadd.f32 %v3711, 1e-05
        %v3728 = vadd.f32 %v3712, 1e-05
        %v3729 = vadd.f32 %v3713, 1e-05
        %v3730 = vadd.f32 %v3714, 1e-05
        %v3731 = vadd.f32 %v3715, 1e-05
        %v3732 = vadd.f32 %v3716, 1e-05
        %v3733 = vadd.f32 %v3717, 1e-05
        %v3734 = vadd.f32 %v3718, 1e-05
        %v3735 = vadd.f32 %v3719, 1e-05
        %v3736 = vadd.f32 %v3720, 1e-05
        %v3737 = vadd.f32 %v3721, 1e-05
        %v3738 = vadd.f32 %v3722, 1e-05
        %v3739 = vadd.f32 %v3723, 1e-05
        %v3740 = vrsqrt.pop %v3724
        %v3741 = vrsqrt.pop %v3725
        %v3742 = vrsqrt.pop %v3726
        %v3743 = vrsqrt.pop %v3727
        %v3744 = vrsqrt.pop %v3728
        %v3745 = vrsqrt.pop %v3729
        %v3746 = vrsqrt.pop %v3730
        %v3747 = vrsqrt.pop %v3731
        %v3748 = vrsqrt.pop %v3732
        %v3749 = vrsqrt.pop %v3733
        %v3750 = vrsqrt.pop %v3734
        %v3751 = vrsqrt.pop %v3735
        %v3752 = vrsqrt.pop %v3736
        %v3753 = vrsqrt.pop %v3737
        %v3754 = vrsqrt.pop %v3738
        %v3755 = vrsqrt.pop %v3739
        %v3756 = vmul.f32 %v3628, %v3740
        %v3757 = vmul.f32 %v3629, %v3741
        %v3758 = vmul.f32 %v3630, %v3742
        %v3759 = vmul.f32 %v3631, %v3743
        %v3760 = vmul.f32 %v3632, %v3744
        %v3761 = vmul.f32 %v3633, %v3745
        %v3762 = vmul.f32 %v3634, %v3746
        %v3763 = vmul.f32 %v3635, %v3747
        %v3764 = vmul.f32 %v3636, %v3748
        %v3765 = vmul.f32 %v3637, %v3749
        %v3766 = vmul.f32 %v3638, %v3750
        %v3767 = vmul.f32 %v3639, %v3751
        %v3768 = vmul.f32 %v3640, %v3752
        %v3769 = vmul.f32 %v3641, %v3753
        %v3770 = vmul.f32 %v3642, %v3754
        %v3771 = vmul.f32 %v3643, %v3755
        %v3773 = vlaneseq
        %v3774 = vshrl.u32 %v3773, 7
        %v3775 = vsub.s32 0, %v3774
        %v3776 = vrot.slane %v3560, %v3775
        %v3778 = vmul.f32 %v3756, %v3776
        %v3779 = vmul.f32 %v3757, %v3776
        %v3780 = vmul.f32 %v3758, %v3776
        %v3781 = vmul.f32 %v3759, %v3776
        %v3782 = vmul.f32 %v3760, %v3776
        %v3783 = vmul.f32 %v3761, %v3776
        %v3784 = vmul.f32 %v3762, %v3776
        %v3785 = vmul.f32 %v3763, %v3776
        %v3786 = vmul.f32 %v3764, %v3776
        %v3787 = vmul.f32 %v3765, %v3776
        %v3788 = vmul.f32 %v3766, %v3776
        %v3789 = vmul.f32 %v3767, %v3776
        %v3790 = vmul.f32 %v3768, %v3776
        %v3791 = vmul.f32 %v3769, %v3776
        %v3792 = vmul.f32 %v3770, %v3776
        %v3793 = vmul.f32 %v3771, %v3776
        %v3795 = vlaneseq
        %v3796 = vshrl.u32 %v3795, 7
        %v3797 = vsub.s32 0, %v3796
        %v3798 = vrot.slane %v3561, %v3797
        %v3800 = vadd.f32 %v3778, %v3798
        %v3801 = vadd.f32 %v3779, %v3798
        %v3802 = vadd.f32 %v3780, %v3798
        %v3803 = vadd.f32 %v3781, %v3798
        %v3804 = vadd.f32 %v3782, %v3798
        %v3805 = vadd.f32 %v3783, %v3798
        %v3806 = vadd.f32 %v3784, %v3798
        %v3807 = vadd.f32 %v3785, %v3798
        %v3808 = vadd.f32 %v3786, %v3798
        %v3809 = vadd.f32 %v3787, %v3798
        %v3810 = vadd.f32 %v3788, %v3798
        %v3811 = vadd.f32 %v3789, %v3798
        %v3812 = vadd.f32 %v3790, %v3798
        %v3813 = vadd.f32 %v3791, %v3798
        %v3814 = vadd.f32 %v3792, %v3798
        %v3815 = vadd.f32 %v3793, %v3798
        %v3816 = vtanh.pop %v3800
        %v3817 = vtanh.pop %v3801
        %v3818 = vtanh.pop %v3802
        %v3819 = vtanh.pop %v3803
        %v3820 = vtanh.pop %v3804
        %v3821 = vtanh.pop %v3805
        %v3822 = vtanh.pop %v3806
        %v3823 = vtanh.pop %v3807
        %v3824 = vtanh.pop %v3808
        %v3825 = vtanh.pop %v3809
        %v3826 = vtanh.pop %v3810
        %v3827 = vtanh.pop %v3811
        %v3828 = vtanh.pop %v3812
        %v3829 = vtanh.pop %v3813
        %v3830 = vtanh.pop %v3814
        %v3831 = vtanh.pop %v3815
        %3832 = vst.msk [vmem:[%s661] sm:$0xff] %vm3562, %v3816
        %3833 = vst.msk [vmem:[%s661 + $0x8] sm:$0xff] %vm3562, %v3817
        %3834 = vst.msk [vmem:[%s661 + $0x10] sm:$0xff] %vm3562, %v3818
        %3835 = vst.msk [vmem:[%s661 + $0x18] sm:$0xff] %vm3562, %v3819
        %3836 = vst.msk [vmem:[%s661 + $0x20] sm:$0xff] %vm3562, %v3820
        %3837 = vst.msk [vmem:[%s661 + $0x28] sm:$0xff] %vm3562, %v3821
        %3838 = vst.msk [vmem:[%s661 + $0x30] sm:$0xff] %vm3562, %v3822
        %3839 = vst.msk [vmem:[%s661 + $0x38] sm:$0xff] %vm3562, %v3823
        %3840 = vst.msk [vmem:[%s661 + $0x40] sm:$0xff] %vm3562, %v3824
        %3841 = vst.msk [vmem:[%s661 + $0x48] sm:$0xff] %vm3562, %v3825
        %3842 = vst.msk [vmem:[%s661 + $0x50] sm:$0xff] %vm3562, %v3826
        %3843 = vst.msk [vmem:[%s661 + $0x58] sm:$0xff] %vm3562, %v3827
        %3844 = vst.msk [vmem:[%s661 + $0x60] sm:$0xff] %vm3562, %v3828
        %3845 = vst.msk [vmem:[%s661 + $0x68] sm:$0xff] %vm3562, %v3829
        %3846 = vst.msk [vmem:[%s661 + $0x70] sm:$0xff] %vm3562, %v3830
        %3847 = vst.msk [vmem:[%s661 + $0x78] sm:$0xff] %vm3562, %v3831
        %s3848 = smul.u32 16, %s33
        %p3849 = scmp.lt.s32.totalorder %s3848, 31
        %s3850 = scalar_select %p3849, %s3848, 31
        %s3851 = smul.addr %s3850, 8
        %s3852 = scalar_lea.vmem %s20, %s3851
        // Predicated region
        $region109: #{tpu_custom_call.1} parent=99 // pred_check
          %p3853 = pneg %p476
        $region110: #{tpu_custom_call.1} parent=99 // pred_check_branch
          %3855 = sbr.rel (%p3853) target = $region112
        $region111: #{tpu_custom_call.1} parent=99 // pred_region
          %s3856 = smul.u32 16, %s33
        $region112: #{tpu_custom_call.1} parent=99 // pred_fallthru
          _
      $region100: #{tpu_custom_call.1} parent=5 // pred_fallthru
        _
      %p3857 = scmp.le.s32.totalorder 2, %s28
      // Predicated region
      $region113: #{tpu_custom_call.1} parent=5 // pred_check
        %p3858 = pneg %p3857
      $region114: #{tpu_custom_call.1} parent=5 // pred_check_branch
        %3860 = sbr.rel (%p3858) target = $region116
      $region115: #{tpu_custom_call.1} parent=5 // pred_region
        %s3861 = ssub.s32 %s28, 2
        // Predicated region
        $region117: #{tpu_custom_call.1} parent=115 // pred_check
          %p3862 = pneg %p482
        $region118: #{tpu_custom_call.1} parent=115 // pred_check_branch
          %3864 = sbr.rel (%p3862) target = $region120
        $region119: #{tpu_custom_call.1} parent=115 // pred_region
          %s3865 = smul.u32 16, %s34
          %p3866 = scmp.lt.s32.totalorder %s3865, 31
          %s3867 = scalar_select %p3866, %s3865, 31
          %s3868 = smul.addr %s3867, 8
          %s3869 = scalar_lea.vmem %s20, %s3868
        $region120: #{tpu_custom_call.1} parent=115 // pred_fallthru
          _
      $region116: #{tpu_custom_call.1} parent=5 // pred_fallthru
        _
    $region6: #{tpu_custom_call.1} parent=1 // loop_footer
      %s32 = sadd.s32 1, %s28
    $region7: #{tpu_custom_call.1} parent=1 // loop_footer_branch
      %27 = sbr.rel target = $region3
    $region8: #{tpu_custom_call.1} parent=1 // loop_exit
      _
    %3870 = vsyncpa [#allocation3], 1
    %s3871 = scalar_lea.sflag [#allocation3], 1
    %3872 = vsyncpa %s3871, 1
    %3873 = vsyncpa [#allocation5], 1

</llo_original>
